<compile_context>
chip_gen: v7x
topology: tpu7x:2x2x1
jax: 0.10.0
libtpu: 0.0.40
codegen_flags: <defaults>
</compile_context>

<pallas_src>
import functools

import jax
import jax.numpy as jnp
from jax.experimental import pallas as pl
from jax.experimental.pallas import tpu as pltpu

BIN_SIZES = (1, 2, 4, 6)
BN_EPS = 1e-5
VMEM_BUDGET = 40 << 20          # per-step working set target (fits v7x 64 MiB)
VMEM_LIMIT_CAP = 56 << 20       # scoped VMEM cap, leaves headroom on v7x


def _round_up(x, m):
    return (x + m - 1) // m * m


# ----------------------------- plain-JAX glue -------------------------------

def _adaptive_avg_pool_nhwc(x, out_size):
    """Exact PyTorch AdaptiveAvgPool2d semantics. x: (N, H, W, C)."""
    _, H, W, _ = x.shape
    rows = []
    for i in range(out_size):
        h0 = (i * H) // out_size
        h1 = -((-((i + 1) * H)) // out_size)  # ceil
        cols = []
        for j in range(out_size):
            w0 = (j * W) // out_size
            w1 = -((-((j + 1) * W)) // out_size)
            cols.append(jnp.mean(x[:, h0:h1, w0:w1, :], axis=(1, 2)))
        rows.append(jnp.stack(cols, axis=1))          # (N, out_w, C)
    return jnp.stack(rows, axis=1)                    # (N, out_h, out_w, C)


def _upsample_bilinear_align_corners(x, out_h, out_w):
    """F.interpolate(mode='bilinear', align_corners=True). x: (N, h, w, C)."""
    _, h, w, _ = x.shape

    def src_coords(out_len, in_len):
        if in_len == 1 or out_len == 1:
            return jnp.zeros((out_len,), jnp.float32)
        return jnp.arange(out_len, dtype=jnp.float32) * ((in_len - 1) / (out_len - 1))

    ys, xs = src_coords(out_h, h), src_coords(out_w, w)
    y0 = jnp.floor(ys).astype(jnp.int32)
    x0 = jnp.floor(xs).astype(jnp.int32)
    y1 = jnp.minimum(y0 + 1, h - 1)
    x1 = jnp.minimum(x0 + 1, w - 1)
    wy = (ys - y0.astype(jnp.float32))[None, :, None, None]
    wx = (xs - x0.astype(jnp.float32))[None, None, :, None]

    a = x[:, y0][:, :, x0]
    b = x[:, y0][:, :, x1]
    c = x[:, y1][:, :, x0]
    d = x[:, y1][:, :, x1]
    top = a * (1.0 - wx) + b * wx
    bot = c * (1.0 - wx) + d * wx
    return top * (1.0 - wy) + bot * wy


# ------------------------------ Pallas kernel --------------------------------

def _conv3x3_bn_relu_kernel(x_ref, w_ref, sb_ref, o_ref, acc_ref):
    # x_ref  : (th+2, Wi, tc)  bf16 halo slab (rows m*th-1 .. m*th+th, 0-padded)
    # w_ref  : (3, 3, tc, tn)  bf16 conv weights for this (Cin, Cout) tile
    # sb_ref : (2, tn)         f32 folded-BN scale (row 0) and bias (row 1)
    # o_ref  : (th, Wo, tn)    bf16 output tile, VMEM-resident across k axis
    # acc_ref: (th*Wo, tn)     f32 accumulator
    k = pl.program_id(3)
    th, Wo, tn = o_ref.shape

    @pl.when(k == 0)
    def _init():
        acc_ref[...] = jnp.zeros_like(acc_ref)

    # 3x3 conv as 9 shifted-slice MXU matmuls over the halo slab: the weight
    # tile is reused for every output pixel and the activation slab for all 9
    # taps, so per-step flop/byte is far above every generation's HBM ridge.
    for dy in range(3):
        for dx in range(3):
            lhs = x_ref[dy:dy + th, dx:dx + Wo, :].reshape(th * Wo, -1)
            acc_ref[...] += jnp.dot(lhs, w_ref[dy, dx],
                                    preferred_element_type=jnp.float32)

    @pl.when(k == pl.num_programs(3) - 1)
    def _finalize():
        scale = sb_ref[0:1, :]   # (1, tn)
        bias = sb_ref[1:2, :]    # (1, tn)
        y = jnp.maximum(acc_ref[...] * scale + bias, 0.0)
        o_ref[...] = y.reshape(th, Wo, tn).astype(o_ref.dtype)


def _choose_tiles(H, W, Cin, Cout):
    Wo = _round_up(W, 16)         # bf16 sublane packing is (16, 128)
    Wi = Wo + 2                   # +2 halo columns (zero-padded)

    if Cout <= 256:               # single Cout tile, no channel padding
        tn, Coutp = Cout, Cout
    else:
        tn = 256
        Coutp = _round_up(Cout, tn)

    if Cin <= 512:                # single Cin (reduction) tile, no padding
        tc, Cinp = Cin, Cin
    else:
        tc = 512
        Cinp = _round_up(Cin, tc)

    def vmem_bytes(th):
        return (2 * (th + 2) * Wi * tc * 2     # halo slab, double-buffered bf16
                + 2 * 9 * tc * tn * 2          # weights, double-buffered bf16
                + 2 * th * Wo * tn * 2         # bf16 output, double-buffered
                + th * Wo * tn * 4             # f32 accumulator scratch
                + 2 * 2 * tn * 4)              # scale / bias

    th = _round_up(H, 8)
    while th > 8 and vmem_bytes(th) > VMEM_BUDGET:
        th = max(8, _round_up(th // 2, 8))
    Hp = _round_up(H, th)
    return th, Hp, Wo, Wi, tn, Coutp, tc, Cinp, vmem_bytes(th)


def pallas_conv3x3_bn_relu(x_nhwc, w, scale, bias):
    """3x3 conv (pad=1, no bias) + folded BN + ReLU as halo-tiled MXU matmuls.

    x_nhwc: (N, H, W, Cin); w: (3, 3, Cin, Cout) HWIO; scale/bias: (Cout,)."""
    N, H, W, Cin = x_nhwc.shape
    Cout = w.shape[-1]

    th, Hp, Wo, Wi, tn, Coutp, tc, Cinp, est = _choose_tiles(H, W, Cin, Cout)
    Mt = Hp // th

    # Exactly ONE pad of the activation: conv halo (+1 on each spatial side)
    # and row/column/channel alignment folded together.  No im2col.
    xb = x_nhwc.astype(jnp.bfloat16)
    xp = jnp.pad(xb, ((0, 0), (1, Hp + 1 - H), (1, Wi - 1 - W), (0, Cinp - Cin)))
    if Mt == 1:
        xh = xp[:, None]                                  # (N, 1, th+2, Wi, Cinp)
    else:
        # Overlapping row tiles: only 2 duplicated halo rows per th-row tile
        # (vs 9x duplication with im2col).
        xh = jnp.stack([xp[:, m * th:m * th + th + 2] for m in range(Mt)], axis=1)
    # TODO(synk): add column (W) halo tiling for very wide feature maps; the
    # current rows-only tiling assumes a (th+2, W+2, tc) slab fits VMEM.

    w2 = jnp.pad(w.astype(jnp.bfloat16),
                 ((0, 0), (0, 0), (0, Cinp - Cin), (0, Coutp - Cout)))
    sb = jnp.pad(jnp.stack([scale, bias], axis=0).astype(jnp.float32),
                 ((0, 0), (0, Coutp - Cout)))             # (2, Coutp)

    grid = (N, Mt, Coutp // tn, Cinp // tc)               # reduction axis last
    vmem_limit = int(min(max(est + (8 << 20), 32 << 20), VMEM_LIMIT_CAP))

    cost = pl.CostEstimate(
        flops=2 * 9 * N * Hp * Wo * Cinp * Coutp,
        transcendentals=0,
        bytes_accessed=(xh.size * 2 * (Coutp // tn) + w2.size * 2 * N * Mt
                        + sb.size * 4 + N * Hp * Wo * Coutp * 2))

    out = pl.pallas_call(
        _conv3x3_bn_relu_kernel,
        out_shape=jax.ShapeDtypeStruct((N, Hp, Wo, Coutp), jnp.bfloat16),
        grid_spec=pltpu.PrefetchScalarGridSpec(
            num_scalar_prefetch=0,
            grid=grid,
            in_specs=[
                pl.BlockSpec((None, None, th + 2, Wi, tc),
                             lambda n, m, j, k: (n, m, 0, 0, k)),
                pl.BlockSpec((3, 3, tc, tn), lambda n, m, j, k: (0, 0, k, j)),
                pl.BlockSpec((2, tn), lambda n, m, j, k: (0, j)),
            ],
            out_specs=pl.BlockSpec((None, th, Wo, tn),
                                   lambda n, m, j, k: (n, m, 0, j)),
            scratch_shapes=[pltpu.VMEM((th * Wo, tn), jnp.float32)],
        ),
        compiler_params=pltpu.CompilerParams(
            dimension_semantics=("parallel", "parallel", "parallel",
                                 "arbitrary"),
            vmem_limit_bytes=vmem_limit),
        cost_estimate=cost,
    )(xh, w2, sb)

    return out[:, :H, :W, :Cout]


def _reference_conv3x3_bn_relu(x_nhwc, w, scale, bias):
    """Pure-XLA f32 reference for the bottleneck (correctness cross-check)."""
    y = jax.lax.conv_general_dilated(
        x_nhwc, w, window_strides=(1, 1), padding=((1, 1), (1, 1)),
        dimension_numbers=("NHWC", "HWIO", "NHWC"))
    return jnp.maximum(y * scale + bias, 0.0)


# ------------------------------ PSPModule ------------------------------------

def init_psp_params(key, in_channels, bin_sizes=BIN_SIZES):
    n_bins = len(bin_sizes)
    out_channels = in_channels // n_bins
    keys = jax.random.split(key, n_bins + 1)
    stages = []
    for i in range(n_bins):
        k1, k2, k3, k4 = jax.random.split(keys[i], 4)
        stages.append(dict(
            w=0.1 * jax.random.normal(k1, (in_channels, out_channels), jnp.float32),
            gamma=1.0 + 0.1 * jax.random.normal(k2, (out_channels,), jnp.float32),
            beta=0.1 * jax.random.normal(k3, (out_channels,), jnp.float32),
            mean=0.1 * jax.random.normal(k4, (out_channels,), jnp.float32),
            var=1.0 + 0.05 * jnp.arange(out_channels, dtype=jnp.float32),
        ))
    cin_cat = in_channels + out_channels * n_bins
    kb1, kb2, kb3, kb4 = jax.random.split(keys[-1], 4)
    bottleneck = dict(
        w=0.1 * jax.random.normal(kb1, (3, 3, cin_cat, in_channels), jnp.float32),
        gamma=1.0 + 0.1 * jax.random.normal(kb2, (in_channels,), jnp.float32),
        beta=0.1 * jax.random.normal(kb3, (in_channels,), jnp.float32),
        mean=0.1 * jax.random.normal(kb4, (in_channels,), jnp.float32),
        var=1.0 + 0.05 * jnp.arange(in_channels, dtype=jnp.float32),
    )
    return dict(stages=stages, bottleneck=bottleneck)


def psp_forward(x_nchw, params, use_pallas=True):
    # layout: input/output NCHW (PyTorch convention), NHWC internally.
    x = jnp.transpose(x_nchw, (0, 2, 3, 1))
    _, H, W, _ = x.shape

    pyramids = [x]
    for bs, sp in zip(BIN_SIZES, params["stages"]):
        pooled = _adaptive_avg_pool_nhwc(x, bs)                       # (N,b,b,C)
        y = jnp.einsum("nhwc,co->nhwo", pooled, sp["w"])              # 1x1 conv
        inv_std = sp["gamma"] / jnp.sqrt(sp["var"] + BN_EPS)          # BN (eval)
        y = (y - sp["mean"]) * inv_std + sp["beta"]
        y = jnp.maximum(y, 0.0)                                       # ReLU
        pyramids.append(_upsample_bilinear_align_corners(y, H, W))

    cat = jnp.concatenate(pyramids, axis=-1)                          # (N,H,W,2C)

    bp = params["bottleneck"]
    scale = bp["gamma"] / jnp.sqrt(bp["var"] + BN_EPS)                # fold BN
    bias = bp["beta"] - bp["mean"] * scale
    if use_pallas:
        out = pallas_conv3x3_bn_relu(cat, bp["w"], scale, bias)       # bf16
    else:
        out = _reference_conv3x3_bn_relu(cat, bp["w"], scale, bias)   # f32
    # Dropout2d(0.1): identity in eval mode.  Match PyTorch f32 output dtype.
    return jnp.transpose(out, (0, 3, 1, 2)).astype(jnp.float32)


if __name__ == "__main__":
    key = jax.random.PRNGKey(0)
    k_x, k_p = jax.random.split(key)
    N, C, H, W = 2, 8, 16, 16
    x = jax.random.normal(k_x, (N, C, H, W), jnp.float32)
    params = init_psp_params(k_p, C)

    out = jax.jit(psp_forward)(x, params)
    out = jax.block_until_ready(out)
    assert out.shape == (N, C, H, W), out.shape
    assert bool(jnp.all(jnp.isfinite(out)))

    # Cross-check the Pallas bottleneck against the pure-XLA f32 reference
    # (loose tolerance: kernel inputs/outputs are bf16, accumulation is f32).
    ref = jax.jit(functools.partial(psp_forward, use_pallas=False))(x, params)
    ref = jax.block_until_ready(ref)
    max_err = float(jnp.max(jnp.abs(out - ref)))
    tol = 0.05 * (1.0 + float(jnp.max(jnp.abs(ref))))
    assert max_err < tol, (max_err, tol)

    print("KERNEL_OK")
</pallas_src>

<mosaic_0001>
module attributes {stable_mosaic.version = 11 : i64} {
  func.func @_conv3x3_bn_relu_kernel(%arg0: i32, %arg1: i32, %arg2: i32, %arg3: i32, %arg4: memref<1x1x18x18x16xbf16, #tpu.memory_space<vmem>>, %arg5: memref<3x3x16x8xbf16, #tpu.memory_space<vmem>>, %arg6: memref<2x8xf32, #tpu.memory_space<vmem>>, %arg7: memref<1x16x16x8xbf16, #tpu.memory_space<vmem>>, %arg8: memref<256x8xf32, #tpu.memory_space<vmem>>) attributes {dimension_semantics = [#tpu.dimension_semantics<parallel>, #tpu.dimension_semantics<parallel>, #tpu.dimension_semantics<parallel>, #tpu.dimension_semantics<arbitrary>], iteration_bounds = array<i64: 2, 1, 1, 1>, scalar_prefetch = 0 : i64, scratch_operands = 1 : i64, tpu.core_type = #tpu.core_type<tc>, window_params = [{transform_indices = @transform_0, window_bounds = array<i64: 1, 1, 18, 18, 16>}, {transform_indices = @transform_1, window_bounds = array<i64: 3, 3, 16, 8>}, {transform_indices = @transform_2, window_bounds = array<i64: 2, 8>}, {transform_indices = @transform_3, window_bounds = array<i64: 1, 16, 16, 8>}]} {
    %c0_i32 = arith.constant 0 : i32
    %0 = arith.cmpi eq, %arg3, %c0_i32 : i32
    %1 = arith.extui %0 : i1 to i32
    %c0_i32_0 = arith.constant 0 : i32
    %2 = arith.cmpi ne, %1, %c0_i32_0 : i32
    scf.if %2 {
      %cst_125 = arith.constant 0.000000e+00 : f32
      %87 = vector.broadcast %cst_125 : f32 to vector<256x8xf32>
      %c0_126 = arith.constant 0 : index
      %c0_127 = arith.constant 0 : index
      %88 = vector.load %arg8[%c0_126, %c0_127] : memref<256x8xf32, #tpu.memory_space<vmem>>, vector<256x8xf32>
      tpu.vector_store %arg8[%c0_126, %c0_127], %87 {strides = array<i32>} : memref<256x8xf32, #tpu.memory_space<vmem>>, vector<256x8xf32>,
    } else {
    }
    %c0 = arith.constant 0 : index
    %c0_1 = arith.constant 0 : index
    %c0_2 = arith.constant 0 : index
    %c0_3 = arith.constant 0 : index
    %c0_4 = arith.constant 0 : index
    %3 = vector.load %arg4[%c0, %c0_1, %c0_2, %c0_3, %c0_4] : memref<1x1x18x18x16xbf16, #tpu.memory_space<vmem>>, vector<1x1x16x16x16xbf16>
    %4 = vector.shape_cast %3 : vector<1x1x16x16x16xbf16> to vector<16x16x16xbf16>
    %5 = vector.shape_cast %4 : vector<16x16x16xbf16> to vector<256x16xbf16>
    %c0_5 = arith.constant 0 : index
    %c0_6 = arith.constant 0 : index
    %6 = vector.load %arg8[%c0_5, %c0_6] : memref<256x8xf32, #tpu.memory_space<vmem>>, vector<256x8xf32>
    %c0_7 = arith.constant 0 : index
    %c0_8 = arith.constant 0 : index
    %c0_9 = arith.constant 0 : index
    %c0_10 = arith.constant 0 : index
    %7 = vector.load %arg5[%c0_7, %c0_8, %c0_9, %c0_10] : memref<3x3x16x8xbf16, #tpu.memory_space<vmem>>, vector<1x1x16x8xbf16>
    %8 = vector.shape_cast %7 : vector<1x1x16x8xbf16> to vector<16x8xbf16>
    %cst = arith.constant dense<0.000000e+00> : vector<256x8xf32>
    %9 = tpu.matmul %5, %8, %cst {dimension_numbers = #tpu.dot_dimension_numbers<[1], [0], [0], [1], [0, 0, 1, 1], [], []>} : vector<256x16xbf16>, vector<16x8xbf16>, vector<256x8xf32> -> vector<256x8xf32>
    %10 = arith.addf %6, %9 : vector<256x8xf32>
    %c0_11 = arith.constant 0 : index
    %c0_12 = arith.constant 0 : index
    %11 = vector.load %arg8[%c0_11, %c0_12] : memref<256x8xf32, #tpu.memory_space<vmem>>, vector<256x8xf32>
    tpu.vector_store %arg8[%c0_11, %c0_12], %10 {strides = array<i32>} : memref<256x8xf32, #tpu.memory_space<vmem>>, vector<256x8xf32>,
    %c0_13 = arith.constant 0 : index
    %c0_14 = arith.constant 0 : index
    %c0_15 = arith.constant 0 : index
    %c1 = arith.constant 1 : index
    %c0_16 = arith.constant 0 : index
    %12 = vector.load %arg4[%c0_13, %c0_14, %c0_15, %c1, %c0_16] : memref<1x1x18x18x16xbf16, #tpu.memory_space<vmem>>, vector<1x1x16x16x16xbf16>
    %13 = vector.shape_cast %12 : vector<1x1x16x16x16xbf16> to vector<16x16x16xbf16>
    %14 = vector.shape_cast %13 : vector<16x16x16xbf16> to vector<256x16xbf16>
    %c0_17 = arith.constant 0 : index
    %c0_18 = arith.constant 0 : index
    %15 = vector.load %arg8[%c0_17, %c0_18] : memref<256x8xf32, #tpu.memory_space<vmem>>, vector<256x8xf32>
    %c0_19 = arith.constant 0 : index
    %c1_20 = arith.constant 1 : index
    %c0_21 = arith.constant 0 : index
    %c0_22 = arith.constant 0 : index
    %16 = vector.load %arg5[%c0_19, %c1_20, %c0_21, %c0_22] : memref<3x3x16x8xbf16, #tpu.memory_space<vmem>>, vector<1x1x16x8xbf16>
    %17 = vector.shape_cast %16 : vector<1x1x16x8xbf16> to vector<16x8xbf16>
    %cst_23 = arith.constant dense<0.000000e+00> : vector<256x8xf32>
    %18 = tpu.matmul %14, %17, %cst_23 {dimension_numbers = #tpu.dot_dimension_numbers<[1], [0], [0], [1], [0, 0, 1, 1], [], []>} : vector<256x16xbf16>, vector<16x8xbf16>, vector<256x8xf32> -> vector<256x8xf32>
    %19 = arith.addf %15, %18 : vector<256x8xf32>
    %c0_24 = arith.constant 0 : index
    %c0_25 = arith.constant 0 : index
    %20 = vector.load %arg8[%c0_24, %c0_25] : memref<256x8xf32, #tpu.memory_space<vmem>>, vector<256x8xf32>
    tpu.vector_store %arg8[%c0_24, %c0_25], %19 {strides = array<i32>} : memref<256x8xf32, #tpu.memory_space<vmem>>, vector<256x8xf32>,
    %c0_26 = arith.constant 0 : index
    %c0_27 = arith.constant 0 : index
    %c0_28 = arith.constant 0 : index
    %c2 = arith.constant 2 : index
    %c0_29 = arith.constant 0 : index
    %21 = vector.load %arg4[%c0_26, %c0_27, %c0_28, %c2, %c0_29] : memref<1x1x18x18x16xbf16, #tpu.memory_space<vmem>>, vector<1x1x16x16x16xbf16>
    %22 = vector.shape_cast %21 : vector<1x1x16x16x16xbf16> to vector<16x16x16xbf16>
    %23 = vector.shape_cast %22 : vector<16x16x16xbf16> to vector<256x16xbf16>
    %c0_30 = arith.constant 0 : index
    %c0_31 = arith.constant 0 : index
    %24 = vector.load %arg8[%c0_30, %c0_31] : memref<256x8xf32, #tpu.memory_space<vmem>>, vector<256x8xf32>
    %c0_32 = arith.constant 0 : index
    %c2_33 = arith.constant 2 : index
    %c0_34 = arith.constant 0 : index
    %c0_35 = arith.constant 0 : index
    %25 = vector.load %arg5[%c0_32, %c2_33, %c0_34, %c0_35] : memref<3x3x16x8xbf16, #tpu.memory_space<vmem>>, vector<1x1x16x8xbf16>
    %26 = vector.shape_cast %25 : vector<1x1x16x8xbf16> to vector<16x8xbf16>
    %cst_36 = arith.constant dense<0.000000e+00> : vector<256x8xf32>
    %27 = tpu.matmul %23, %26, %cst_36 {dimension_numbers = #tpu.dot_dimension_numbers<[1], [0], [0], [1], [0, 0, 1, 1], [], []>} : vector<256x16xbf16>, vector<16x8xbf16>, vector<256x8xf32> -> vector<256x8xf32>
    %28 = arith.addf %24, %27 : vector<256x8xf32>
    %c0_37 = arith.constant 0 : index
    %c0_38 = arith.constant 0 : index
    %29 = vector.load %arg8[%c0_37, %c0_38] : memref<256x8xf32, #tpu.memory_space<vmem>>, vector<256x8xf32>
    tpu.vector_store %arg8[%c0_37, %c0_38], %28 {strides = array<i32>} : memref<256x8xf32, #tpu.memory_space<vmem>>, vector<256x8xf32>,
    %c0_39 = arith.constant 0 : index
    %c0_40 = arith.constant 0 : index
    %c1_41 = arith.constant 1 : index
    %c0_42 = arith.constant 0 : index
    %c0_43 = arith.constant 0 : index
    %30 = vector.load %arg4[%c0_39, %c0_40, %c1_41, %c0_42, %c0_43] : memref<1x1x18x18x16xbf16, #tpu.memory_space<vmem>>, vector<1x1x16x16x16xbf16>
    %31 = vector.shape_cast %30 : vector<1x1x16x16x16xbf16> to vector<16x16x16xbf16>
    %32 = vector.shape_cast %31 : vector<16x16x16xbf16> to vector<256x16xbf16>
    %c0_44 = arith.constant 0 : index
    %c0_45 = arith.constant 0 : index
    %33 = vector.load %arg8[%c0_44, %c0_45] : memref<256x8xf32, #tpu.memory_space<vmem>>, vector<256x8xf32>
    %c1_46 = arith.constant 1 : index
    %c0_47 = arith.constant 0 : index
    %c0_48 = arith.constant 0 : index
    %c0_49 = arith.constant 0 : index
    %34 = vector.load %arg5[%c1_46, %c0_47, %c0_48, %c0_49] : memref<3x3x16x8xbf16, #tpu.memory_space<vmem>>, vector<1x1x16x8xbf16>
    %35 = vector.shape_cast %34 : vector<1x1x16x8xbf16> to vector<16x8xbf16>
    %cst_50 = arith.constant dense<0.000000e+00> : vector<256x8xf32>
    %36 = tpu.matmul %32, %35, %cst_50 {dimension_numbers = #tpu.dot_dimension_numbers<[1], [0], [0], [1], [0, 0, 1, 1], [], []>} : vector<256x16xbf16>, vector<16x8xbf16>, vector<256x8xf32> -> vector<256x8xf32>
    %37 = arith.addf %33, %36 : vector<256x8xf32>
    %c0_51 = arith.constant 0 : index
    %c0_52 = arith.constant 0 : index
    %38 = vector.load %arg8[%c0_51, %c0_52] : memref<256x8xf32, #tpu.memory_space<vmem>>, vector<256x8xf32>
    tpu.vector_store %arg8[%c0_51, %c0_52], %37 {strides = array<i32>} : memref<256x8xf32, #tpu.memory_space<vmem>>, vector<256x8xf32>,
    %c0_53 = arith.constant 0 : index
    %c0_54 = arith.constant 0 : index
    %c1_55 = arith.constant 1 : index
    %c1_56 = arith.constant 1 : index
    %c0_57 = arith.constant 0 : index
    %39 = vector.load %arg4[%c0_53, %c0_54, %c1_55, %c1_56, %c0_57] : memref<1x1x18x18x16xbf16, #tpu.memory_space<vmem>>, vector<1x1x16x16x16xbf16>
    %40 = vector.shape_cast %39 : vector<1x1x16x16x16xbf16> to vector<16x16x16xbf16>
    %41 = vector.shape_cast %40 : vector<16x16x16xbf16> to vector<256x16xbf16>
    %c0_58 = arith.constant 0 : index
    %c0_59 = arith.constant 0 : index
    %42 = vector.load %arg8[%c0_58, %c0_59] : memref<256x8xf32, #tpu.memory_space<vmem>>, vector<256x8xf32>
    %c1_60 = arith.constant 1 : index
    %c1_61 = arith.constant 1 : index
    %c0_62 = arith.constant 0 : index
    %c0_63 = arith.constant 0 : index
    %43 = vector.load %arg5[%c1_60, %c1_61, %c0_62, %c0_63] : memref<3x3x16x8xbf16, #tpu.memory_space<vmem>>, vector<1x1x16x8xbf16>
    %44 = vector.shape_cast %43 : vector<1x1x16x8xbf16> to vector<16x8xbf16>
    %cst_64 = arith.constant dense<0.000000e+00> : vector<256x8xf32>
    %45 = tpu.matmul %41, %44, %cst_64 {dimension_numbers = #tpu.dot_dimension_numbers<[1], [0], [0], [1], [0, 0, 1, 1], [], []>} : vector<256x16xbf16>, vector<16x8xbf16>, vector<256x8xf32> -> vector<256x8xf32>
    %46 = arith.addf %42, %45 : vector<256x8xf32>
    %c0_65 = arith.constant 0 : index
    %c0_66 = arith.constant 0 : index
    %47 = vector.load %arg8[%c0_65, %c0_66] : memref<256x8xf32, #tpu.memory_space<vmem>>, vector<256x8xf32>
    tpu.vector_store %arg8[%c0_65, %c0_66], %46 {strides = array<i32>} : memref<256x8xf32, #tpu.memory_space<vmem>>, vector<256x8xf32>,
    %c0_67 = arith.constant 0 : index
    %c0_68 = arith.constant 0 : index
    %c1_69 = arith.constant 1 : index
    %c2_70 = arith.constant 2 : index
    %c0_71 = arith.constant 0 : index
    %48 = vector.load %arg4[%c0_67, %c0_68, %c1_69, %c2_70, %c0_71] : memref<1x1x18x18x16xbf16, #tpu.memory_space<vmem>>, vector<1x1x16x16x16xbf16>
    %49 = vector.shape_cast %48 : vector<1x1x16x16x16xbf16> to vector<16x16x16xbf16>
    %50 = vector.shape_cast %49 : vector<16x16x16xbf16> to vector<256x16xbf16>
    %c0_72 = arith.constant 0 : index
    %c0_73 = arith.constant 0 : index
    %51 = vector.load %arg8[%c0_72, %c0_73] : memref<256x8xf32, #tpu.memory_space<vmem>>, vector<256x8xf32>
    %c1_74 = arith.constant 1 : index
    %c2_75 = arith.constant 2 : index
    %c0_76 = arith.constant 0 : index
    %c0_77 = arith.constant 0 : index
    %52 = vector.load %arg5[%c1_74, %c2_75, %c0_76, %c0_77] : memref<3x3x16x8xbf16, #tpu.memory_space<vmem>>, vector<1x1x16x8xbf16>
    %53 = vector.shape_cast %52 : vector<1x1x16x8xbf16> to vector<16x8xbf16>
    %cst_78 = arith.constant dense<0.000000e+00> : vector<256x8xf32>
    %54 = tpu.matmul %50, %53, %cst_78 {dimension_numbers = #tpu.dot_dimension_numbers<[1], [0], [0], [1], [0, 0, 1, 1], [], []>} : vector<256x16xbf16>, vector<16x8xbf16>, vector<256x8xf32> -> vector<256x8xf32>
    %55 = arith.addf %51, %54 : vector<256x8xf32>
    %c0_79 = arith.constant 0 : index
    %c0_80 = arith.constant 0 : index
    %56 = vector.load %arg8[%c0_79, %c0_80] : memref<256x8xf32, #tpu.memory_space<vmem>>, vector<256x8xf32>
    tpu.vector_store %arg8[%c0_79, %c0_80], %55 {strides = array<i32>} : memref<256x8xf32, #tpu.memory_space<vmem>>, vector<256x8xf32>,
    %c0_81 = arith.constant 0 : index
    %c0_82 = arith.constant 0 : index
    %c2_83 = arith.constant 2 : index
    %c0_84 = arith.constant 0 : index
    %c0_85 = arith.constant 0 : index
    %57 = vector.load %arg4[%c0_81, %c0_82, %c2_83, %c0_84, %c0_85] : memref<1x1x18x18x16xbf16, #tpu.memory_space<vmem>>, vector<1x1x16x16x16xbf16>
    %58 = vector.shape_cast %57 : vector<1x1x16x16x16xbf16> to vector<16x16x16xbf16>
    %59 = vector.shape_cast %58 : vector<16x16x16xbf16> to vector<256x16xbf16>
    %c0_86 = arith.constant 0 : index
    %c0_87 = arith.constant 0 : index
    %60 = vector.load %arg8[%c0_86, %c0_87] : memref<256x8xf32, #tpu.memory_space<vmem>>, vector<256x8xf32>
    %c2_88 = arith.constant 2 : index
    %c0_89 = arith.constant 0 : index
    %c0_90 = arith.constant 0 : index
    %c0_91 = arith.constant 0 : index
    %61 = vector.load %arg5[%c2_88, %c0_89, %c0_90, %c0_91] : memref<3x3x16x8xbf16, #tpu.memory_space<vmem>>, vector<1x1x16x8xbf16>
    %62 = vector.shape_cast %61 : vector<1x1x16x8xbf16> to vector<16x8xbf16>
    %cst_92 = arith.constant dense<0.000000e+00> : vector<256x8xf32>
    %63 = tpu.matmul %59, %62, %cst_92 {dimension_numbers = #tpu.dot_dimension_numbers<[1], [0], [0], [1], [0, 0, 1, 1], [], []>} : vector<256x16xbf16>, vector<16x8xbf16>, vector<256x8xf32> -> vector<256x8xf32>
    %64 = arith.addf %60, %63 : vector<256x8xf32>
    %c0_93 = arith.constant 0 : index
    %c0_94 = arith.constant 0 : index
    %65 = vector.load %arg8[%c0_93, %c0_94] : memref<256x8xf32, #tpu.memory_space<vmem>>, vector<256x8xf32>
    tpu.vector_store %arg8[%c0_93, %c0_94], %64 {strides = array<i32>} : memref<256x8xf32, #tpu.memory_space<vmem>>, vector<256x8xf32>,
    %c0_95 = arith.constant 0 : index
    %c0_96 = arith.constant 0 : index
    %c2_97 = arith.constant 2 : index
    %c1_98 = arith.constant 1 : index
    %c0_99 = arith.constant 0 : index
    %66 = vector.load %arg4[%c0_95, %c0_96, %c2_97, %c1_98, %c0_99] : memref<1x1x18x18x16xbf16, #tpu.memory_space<vmem>>, vector<1x1x16x16x16xbf16>
    %67 = vector.shape_cast %66 : vector<1x1x16x16x16xbf16> to vector<16x16x16xbf16>
    %68 = vector.shape_cast %67 : vector<16x16x16xbf16> to vector<256x16xbf16>
    %c0_100 = arith.constant 0 : index
    %c0_101 = arith.constant 0 : index
    %69 = vector.load %arg8[%c0_100, %c0_101] : memref<256x8xf32, #tpu.memory_space<vmem>>, vector<256x8xf32>
    %c2_102 = arith.constant 2 : index
    %c1_103 = arith.constant 1 : index
    %c0_104 = arith.constant 0 : index
    %c0_105 = arith.constant 0 : index
    %70 = vector.load %arg5[%c2_102, %c1_103, %c0_104, %c0_105] : memref<3x3x16x8xbf16, #tpu.memory_space<vmem>>, vector<1x1x16x8xbf16>
    %71 = vector.shape_cast %70 : vector<1x1x16x8xbf16> to vector<16x8xbf16>
    %cst_106 = arith.constant dense<0.000000e+00> : vector<256x8xf32>
    %72 = tpu.matmul %68, %71, %cst_106 {dimension_numbers = #tpu.dot_dimension_numbers<[1], [0], [0], [1], [0, 0, 1, 1], [], []>} : vector<256x16xbf16>, vector<16x8xbf16>, vector<256x8xf32> -> vector<256x8xf32>
    %73 = arith.addf %69, %72 : vector<256x8xf32>
    %c0_107 = arith.constant 0 : index
    %c0_108 = arith.constant 0 : index
    %74 = vector.load %arg8[%c0_107, %c0_108] : memref<256x8xf32, #tpu.memory_space<vmem>>, vector<256x8xf32>
    tpu.vector_store %arg8[%c0_107, %c0_108], %73 {strides = array<i32>} : memref<256x8xf32, #tpu.memory_space<vmem>>, vector<256x8xf32>,
    %c0_109 = arith.constant 0 : index
    %c0_110 = arith.constant 0 : index
    %c2_111 = arith.constant 2 : index
    %c2_112 = arith.constant 2 : index
    %c0_113 = arith.constant 0 : index
    %75 = vector.load %arg4[%c0_109, %c0_110, %c2_111, %c2_112, %c0_113] : memref<1x1x18x18x16xbf16, #tpu.memory_space<vmem>>, vector<1x1x16x16x16xbf16>
    %76 = vector.shape_cast %75 : vector<1x1x16x16x16xbf16> to vector<16x16x16xbf16>
    %77 = vector.shape_cast %76 : vector<16x16x16xbf16> to vector<256x16xbf16>
    %c0_114 = arith.constant 0 : index
    %c0_115 = arith.constant 0 : index
    %78 = vector.load %arg8[%c0_114, %c0_115] : memref<256x8xf32, #tpu.memory_space<vmem>>, vector<256x8xf32>
    %c2_116 = arith.constant 2 : index
    %c2_117 = arith.constant 2 : index
    %c0_118 = arith.constant 0 : index
    %c0_119 = arith.constant 0 : index
    %79 = vector.load %arg5[%c2_116, %c2_117, %c0_118, %c0_119] : memref<3x3x16x8xbf16, #tpu.memory_space<vmem>>, vector<1x1x16x8xbf16>
    %80 = vector.shape_cast %79 : vector<1x1x16x8xbf16> to vector<16x8xbf16>
    %cst_120 = arith.constant dense<0.000000e+00> : vector<256x8xf32>
    %81 = tpu.matmul %77, %80, %cst_120 {dimension_numbers = #tpu.dot_dimension_numbers<[1], [0], [0], [1], [0, 0, 1, 1], [], []>} : vector<256x16xbf16>, vector<16x8xbf16>, vector<256x8xf32> -> vector<256x8xf32>
    %82 = arith.addf %78, %81 : vector<256x8xf32>
    %c0_121 = arith.constant 0 : index
    %c0_122 = arith.constant 0 : index
    %83 = vector.load %arg8[%c0_121, %c0_122] : memref<256x8xf32, #tpu.memory_space<vmem>>, vector<256x8xf32>
    tpu.vector_store %arg8[%c0_121, %c0_122], %82 {strides = array<i32>} : memref<256x8xf32, #tpu.memory_space<vmem>>, vector<256x8xf32>,
    %c0_i32_123 = arith.constant 0 : i32
    %84 = arith.cmpi eq, %arg3, %c0_i32_123 : i32
    %85 = arith.extui %84 : i1 to i32
    %c0_i32_124 = arith.constant 0 : i32
    %86 = arith.cmpi ne, %85, %c0_i32_124 : i32
    scf.if %86 {
      %c0_125 = arith.constant 0 : index
      %c0_126 = arith.constant 0 : index
      %87 = vector.load %arg6[%c0_125, %c0_126] : memref<2x8xf32, #tpu.memory_space<vmem>>, vector<1x8xf32>
      %c1_127 = arith.constant 1 : index
      %c0_128 = arith.constant 0 : index
      %88 = vector.load %arg6[%c1_127, %c0_128] : memref<2x8xf32, #tpu.memory_space<vmem>>, vector<1x8xf32>
      %c0_129 = arith.constant 0 : index
      %c0_130 = arith.constant 0 : index
      %89 = vector.load %arg8[%c0_129, %c0_130] : memref<256x8xf32, #tpu.memory_space<vmem>>, vector<256x8xf32>
      %90 = vector.broadcast %87 : vector<1x8xf32> to vector<256x8xf32>
      %91 = arith.mulf %89, %90 : vector<256x8xf32>
      %92 = vector.broadcast %88 : vector<1x8xf32> to vector<256x8xf32>
      %93 = arith.addf %91, %92 : vector<256x8xf32>
      %cst_131 = arith.constant 0.000000e+00 : f32
      %94 = vector.broadcast %cst_131 : f32 to vector<256x8xf32>
      %95 = arith.maximumf %93, %94 : vector<256x8xf32>
      %96 = vector.shape_cast %95 : vector<256x8xf32> to vector<16x16x8xf32>
      %97 = arith.truncf %96 : vector<16x16x8xf32> to vector<16x16x8xbf16>
      %c0_132 = arith.constant 0 : index
      %c0_133 = arith.constant 0 : index
      %c0_134 = arith.constant 0 : index
      %c0_135 = arith.constant 0 : index
      %98 = vector.load %arg7[%c0_132, %c0_133, %c0_134, %c0_135] : memref<1x16x16x8xbf16, #tpu.memory_space<vmem>>, vector<1x16x16x8xbf16>
      %99 = vector.shape_cast %98 : vector<1x16x16x8xbf16> to vector<16x16x8xbf16>
      %100 = vector.shape_cast %97 : vector<16x16x8xbf16> to vector<1x16x16x8xbf16>
      tpu.vector_store %arg7[%c0_132, %c0_133, %c0_134, %c0_135], %100 {strides = array<i32>} : memref<1x16x16x8xbf16, #tpu.memory_space<vmem>>, vector<1x16x16x8xbf16>,
    } else {
    }
    return
  }
  func.func @transform_0(%arg0: i32, %arg1: i32, %arg2: i32, %arg3: i32) -> (i32, i32, i32, i32, i32) {
    %c0_i32 = arith.constant 0 : i32
    %c0_i32_0 = arith.constant 0 : i32
    %c0_i32_1 = arith.constant 0 : i32
    return %arg0, %arg1, %c0_i32, %c0_i32_0, %arg3 : i32, i32, i32, i32, i32
  }
  func.func @transform_1(%arg0: i32, %arg1: i32, %arg2: i32, %arg3: i32) -> (i32, i32, i32, i32) {
    %c0_i32 = arith.constant 0 : i32
    %c0_i32_0 = arith.constant 0 : i32
    %c0_i32_1 = arith.constant 0 : i32
    return %c0_i32, %c0_i32_0, %arg3, %arg2 : i32, i32, i32, i32
  }
  func.func @transform_2(%arg0: i32, %arg1: i32, %arg2: i32, %arg3: i32) -> (i32, i32) {
    %c0_i32 = arith.constant 0 : i32
    %c0_i32_0 = arith.constant 0 : i32
    return %c0_i32, %arg2 : i32, i32
  }
  func.func @transform_3(%arg0: i32, %arg1: i32, %arg2: i32, %arg3: i32) -> (i32, i32, i32, i32) {
    %c0_i32 = arith.constant 0 : i32
    %c0_i32_0 = arith.constant 0 : i32
    return %arg0, %arg1, %c0_i32, %arg2 : i32, i32, i32, i32
  }
}

</mosaic_0001>

<llo_original>
// kernel: psp_forward.1
$region0: #{psp_forward.1}
  #allocation0 [shape = 'u32[]', space=smem, size = 0x4, offset = 0x4, fixed_abs, tag = 'smem constant byte address 0x4 - core index']
  #allocation1 [shape = 'u32[144,128]{1,0:T(1,128)}', space=vmem, size = 0x12000, scoped, tag = 'internal scratch']
  #allocation2 [shape = 'f32[256,8]{1,0:T(8,128)}', space=vmem, size = 0x20000, scoped, tag = 'scratch operand']
  %s0 = inlined_call_operand.vmem [shape: bf16[2,1,18,18,16], index: 0, kind: input, shape index: {}]
  %s1 = inlined_call_operand.vmem [shape: bf16[3,3,16,8], index: 1, kind: input, shape index: {}]
  %s2 = inlined_call_operand.vmem [shape: f32[2,8], index: 2, kind: input, shape index: {}]
  %s3 = inlined_call_operand.vmem [shape: bf16[2,16,16,8], index: 3, kind: output, shape index: {}]
  %s4 = sld [smem:[#allocation0]]
  $region53: #{psp_forward.1} parent=0
    _
  %s6 = ssub.s32 1, %s4
  %s7 = scalar_select 0, %s6, %s4
  loop: start=0, step=1, limit=4
  $region2: #{psp_forward.1} parent=0 // loop_pre_header
    _
  $region3: #{psp_forward.1} parent=0 // loop_header
    %s9 = sphi 0, %s13
    %p10 = scmp.ge.s32.totalorder %s9, 4
    %s16 = sphi 0, %s42
    %s17 = sphi 0, %s38
    %s18 = sphi 0, %s34
    %s19 = sphi 0, %s30
    %s20 = sphi 0, %s16
    %s21 = sphi 0, %s17
    %s22 = sphi 0, %s18
    %s23 = sphi 0, %s19
    %s24 = sphi 0, %s20
    %s25 = sphi 0, %s21
    %s26 = sphi 0, %s22
    %s27 = sphi 0, %s23
    %s49 = sphi 0, %s51
    %s52 = sphi 0, %s49
    %s53 = sphi 0, %s52
    %s69 = sphi 0, %s53
    %s77 = sphi 0, %s79
    %s80 = sphi 0, %s77
    %s81 = sphi 0, %s80
    %s97 = sphi 0, %s81
    %s103 = sphi 0, %s105
    %s106 = sphi 0, %s103
    %s107 = sphi 0, %s106
    %s123 = sphi 0, %s107
    %s133 = sphi 0, %s135
    %s136 = sphi 0, %s133
    %s137 = sphi 0, %s136
    %s153 = sphi 0, %s137
  $region4: #{psp_forward.1} parent=0 // loop_header_branch
    %12 = sbr.rel (%p10) target = $region8
  $region5: #{psp_forward.1} parent=0 // loop_body
    %s14 = ssub.s32 %s9, 1
    %s15 = ssub.s32 %s9, 2
    %s28 = sadd.s32 1, %s19
    %p29 = scmp.ge.s32.totalorder %s28, 1
    %s30 = scalar_select %p29, 0, %s28
    %s31 = sadd.s32 1, %s18
    %s32 = scalar_select %p29, %s31, %s18
    %p33 = scmp.ge.s32.totalorder %s32, 1
    %s34 = scalar_select %p33, 0, %s32
    %s35 = sadd.s32 1, %s17
    %s36 = scalar_select %p33, %s35, %s17
    %p37 = scmp.ge.s32.totalorder %s36, 1
    %s38 = scalar_select %p37, 0, %s36
    %s39 = sadd.s32 1, %s16
    %s40 = scalar_select %p37, %s39, %s16
    %p41 = scmp.ge.s32.totalorder %s40, 2
    %s42 = scalar_select %p41, 0, %s40
    %s43 = ssub.s32 %s16, %s42
    %s44 = ssub.s32 %s17, %s38
    %s45 = sor.u32 %s43, %s44
    %s46 = ssub.s32 %s19, %s30
    %s47 = sor.u32 %s45, %s46
    %p48 = scmp.eq.s32.totalorder %s47, 0
    %s50 = sadd.s32 %s49, 1
    %s51 = scalar_select %p48, %s49, %s50
    %p54 = pneg %p48
    %p55 = scmp.eq.s32.totalorder %s9, 1
    %p56 = por %p54, %p55
    %p57 = scmp.ne.s32.totalorder %s49, %s52
    %p58 = scmp.eq.s32.totalorder %s9, 0
    %p59 = por %p57, %p58
    %p60 = scmp.ne.s32.totalorder %s49, %s52
    %p61 = scmp.eq.s32.totalorder %s14, 1
    %p62 = por %p60, %p61
    %p63 = scmp.ne.s32.totalorder %s52, %s53
    %p64 = scmp.eq.s32.totalorder %s14, 0
    %p65 = por %p63, %p64
    %p66 = scmp.ne.s32.totalorder %s52, %s53
    %p67 = scmp.eq.s32.totalorder %s15, 1
    %p68 = por %p66, %p67
    %p70 = scmp.ne.s32.totalorder %s53, %s69
    %p71 = scmp.eq.s32.totalorder %s15, 0
    %p72 = por %p70, %p71
    %s73 = ssub.s32 %s19, %s30
    %s74 = ssub.s32 %s18, %s34
    %s75 = sor.u32 %s73, %s74
    %p76 = scmp.eq.s32.totalorder %s75, 0
    %s78 = sadd.s32 %s77, 1
    %s79 = scalar_select %p76, %s77, %s78
    %p82 = pneg %p76
    %p83 = scmp.eq.s32.totalorder %s9, 1
    %p84 = por %p82, %p83
    %p85 = scmp.ne.s32.totalorder %s77, %s80
    %p86 = scmp.eq.s32.totalorder %s9, 0
    %p87 = por %p85, %p86
    %p88 = scmp.ne.s32.totalorder %s77, %s80
    %p89 = scmp.eq.s32.totalorder %s14, 1
    %p90 = por %p88, %p89
    %p91 = scmp.ne.s32.totalorder %s80, %s81
    %p92 = scmp.eq.s32.totalorder %s14, 0
    %p93 = por %p91, %p92
    %p94 = scmp.ne.s32.totalorder %s80, %s81
    %p95 = scmp.eq.s32.totalorder %s15, 1
    %p96 = por %p94, %p95
    %p98 = scmp.ne.s32.totalorder %s81, %s97
    %p99 = scmp.eq.s32.totalorder %s15, 0
    %p100 = por %p98, %p99
    %s101 = ssub.s32 %s18, %s34
    %p102 = scmp.eq.s32.totalorder %s101, 0
    %s104 = sadd.s32 %s103, 1
    %s105 = scalar_select %p102, %s103, %s104
    %p108 = pneg %p102
    %p109 = scmp.eq.s32.totalorder %s9, 1
    %p110 = por %p108, %p109
    %p111 = scmp.ne.s32.totalorder %s103, %s106
    %p112 = scmp.eq.s32.totalorder %s9, 0
    %p113 = por %p111, %p112
    %p114 = scmp.ne.s32.totalorder %s103, %s106
    %p115 = scmp.eq.s32.totalorder %s14, 1
    %p116 = por %p114, %p115
    %p117 = scmp.ne.s32.totalorder %s106, %s107
    %p118 = scmp.eq.s32.totalorder %s14, 0
    %p119 = por %p117, %p118
    %p120 = scmp.ne.s32.totalorder %s106, %s107
    %p121 = scmp.eq.s32.totalorder %s15, 1
    %p122 = por %p120, %p121
    %p124 = scmp.ne.s32.totalorder %s107, %s123
    %p125 = scmp.eq.s32.totalorder %s15, 0
    %p126 = por %p124, %p125
    %s127 = ssub.s32 %s16, %s42
    %s128 = ssub.s32 %s17, %s38
    %s129 = sor.u32 %s127, %s128
    %s130 = ssub.s32 %s18, %s34
    %s131 = sor.u32 %s129, %s130
    %p132 = scmp.eq.s32.totalorder %s131, 0
    %s134 = sadd.s32 %s133, 1
    %s135 = scalar_select %p132, %s133, %s134
    %p138 = pneg %p132
    %p139 = scmp.eq.s32.totalorder %s9, 1
    %p140 = por %p138, %p139
    %p141 = scmp.ne.s32.totalorder %s133, %s136
    %p142 = scmp.eq.s32.totalorder %s9, 0
    %p143 = por %p141, %p142
    %p144 = scmp.ne.s32.totalorder %s133, %s136
    %p145 = scmp.eq.s32.totalorder %s14, 1
    %p146 = por %p144, %p145
    %p147 = scmp.ne.s32.totalorder %s136, %s137
    %p148 = scmp.eq.s32.totalorder %s14, 0
    %p149 = por %p147, %p148
    %p150 = scmp.ne.s32.totalorder %s136, %s137
    %p151 = scmp.eq.s32.totalorder %s15, 1
    %p152 = por %p150, %p151
    %p154 = scmp.ne.s32.totalorder %s137, %s153
    %p155 = scmp.eq.s32.totalorder %s15, 0
    %p156 = por %p154, %p155
    %p157 = scmp.le.s32.totalorder 1, %s9
    %p158 = scmp.lt.s32.totalorder %s9, 3
    %p159 = pnand %p157, %p158
    %p160 = pneg %p159
    // Predicated region
    $region9: #{psp_forward.1} parent=5 // pred_check
      _
    $region10: #{psp_forward.1} parent=5 // pred_check_branch
      %162 = sbr.rel (%p159) target = $region12
    $region11: #{psp_forward.1} parent=5 // pred_region
      %s163 = ssub.s32 %s9, 1
      // Predicated region
      $region13: #{psp_forward.1} parent=11 // pred_check
        %p164 = pneg %p93
      $region14: #{psp_forward.1} parent=11 // pred_check_branch
        %166 = sbr.rel (%p164) target = $region16
      $region15: #{psp_forward.1} parent=11 // pred_region
        %s167 = smul.u32 2, %s23
        %p168 = scmp.lt.s32.totalorder %s167, 1
        %s169 = scalar_select %p168, %s167, 1
        %p170 = scmp.lt.s32.totalorder %s22, 0
        %s171 = scalar_select %p170, %s22, 0
        %s172 = sadd.s32 %s171, %s169
        %s173 = smul.addr %s172, 4
        %s174 = scalar_lea.vmem %s1, %s173
        %s175 = smul.u32 2, %s23
      $region16: #{psp_forward.1} parent=11 // pred_fallthru
        _
      // Predicated region
      $region17: #{psp_forward.1} parent=11 // pred_check
        %p176 = pneg %p119
      $region18: #{psp_forward.1} parent=11 // pred_check_branch
        %178 = sbr.rel (%p176) target = $region20
      $region19: #{psp_forward.1} parent=11 // pred_region
        %p179 = scmp.lt.s32.totalorder %s22, 0
        %s180 = scalar_select %p179, %s22, 0
        %s181 = smul.addr %s180, 2
        %s182 = scalar_lea.vmem %s2, %s181
      $region20: #{psp_forward.1} parent=11 // pred_fallthru
        _
    $region12: #{psp_forward.1} parent=5 // pred_fallthru
      _
    %p183 = scmp.lt.s32.totalorder %s9, 2
    // Predicated region
    $region21: #{psp_forward.1} parent=5 // pred_check
      %p184 = pneg %p183
    $region22: #{psp_forward.1} parent=5 // pred_check_branch
      %186 = sbr.rel (%p184) target = $region24
    $region23: #{psp_forward.1} parent=5 // pred_region
      // Predicated region
      $region25: #{psp_forward.1} parent=23 // pred_check
        %p187 = pneg %p59
      $region26: #{psp_forward.1} parent=23 // pred_check_branch
        %189 = sbr.rel (%p187) target = $region28
      $region27: #{psp_forward.1} parent=23 // pred_region
        %p190 = scmp.lt.s32.totalorder %s16, 1
        %s191 = scalar_select %p190, %s16, 1
        %p192 = scmp.lt.s32.totalorder %s17, 0
        %s193 = scalar_select %p192, %s17, 0
        %p194 = scmp.lt.s32.totalorder %s19, 0
        %s195 = scalar_select %p194, %s19, 0
        %s196 = smul.addr %s193, 54
        %s197 = sadd.s32 %s195, %s196
        %s198 = smul.addr %s191, 54
        %s199 = sadd.s32 %s197, %s198
        %s200 = smul.addr %s199, 4
        %s201 = scalar_lea.vmem %s0, %s200
      $region28: #{psp_forward.1} parent=23 // pred_fallthru
        _
    $region24: #{psp_forward.1} parent=5 // pred_fallthru
      _
    %p202 = scmp.le.s32.totalorder 1, %s9
    %p203 = scmp.lt.s32.totalorder %s9, 3
    %p204 = pnand %p202, %p203
    %p205 = pneg %p204
    // Predicated region
    $region29: #{psp_forward.1} parent=5 // pred_check
      _
    $region30: #{psp_forward.1} parent=5 // pred_check_branch
      %207 = sbr.rel (%p204) target = $region32
    $region31: #{psp_forward.1} parent=5 // pred_region
      %s208 = ssub.s32 %s9, 1
      %p209 = scmp.lt.s32.totalorder %s20, 1
      %s210 = scalar_select %p209, %s20, 1
      %p211 = scmp.lt.s32.totalorder %s21, 0
      %s212 = scalar_select %p211, %s21, 0
      %p213 = scmp.lt.s32.totalorder %s23, 0
      %s214 = scalar_select %p213, %s23, 0
      %s215 = smul.addr %s212, 54
      %s216 = sadd.s32 %s214, %s215
      %s217 = smul.addr %s210, 54
      %s218 = sadd.s32 %s216, %s217
      %s219 = smul.addr %s218, 4
      %s220 = scalar_lea.vmem %s0, %s219
      %p221 = pneg %p65
      %p222 = pneg %p62
      %s223 = smul.u32 2, %s23
      %p224 = scmp.lt.s32.totalorder %s223, 1
      %s225 = scalar_select %p224, %s223, 1
      %p226 = scmp.lt.s32.totalorder %s22, 0
      %s227 = scalar_select %p226, %s22, 0
      %s228 = sadd.s32 %s227, %s225
      %s229 = smul.addr %s228, 4
      %s230 = scalar_lea.vmem %s1, %s229
      %p231 = pneg %p93
      %p232 = pneg %p90
      %p233 = scmp.lt.s32.totalorder %s22, 0
      %s234 = scalar_select %p233, %s22, 0
      %s235 = smul.addr %s234, 2
      %s236 = scalar_lea.vmem %s2, %s235
      %p237 = pneg %p119
      %p238 = pneg %p116
      %p239 = pneg %p149
      %p240 = pneg %p146
      %s241 = smul.u32 16, %s21
      %p242 = scmp.lt.s32.totalorder %s20, 1
      %s243 = scalar_select %p242, %s20, 1
      %p244 = scmp.lt.s32.totalorder %s241, 15
      %s245 = scalar_select %p244, %s241, 15
      %p246 = scmp.lt.s32.totalorder %s22, 0
      %s247 = scalar_select %p246, %s22, 0
      %s248 = smul.addr %s245, 2
      %s249 = sadd.s32 %s247, %s248
      %s250 = smul.addr %s243, 32
      %s251 = sadd.s32 %s249, %s250
      %s252 = smul.addr %s251, 4
      %s253 = scalar_lea.vmem %s3, %s252
      %p254 = scmp.lt.s32.totalorder %s20, 1
      %s255 = scalar_select %p254, %s20, 1
      %p256 = scmp.lt.s32.totalorder %s21, 0
      %s257 = scalar_select %p256, %s21, 0
      %p258 = scmp.lt.s32.totalorder %s23, 0
      %s259 = scalar_select %p258, %s23, 0
      %s260 = smul.addr %s257, 54
      %s261 = sadd.s32 %s259, %s260
      %s262 = smul.addr %s255, 54
      %s263 = sadd.s32 %s261, %s262
      %s264 = smul.addr %s263, 4
      %s265 = scalar_lea.vmem %s0, %s264
      %s266 = smul.u32 2, %s23
      %p267 = scmp.lt.s32.totalorder %s266, 1
      %s268 = scalar_select %p267, %s266, 1
      %p269 = scmp.lt.s32.totalorder %s22, 0
      %s270 = scalar_select %p269, %s22, 0
      %s271 = sadd.s32 %s270, %s268
      %s272 = smul.addr %s271, 4
      %s273 = scalar_lea.vmem %s1, %s272
      %s274 = smul.u32 2, %s23
      %p275 = scmp.lt.s32.totalorder %s22, 0
      %s276 = scalar_select %p275, %s22, 0
      %s277 = smul.addr %s276, 2
      %s278 = scalar_lea.vmem %s2, %s277
      %s279 = smul.u32 16, %s21
      %p280 = scmp.lt.s32.totalorder %s20, 1
      %s281 = scalar_select %p280, %s20, 1
      %p282 = scmp.lt.s32.totalorder %s279, 15
      %s283 = scalar_select %p282, %s279, 15
      %p284 = scmp.lt.s32.totalorder %s22, 0
      %s285 = scalar_select %p284, %s22, 0
      %s286 = smul.addr %s283, 2
      %s287 = sadd.s32 %s285, %s286
      %s288 = smul.addr %s281, 32
      %s289 = sadd.s32 %s287, %s288
      %s290 = smul.addr %s289, 4
      %s291 = scalar_lea.vmem %s3, %s290
      %s292 = smul.u32 16, %s21
      %p294 = scmp.eq.s32.totalorder %s23, 0
      // Predicated region
      $region33: #{psp_forward.1} parent=31 // pred_check
        %p295 = pneg %p294
      $region34: #{psp_forward.1} parent=31 // pred_check_branch
        %297 = sbr.rel (%p295) target = $region36
      $region35: #{psp_forward.1} parent=31 // pred_region
        %vm298 = vcmask 64512
        %299 = vst.msk [vmem:[#allocation2] sm:$0xff] %vm298, 0.0
        %300 = vst.msk [vmem:[#allocation2 + $0x8] sm:$0xff] %vm298, 0.0
        %301 = vst.msk [vmem:[#allocation2 + $0x10] sm:$0xff] %vm298, 0.0
        %302 = vst.msk [vmem:[#allocation2 + $0x18] sm:$0xff] %vm298, 0.0
        %303 = vst.msk [vmem:[#allocation2 + $0x20] sm:$0xff] %vm298, 0.0
        %304 = vst.msk [vmem:[#allocation2 + $0x28] sm:$0xff] %vm298, 0.0
        %305 = vst.msk [vmem:[#allocation2 + $0x30] sm:$0xff] %vm298, 0.0
        %306 = vst.msk [vmem:[#allocation2 + $0x38] sm:$0xff] %vm298, 0.0
        %307 = vst.msk [vmem:[#allocation2 + $0x40] sm:$0xff] %vm298, 0.0
        %308 = vst.msk [vmem:[#allocation2 + $0x48] sm:$0xff] %vm298, 0.0
        %309 = vst.msk [vmem:[#allocation2 + $0x50] sm:$0xff] %vm298, 0.0
        %310 = vst.msk [vmem:[#allocation2 + $0x58] sm:$0xff] %vm298, 0.0
        %311 = vst.msk [vmem:[#allocation2 + $0x60] sm:$0xff] %vm298, 0.0
        %312 = vst.msk [vmem:[#allocation2 + $0x68] sm:$0xff] %vm298, 0.0
        %313 = vst.msk [vmem:[#allocation2 + $0x70] sm:$0xff] %vm298, 0.0
        %314 = vst.msk [vmem:[#allocation2 + $0x78] sm:$0xff] %vm298, 0.0
        %315 = vst.msk [vmem:[#allocation2 + $0x80] sm:$0xff] %vm298, 0.0
        %316 = vst.msk [vmem:[#allocation2 + $0x88] sm:$0xff] %vm298, 0.0
        %317 = vst.msk [vmem:[#allocation2 + $0x90] sm:$0xff] %vm298, 0.0
        %318 = vst.msk [vmem:[#allocation2 + $0x98] sm:$0xff] %vm298, 0.0
        %319 = vst.msk [vmem:[#allocation2 + $0xa0] sm:$0xff] %vm298, 0.0
        %320 = vst.msk [vmem:[#allocation2 + $0xa8] sm:$0xff] %vm298, 0.0
        %321 = vst.msk [vmem:[#allocation2 + $0xb0] sm:$0xff] %vm298, 0.0
        %322 = vst.msk [vmem:[#allocation2 + $0xb8] sm:$0xff] %vm298, 0.0
        %323 = vst.msk [vmem:[#allocation2 + $0xc0] sm:$0xff] %vm298, 0.0
        %324 = vst.msk [vmem:[#allocation2 + $0xc8] sm:$0xff] %vm298, 0.0
        %325 = vst.msk [vmem:[#allocation2 + $0xd0] sm:$0xff] %vm298, 0.0
        %326 = vst.msk [vmem:[#allocation2 + $0xd8] sm:$0xff] %vm298, 0.0
        %327 = vst.msk [vmem:[#allocation2 + $0xe0] sm:$0xff] %vm298, 0.0
        %328 = vst.msk [vmem:[#allocation2 + $0xe8] sm:$0xff] %vm298, 0.0
        %329 = vst.msk [vmem:[#allocation2 + $0xf0] sm:$0xff] %vm298, 0.0
        %330 = vst.msk [vmem:[#allocation2 + $0xf8] sm:$0xff] %vm298, 0.0
      $region36: #{psp_forward.1} parent=31 // pred_fallthru
        _
      %v331 = vld [vmem:[%s265] sm:$0xf]
      %v332 = vld [vmem:[%s265 + $0x4] sm:$0xf]
      %v333 = vld [vmem:[%s265 + $0xc] sm:$0xf]
      %v334 = vld [vmem:[%s265 + $0x10] sm:$0xf]
      %v335 = vld [vmem:[%s265 + $0x18] sm:$0xf]
      %v336 = vld [vmem:[%s265 + $0x1c] sm:$0xf]
      %v337 = vld [vmem:[%s265 + $0x24] sm:$0xf]
      %v338 = vld [vmem:[%s265 + $0x28] sm:$0xf]
      %v339 = vld [vmem:[%s265 + $0x30] sm:$0xf]
      %v340 = vld [vmem:[%s265 + $0x34] sm:$0xf]
      %v341 = vld [vmem:[%s265 + $0x3c] sm:$0xf]
      %v342 = vld [vmem:[%s265 + $0x40] sm:$0xf]
      %v343 = vld [vmem:[%s265 + $0x48] sm:$0xf]
      %v344 = vld [vmem:[%s265 + $0x4c] sm:$0xf]
      %v345 = vld [vmem:[%s265 + $0x54] sm:$0xf]
      %v346 = vld [vmem:[%s265 + $0x58] sm:$0xf]
      %v347 = vld [vmem:[%s265 + $0x60] sm:$0xf]
      %v348 = vld [vmem:[%s265 + $0x64] sm:$0xf]
      %v349 = vld [vmem:[%s265 + $0x6c] sm:$0xf]
      %v350 = vld [vmem:[%s265 + $0x70] sm:$0xf]
      %v351 = vld [vmem:[%s265 + $0x78] sm:$0xf]
      %v352 = vld [vmem:[%s265 + $0x7c] sm:$0xf]
      %v353 = vld [vmem:[%s265 + $0x84] sm:$0xf]
      %v354 = vld [vmem:[%s265 + $0x88] sm:$0xf]
      %v355 = vld [vmem:[%s265 + $0x90] sm:$0xf]
      %v356 = vld [vmem:[%s265 + $0x94] sm:$0xf]
      %v357 = vld [vmem:[%s265 + $0x9c] sm:$0xf]
      %v358 = vld [vmem:[%s265 + $0xa0] sm:$0xf]
      %v359 = vld [vmem:[%s265 + $0xa8] sm:$0xf]
      %v360 = vld [vmem:[%s265 + $0xac] sm:$0xf]
      %v361 = vld [vmem:[%s265 + $0xb4] sm:$0xf]
      %v362 = vld [vmem:[%s265 + $0xb8] sm:$0xf]
      %v363 = vld [vmem:[#allocation2] sm:$0xff]
      %v364 = vld [vmem:[#allocation2 + $0x8] sm:$0xff]
      %v365 = vld [vmem:[#allocation2 + $0x10] sm:$0xff]
      %v366 = vld [vmem:[#allocation2 + $0x18] sm:$0xff]
      %v367 = vld [vmem:[#allocation2 + $0x20] sm:$0xff]
      %v368 = vld [vmem:[#allocation2 + $0x28] sm:$0xff]
      %v369 = vld [vmem:[#allocation2 + $0x30] sm:$0xff]
      %v370 = vld [vmem:[#allocation2 + $0x38] sm:$0xff]
      %v371 = vld [vmem:[#allocation2 + $0x40] sm:$0xff]
      %v372 = vld [vmem:[#allocation2 + $0x48] sm:$0xff]
      %v373 = vld [vmem:[#allocation2 + $0x50] sm:$0xff]
      %v374 = vld [vmem:[#allocation2 + $0x58] sm:$0xff]
      %v375 = vld [vmem:[#allocation2 + $0x60] sm:$0xff]
      %v376 = vld [vmem:[#allocation2 + $0x68] sm:$0xff]
      %v377 = vld [vmem:[#allocation2 + $0x70] sm:$0xff]
      %v378 = vld [vmem:[#allocation2 + $0x78] sm:$0xff]
      %v379 = vld [vmem:[#allocation2 + $0x80] sm:$0xff]
      %v380 = vld [vmem:[#allocation2 + $0x88] sm:$0xff]
      %v381 = vld [vmem:[#allocation2 + $0x90] sm:$0xff]
      %v382 = vld [vmem:[#allocation2 + $0x98] sm:$0xff]
      %v383 = vld [vmem:[#allocation2 + $0xa0] sm:$0xff]
      %v384 = vld [vmem:[#allocation2 + $0xa8] sm:$0xff]
      %v385 = vld [vmem:[#allocation2 + $0xb0] sm:$0xff]
      %v386 = vld [vmem:[#allocation2 + $0xb8] sm:$0xff]
      %v387 = vld [vmem:[#allocation2 + $0xc0] sm:$0xff]
      %v388 = vld [vmem:[#allocation2 + $0xc8] sm:$0xff]
      %v389 = vld [vmem:[#allocation2 + $0xd0] sm:$0xff]
      %v390 = vld [vmem:[#allocation2 + $0xd8] sm:$0xff]
      %v391 = vld [vmem:[#allocation2 + $0xe0] sm:$0xff]
      %v392 = vld [vmem:[#allocation2 + $0xe8] sm:$0xff]
      %v393 = vld [vmem:[#allocation2 + $0xf0] sm:$0xff]
      %v394 = vld [vmem:[#allocation2 + $0xf8] sm:$0xff]
      %v395 = vld [vmem:[%s273] sm:$0xf]
      %v396 = vld [vmem:[%s273 + $0x4] sm:$0xf]
      %v429 = vunpack.c.l.b16 %v331
      %v430 = vunpack.c.l.b16 %v332
      %v431 = vunpack.c.l.b16 %v333
      %v432 = vunpack.c.l.b16 %v334
      %v433 = vunpack.c.l.b16 %v335
      %v434 = vunpack.c.l.b16 %v336
      %v435 = vunpack.c.l.b16 %v337
      %v436 = vunpack.c.l.b16 %v338
      %v437 = vunpack.c.l.b16 %v339
      %v438 = vunpack.c.l.b16 %v340
      %v439 = vunpack.c.l.b16 %v341
      %v440 = vunpack.c.l.b16 %v342
      %v441 = vunpack.c.l.b16 %v343
      %v442 = vunpack.c.l.b16 %v344
      %v443 = vunpack.c.l.b16 %v345
      %v444 = vunpack.c.l.b16 %v346
      %v445 = vunpack.c.l.b16 %v347
      %v446 = vunpack.c.l.b16 %v348
      %v447 = vunpack.c.l.b16 %v349
      %v448 = vunpack.c.l.b16 %v350
      %v449 = vunpack.c.l.b16 %v351
      %v450 = vunpack.c.l.b16 %v352
      %v451 = vunpack.c.l.b16 %v353
      %v452 = vunpack.c.l.b16 %v354
      %v453 = vunpack.c.l.b16 %v355
      %v454 = vunpack.c.l.b16 %v356
      %v455 = vunpack.c.l.b16 %v357
      %v456 = vunpack.c.l.b16 %v358
      %v457 = vunpack.c.l.b16 %v359
      %v458 = vunpack.c.l.b16 %v360
      %v459 = vunpack.c.l.b16 %v361
      %v460 = vunpack.c.l.b16 %v362
      %v461 = vpack.c.b16 %v430, %v429
      %v462 = vpack.c.b16 %v432, %v431
      %v463 = vpack.c.b16 %v434, %v433
      %v464 = vpack.c.b16 %v436, %v435
      %v465 = vpack.c.b16 %v438, %v437
      %v466 = vpack.c.b16 %v440, %v439
      %v467 = vpack.c.b16 %v442, %v441
      %v468 = vpack.c.b16 %v444, %v443
      %v469 = vpack.c.b16 %v446, %v445
      %v470 = vpack.c.b16 %v448, %v447
      %v471 = vpack.c.b16 %v450, %v449
      %v472 = vpack.c.b16 %v452, %v451
      %v473 = vpack.c.b16 %v454, %v453
      %v474 = vpack.c.b16 %v456, %v455
      %v475 = vpack.c.b16 %v458, %v457
      %v476 = vpack.c.b16 %v460, %v459
      %v479 = vunpack.c.l.b16 %v395
      %v480 = vunpack.c.l.b16 %v396
      %v481 = vpack.c.b16 %v480, %v479
      %vm483 = vcmask 130048
      %v485 = vsel %vm483, %v461, 0
      %v488 = vsel %vm483, %v462, 0
      %v491 = vsel %vm483, %v463, 0
      %v494 = vsel %vm483, %v464, 0
      %v497 = vsel %vm483, %v465, 0
      %v500 = vsel %vm483, %v466, 0
      %v503 = vsel %vm483, %v467, 0
      %v506 = vsel %vm483, %v468, 0
      %v509 = vsel %vm483, %v469, 0
      %v512 = vsel %vm483, %v470, 0
      %v515 = vsel %vm483, %v471, 0
      %v518 = vsel %vm483, %v472, 0
      %v521 = vsel %vm483, %v473, 0
      %v524 = vsel %vm483, %v474, 0
      %v527 = vsel %vm483, %v475, 0
      %v530 = vsel %vm483, %v476, 0
      %532 = vmatprep.subr.bf16.mxu0 0
      %533 = vmatpush1.bf16.msra.mxu0 %v481
      %534 = vmatprep.subr.bf16.mxu0 0
      %535 = vmatpush1.bf16.msra.mxu0 0
      %536 = vmatprep.subr.bf16.mxu0 0
      %537 = vmatpush1.bf16.msra.mxu0 0
      %538 = vmatprep.subr.bf16.mxu0 0
      %539 = vmatpush1.bf16.msra.mxu0 0
      %540 = vmatprep.subr.bf16.mxu0 0
      %541 = vmatpush1.bf16.msra.mxu0 0
      %542 = vmatprep.subr.bf16.mxu0 0
      %543 = vmatpush1.bf16.msra.mxu0 0
      %544 = vmatprep.subr.bf16.mxu0 0
      %545 = vmatpush1.bf16.msra.mxu0 0
      %546 = vmatprep.subr.bf16.mxu0 0
      %547 = vmatpush1.bf16.msra.mxu0 0
      %548 = vmatprep.subr.bf16.mxu0 0
      %549 = vmatpush1.bf16.msra.mxu0 0
      %550 = vmatprep.subr.bf16.mxu0 0
      %551 = vmatpush1.bf16.msra.mxu0 0
      %552 = vmatprep.subr.bf16.mxu0 0
      %553 = vmatpush1.bf16.msra.mxu0 0
      %554 = vmatprep.subr.bf16.mxu0 0
      %555 = vmatpush1.bf16.msra.mxu0 0
      %556 = vmatprep.subr.bf16.mxu0 0
      %557 = vmatpush1.bf16.msra.mxu0 0
      %558 = vmatprep.subr.bf16.mxu0 0
      %559 = vmatpush1.bf16.msra.mxu0 0
      %560 = vmatprep.subr.bf16.mxu0 0
      %561 = vmatpush1.bf16.msra.mxu0 0
      %562 = vmatprep.subr.bf16.mxu0 0
      %563 = vmatpush1.bf16.msra.mxu0 0
      %564 = vmatprep.mubr.bf16.mxu0 0
      %565 = vmatmul.mubr.bf16.gmra.mrb[0].mxu0 %v485
      %v566 = vpop.f32.mrb[0].mxu0
      %v567 = vadd.f32 0.0, %v566
      %v568 = vpop.f32.mrb[0].mxu0
      %v569 = vpop.f32.mrb[0].mxu0
      %v570 = vadd.f32 0.0, %v569
      %v571 = vpop.f32.mrb[0].mxu0
      %572 = vmatprep.mubr.bf16.mxu0 0
      %573 = vmatmul.mubr.bf16.gmra.mrb[0].mxu0 %v488
      %v574 = vpop.f32.mrb[0].mxu0
      %v575 = vadd.f32 0.0, %v574
      %v576 = vpop.f32.mrb[0].mxu0
      %v577 = vpop.f32.mrb[0].mxu0
      %v578 = vadd.f32 0.0, %v577
      %v579 = vpop.f32.mrb[0].mxu0
      %580 = vmatprep.mubr.bf16.mxu0 0
      %581 = vmatmul.mubr.bf16.gmra.mrb[0].mxu0 %v491
      %v582 = vpop.f32.mrb[0].mxu0
      %v583 = vadd.f32 0.0, %v582
      %v584 = vpop.f32.mrb[0].mxu0
      %v585 = vpop.f32.mrb[0].mxu0
      %v586 = vadd.f32 0.0, %v585
      %v587 = vpop.f32.mrb[0].mxu0
      %588 = vmatprep.mubr.bf16.mxu0 0
      %589 = vmatmul.mubr.bf16.gmra.mrb[0].mxu0 %v494
      %v590 = vpop.f32.mrb[0].mxu0
      %v591 = vadd.f32 0.0, %v590
      %v592 = vpop.f32.mrb[0].mxu0
      %v593 = vpop.f32.mrb[0].mxu0
      %v594 = vadd.f32 0.0, %v593
      %v595 = vpop.f32.mrb[0].mxu0
      %596 = vmatprep.mubr.bf16.mxu0 0
      %597 = vmatmul.mubr.bf16.gmra.mrb[0].mxu0 %v497
      %v598 = vpop.f32.mrb[0].mxu0
      %v599 = vadd.f32 0.0, %v598
      %v600 = vpop.f32.mrb[0].mxu0
      %v601 = vpop.f32.mrb[0].mxu0
      %v602 = vadd.f32 0.0, %v601
      %v603 = vpop.f32.mrb[0].mxu0
      %604 = vmatprep.mubr.bf16.mxu0 0
      %605 = vmatmul.mubr.bf16.gmra.mrb[0].mxu0 %v500
      %v606 = vpop.f32.mrb[0].mxu0
      %v607 = vadd.f32 0.0, %v606
      %v608 = vpop.f32.mrb[0].mxu0
      %v609 = vpop.f32.mrb[0].mxu0
      %v610 = vadd.f32 0.0, %v609
      %v611 = vpop.f32.mrb[0].mxu0
      %612 = vmatprep.mubr.bf16.mxu0 0
      %613 = vmatmul.mubr.bf16.gmra.mrb[0].mxu0 %v503
      %v614 = vpop.f32.mrb[0].mxu0
      %v615 = vadd.f32 0.0, %v614
      %v616 = vpop.f32.mrb[0].mxu0
      %v617 = vpop.f32.mrb[0].mxu0
      %v618 = vadd.f32 0.0, %v617
      %v619 = vpop.f32.mrb[0].mxu0
      %620 = vmatprep.mubr.bf16.mxu0 0
      %621 = vmatmul.mubr.bf16.gmra.mrb[0].mxu0 %v506
      %v622 = vpop.f32.mrb[0].mxu0
      %v623 = vadd.f32 0.0, %v622
      %v624 = vpop.f32.mrb[0].mxu0
      %v625 = vpop.f32.mrb[0].mxu0
      %v626 = vadd.f32 0.0, %v625
      %v627 = vpop.f32.mrb[0].mxu0
      %628 = vmatprep.mubr.bf16.mxu0 0
      %629 = vmatmul.mubr.bf16.gmra.mrb[0].mxu0 %v509
      %v630 = vpop.f32.mrb[0].mxu0
      %v631 = vadd.f32 0.0, %v630
      %v632 = vpop.f32.mrb[0].mxu0
      %v633 = vpop.f32.mrb[0].mxu0
      %v634 = vadd.f32 0.0, %v633
      %v635 = vpop.f32.mrb[0].mxu0
      %636 = vmatprep.mubr.bf16.mxu0 0
      %637 = vmatmul.mubr.bf16.gmra.mrb[0].mxu0 %v512
      %v638 = vpop.f32.mrb[0].mxu0
      %v639 = vadd.f32 0.0, %v638
      %v640 = vpop.f32.mrb[0].mxu0
      %v641 = vpop.f32.mrb[0].mxu0
      %v642 = vadd.f32 0.0, %v641
      %v643 = vpop.f32.mrb[0].mxu0
      %644 = vmatprep.mubr.bf16.mxu0 0
      %645 = vmatmul.mubr.bf16.gmra.mrb[0].mxu0 %v515
      %v646 = vpop.f32.mrb[0].mxu0
      %v647 = vadd.f32 0.0, %v646
      %v648 = vpop.f32.mrb[0].mxu0
      %v649 = vpop.f32.mrb[0].mxu0
      %v650 = vadd.f32 0.0, %v649
      %v651 = vpop.f32.mrb[0].mxu0
      %652 = vmatprep.mubr.bf16.mxu0 0
      %653 = vmatmul.mubr.bf16.gmra.mrb[0].mxu0 %v518
      %v654 = vpop.f32.mrb[0].mxu0
      %v655 = vadd.f32 0.0, %v654
      %v656 = vpop.f32.mrb[0].mxu0
      %v657 = vpop.f32.mrb[0].mxu0
      %v658 = vadd.f32 0.0, %v657
      %v659 = vpop.f32.mrb[0].mxu0
      %660 = vmatprep.mubr.bf16.mxu0 0
      %661 = vmatmul.mubr.bf16.gmra.mrb[0].mxu0 %v521
      %v662 = vpop.f32.mrb[0].mxu0
      %v663 = vadd.f32 0.0, %v662
      %v664 = vpop.f32.mrb[0].mxu0
      %v665 = vpop.f32.mrb[0].mxu0
      %v666 = vadd.f32 0.0, %v665
      %v667 = vpop.f32.mrb[0].mxu0
      %668 = vmatprep.mubr.bf16.mxu0 0
      %669 = vmatmul.mubr.bf16.gmra.mrb[0].mxu0 %v524
      %v670 = vpop.f32.mrb[0].mxu0
      %v671 = vadd.f32 0.0, %v670
      %v672 = vpop.f32.mrb[0].mxu0
      %v673 = vpop.f32.mrb[0].mxu0
      %v674 = vadd.f32 0.0, %v673
      %v675 = vpop.f32.mrb[0].mxu0
      %676 = vmatprep.mubr.bf16.mxu0 0
      %677 = vmatmul.mubr.bf16.gmra.mrb[0].mxu0 %v527
      %v678 = vpop.f32.mrb[0].mxu0
      %v679 = vadd.f32 0.0, %v678
      %v680 = vpop.f32.mrb[0].mxu0
      %v681 = vpop.f32.mrb[0].mxu0
      %v682 = vadd.f32 0.0, %v681
      %v683 = vpop.f32.mrb[0].mxu0
      %684 = vmatprep.mubr.bf16.mxu0 0
      %685 = vmatmul.mubr.bf16.gmra.mrb[0].mxu0 %v530
      %v686 = vpop.f32.mrb[0].mxu0
      %v687 = vadd.f32 0.0, %v686
      %v688 = vpop.f32.mrb[0].mxu0
      %v689 = vpop.f32.mrb[0].mxu0
      %v690 = vadd.f32 0.0, %v689
      %v691 = vpop.f32.mrb[0].mxu0
      %692 = vdwg.mxu0
      %v693 = vadd.f32 %v363, %v567
      %v694 = vadd.f32 %v364, %v570
      %v695 = vadd.f32 %v365, %v575
      %v696 = vadd.f32 %v366, %v578
      %v697 = vadd.f32 %v367, %v583
      %v698 = vadd.f32 %v368, %v586
      %v699 = vadd.f32 %v369, %v591
      %v700 = vadd.f32 %v370, %v594
      %v701 = vadd.f32 %v371, %v599
      %v702 = vadd.f32 %v372, %v602
      %v703 = vadd.f32 %v373, %v607
      %v704 = vadd.f32 %v374, %v610
      %v705 = vadd.f32 %v375, %v615
      %v706 = vadd.f32 %v376, %v618
      %v707 = vadd.f32 %v377, %v623
      %v708 = vadd.f32 %v378, %v626
      %v709 = vadd.f32 %v379, %v631
      %v710 = vadd.f32 %v380, %v634
      %v711 = vadd.f32 %v381, %v639
      %v712 = vadd.f32 %v382, %v642
      %v713 = vadd.f32 %v383, %v647
      %v714 = vadd.f32 %v384, %v650
      %v715 = vadd.f32 %v385, %v655
      %v716 = vadd.f32 %v386, %v658
      %v717 = vadd.f32 %v387, %v663
      %v718 = vadd.f32 %v388, %v666
      %v719 = vadd.f32 %v389, %v671
      %v720 = vadd.f32 %v390, %v674
      %v721 = vadd.f32 %v391, %v679
      %v722 = vadd.f32 %v392, %v682
      %v723 = vadd.f32 %v393, %v687
      %v724 = vadd.f32 %v394, %v690
      %vm725 = vcmask 64512
      %726 = vst.msk [vmem:[#allocation2] sm:$0xff] %vm725, %v693
      %727 = vst.msk [vmem:[#allocation2 + $0x8] sm:$0xff] %vm725, %v694
      %728 = vst.msk [vmem:[#allocation2 + $0x10] sm:$0xff] %vm725, %v695
      %729 = vst.msk [vmem:[#allocation2 + $0x18] sm:$0xff] %vm725, %v696
      %730 = vst.msk [vmem:[#allocation2 + $0x20] sm:$0xff] %vm725, %v697
      %731 = vst.msk [vmem:[#allocation2 + $0x28] sm:$0xff] %vm725, %v698
      %732 = vst.msk [vmem:[#allocation2 + $0x30] sm:$0xff] %vm725, %v699
      %733 = vst.msk [vmem:[#allocation2 + $0x38] sm:$0xff] %vm725, %v700
      %734 = vst.msk [vmem:[#allocation2 + $0x40] sm:$0xff] %vm725, %v701
      %735 = vst.msk [vmem:[#allocation2 + $0x48] sm:$0xff] %vm725, %v702
      %736 = vst.msk [vmem:[#allocation2 + $0x50] sm:$0xff] %vm725, %v703
      %737 = vst.msk [vmem:[#allocation2 + $0x58] sm:$0xff] %vm725, %v704
      %738 = vst.msk [vmem:[#allocation2 + $0x60] sm:$0xff] %vm725, %v705
      %739 = vst.msk [vmem:[#allocation2 + $0x68] sm:$0xff] %vm725, %v706
      %740 = vst.msk [vmem:[#allocation2 + $0x70] sm:$0xff] %vm725, %v707
      %741 = vst.msk [vmem:[#allocation2 + $0x78] sm:$0xff] %vm725, %v708
      %742 = vst.msk [vmem:[#allocation2 + $0x80] sm:$0xff] %vm725, %v709
      %743 = vst.msk [vmem:[#allocation2 + $0x88] sm:$0xff] %vm725, %v710
      %744 = vst.msk [vmem:[#allocation2 + $0x90] sm:$0xff] %vm725, %v711
      %745 = vst.msk [vmem:[#allocation2 + $0x98] sm:$0xff] %vm725, %v712
      %746 = vst.msk [vmem:[#allocation2 + $0xa0] sm:$0xff] %vm725, %v713
      %747 = vst.msk [vmem:[#allocation2 + $0xa8] sm:$0xff] %vm725, %v714
      %748 = vst.msk [vmem:[#allocation2 + $0xb0] sm:$0xff] %vm725, %v715
      %749 = vst.msk [vmem:[#allocation2 + $0xb8] sm:$0xff] %vm725, %v716
      %750 = vst.msk [vmem:[#allocation2 + $0xc0] sm:$0xff] %vm725, %v717
      %751 = vst.msk [vmem:[#allocation2 + $0xc8] sm:$0xff] %vm725, %v718
      %752 = vst.msk [vmem:[#allocation2 + $0xd0] sm:$0xff] %vm725, %v719
      %753 = vst.msk [vmem:[#allocation2 + $0xd8] sm:$0xff] %vm725, %v720
      %754 = vst.msk [vmem:[#allocation2 + $0xe0] sm:$0xff] %vm725, %v721
      %755 = vst.msk [vmem:[#allocation2 + $0xe8] sm:$0xff] %vm725, %v722
      %756 = vst.msk [vmem:[#allocation2 + $0xf0] sm:$0xff] %vm725, %v723
      %757 = vst.msk [vmem:[#allocation2 + $0xf8] sm:$0xff] %vm725, %v724
      %v758 = vld [vmem:[%s265] sm:$0xf]
      %v759 = vld [vmem:[%s265 + $0x4] sm:$0xf]
      %v760 = vld [vmem:[%s265 + $0x8] sm:$0x1]
      %v761 = vld [vmem:[%s265 + $0xc] sm:$0xf]
      %v762 = vld [vmem:[%s265 + $0x10] sm:$0xf]
      %v763 = vld [vmem:[%s265 + $0x14] sm:$0x1]
      %v764 = vld [vmem:[%s265 + $0x18] sm:$0xf]
      %v765 = vld [vmem:[%s265 + $0x1c] sm:$0xf]
      %v766 = vld [vmem:[%s265 + $0x20] sm:$0x1]
      %v767 = vld [vmem:[%s265 + $0x24] sm:$0xf]
      %v768 = vld [vmem:[%s265 + $0x28] sm:$0xf]
      %v769 = vld [vmem:[%s265 + $0x2c] sm:$0x1]
      %v770 = vld [vmem:[%s265 + $0x30] sm:$0xf]
      %v771 = vld [vmem:[%s265 + $0x34] sm:$0xf]
      %v772 = vld [vmem:[%s265 + $0x38] sm:$0x1]
      %v773 = vld [vmem:[%s265 + $0x3c] sm:$0xf]
      %v774 = vld [vmem:[%s265 + $0x40] sm:$0xf]
      %v775 = vld [vmem:[%s265 + $0x44] sm:$0x1]
      %v776 = vld [vmem:[%s265 + $0x48] sm:$0xf]
      %v777 = vld [vmem:[%s265 + $0x4c] sm:$0xf]
      %v778 = vld [vmem:[%s265 + $0x50] sm:$0x1]
      %v779 = vld [vmem:[%s265 + $0x54] sm:$0xf]
      %v780 = vld [vmem:[%s265 + $0x58] sm:$0xf]
      %v781 = vld [vmem:[%s265 + $0x5c] sm:$0x1]
      %v782 = vld [vmem:[%s265 + $0x60] sm:$0xf]
      %v783 = vld [vmem:[%s265 + $0x64] sm:$0xf]
      %v784 = vld [vmem:[%s265 + $0x68] sm:$0x1]
      %v785 = vld [vmem:[%s265 + $0x6c] sm:$0xf]
      %v786 = vld [vmem:[%s265 + $0x70] sm:$0xf]
      %v787 = vld [vmem:[%s265 + $0x74] sm:$0x1]
      %v788 = vld [vmem:[%s265 + $0x78] sm:$0xf]
      %v789 = vld [vmem:[%s265 + $0x7c] sm:$0xf]
      %v790 = vld [vmem:[%s265 + $0x80] sm:$0x1]
      %v791 = vld [vmem:[%s265 + $0x84] sm:$0xf]
      %v792 = vld [vmem:[%s265 + $0x88] sm:$0xf]
      %v793 = vld [vmem:[%s265 + $0x8c] sm:$0x1]
      %v794 = vld [vmem:[%s265 + $0x90] sm:$0xf]
      %v795 = vld [vmem:[%s265 + $0x94] sm:$0xf]
      %v796 = vld [vmem:[%s265 + $0x98] sm:$0x1]
      %v797 = vld [vmem:[%s265 + $0x9c] sm:$0xf]
      %v798 = vld [vmem:[%s265 + $0xa0] sm:$0xf]
      %v799 = vld [vmem:[%s265 + $0xa4] sm:$0x1]
      %v800 = vld [vmem:[%s265 + $0xa8] sm:$0xf]
      %v801 = vld [vmem:[%s265 + $0xac] sm:$0xf]
      %v802 = vld [vmem:[%s265 + $0xb0] sm:$0x1]
      %v803 = vld [vmem:[%s265 + $0xb4] sm:$0xf]
      %v804 = vld [vmem:[%s265 + $0xb8] sm:$0xf]
      %v805 = vld [vmem:[%s265 + $0xbc] sm:$0x1]
      %vm806 = vsmask.f32 3328
      %vm807 = vsmask.f32 7440
      %vm808 = vmor %vm806, %vm807
      %v810 = vshrl.u32 %v758, 16
      %v812 = vrot.slane %v810, 4
      %v813 = vshll.u32 %v758, 16
      %v815 = vrot.slane %v813, 5
      %v816 = vor.u32 %v812, %v815
      %v817 = vrot.slane %v816, 4
      %v819 = vshll.u32 %v759, 16
      %v821 = vrot.slane %v819, 5
      %v822 = vsel %vm808, %v817, %v821
      %v823 = vshrl.u32 %v759, 16
      %v825 = vrot.slane %v823, 4
      %v826 = vor.u32 %v825, %v821
      %v827 = vrot.slane %v826, 4
      %v829 = vshll.u32 %v760, 16
      %v831 = vrot.slane %v829, 5
      %v832 = vsel %vm808, %v827, %v831
      %v834 = vshrl.u32 %v761, 16
      %v836 = vrot.slane %v834, 4
      %v837 = vshll.u32 %v761, 16
      %v839 = vrot.slane %v837, 5
      %v840 = vor.u32 %v836, %v839
      %v841 = vrot.slane %v840, 4
      %v843 = vshll.u32 %v762, 16
      %v845 = vrot.slane %v843, 5
      %v846 = vsel %vm808, %v841, %v845
      %v847 = vshrl.u32 %v762, 16
      %v849 = vrot.slane %v847, 4
      %v850 = vor.u32 %v849, %v845
      %v851 = vrot.slane %v850, 4
      %v853 = vshll.u32 %v763, 16
      %v855 = vrot.slane %v853, 5
      %v856 = vsel %vm808, %v851, %v855
      %v858 = vshrl.u32 %v764, 16
      %v860 = vrot.slane %v858, 4
      %v861 = vshll.u32 %v764, 16
      %v863 = vrot.slane %v861, 5
      %v864 = vor.u32 %v860, %v863
      %v865 = vrot.slane %v864, 4
      %v867 = vshll.u32 %v765, 16
      %v869 = vrot.slane %v867, 5
      %v870 = vsel %vm808, %v865, %v869
      %v871 = vshrl.u32 %v765, 16
      %v873 = vrot.slane %v871, 4
      %v874 = vor.u32 %v873, %v869
      %v875 = vrot.slane %v874, 4
      %v877 = vshll.u32 %v766, 16
      %v879 = vrot.slane %v877, 5
      %v880 = vsel %vm808, %v875, %v879
      %v882 = vshrl.u32 %v767, 16
      %v884 = vrot.slane %v882, 4
      %v885 = vshll.u32 %v767, 16
      %v887 = vrot.slane %v885, 5
      %v888 = vor.u32 %v884, %v887
      %v889 = vrot.slane %v888, 4
      %v891 = vshll.u32 %v768, 16
      %v893 = vrot.slane %v891, 5
      %v894 = vsel %vm808, %v889, %v893
      %v895 = vshrl.u32 %v768, 16
      %v897 = vrot.slane %v895, 4
      %v898 = vor.u32 %v897, %v893
      %v899 = vrot.slane %v898, 4
      %v901 = vshll.u32 %v769, 16
      %v903 = vrot.slane %v901, 5
      %v904 = vsel %vm808, %v899, %v903
      %v906 = vshrl.u32 %v770, 16
      %v908 = vrot.slane %v906, 4
      %v909 = vshll.u32 %v770, 16
      %v911 = vrot.slane %v909, 5
      %v912 = vor.u32 %v908, %v911
      %v913 = vrot.slane %v912, 4
      %v915 = vshll.u32 %v771, 16
      %v917 = vrot.slane %v915, 5
      %v918 = vsel %vm808, %v913, %v917
      %v919 = vshrl.u32 %v771, 16
      %v921 = vrot.slane %v919, 4
      %v922 = vor.u32 %v921, %v917
      %v923 = vrot.slane %v922, 4
      %v925 = vshll.u32 %v772, 16
      %v927 = vrot.slane %v925, 5
      %v928 = vsel %vm808, %v923, %v927
      %v930 = vshrl.u32 %v773, 16
      %v932 = vrot.slane %v930, 4
      %v933 = vshll.u32 %v773, 16
      %v935 = vrot.slane %v933, 5
      %v936 = vor.u32 %v932, %v935
      %v937 = vrot.slane %v936, 4
      %v939 = vshll.u32 %v774, 16
      %v941 = vrot.slane %v939, 5
      %v942 = vsel %vm808, %v937, %v941
      %v943 = vshrl.u32 %v774, 16
      %v945 = vrot.slane %v943, 4
      %v946 = vor.u32 %v945, %v941
      %v947 = vrot.slane %v946, 4
      %v949 = vshll.u32 %v775, 16
      %v951 = vrot.slane %v949, 5
      %v952 = vsel %vm808, %v947, %v951
      %v954 = vshrl.u32 %v776, 16
      %v956 = vrot.slane %v954, 4
      %v957 = vshll.u32 %v776, 16
      %v959 = vrot.slane %v957, 5
      %v960 = vor.u32 %v956, %v959
      %v961 = vrot.slane %v960, 4
      %v963 = vshll.u32 %v777, 16
      %v965 = vrot.slane %v963, 5
      %v966 = vsel %vm808, %v961, %v965
      %v967 = vshrl.u32 %v777, 16
      %v969 = vrot.slane %v967, 4
      %v970 = vor.u32 %v969, %v965
      %v971 = vrot.slane %v970, 4
      %v973 = vshll.u32 %v778, 16
      %v975 = vrot.slane %v973, 5
      %v976 = vsel %vm808, %v971, %v975
      %v978 = vshrl.u32 %v779, 16
      %v980 = vrot.slane %v978, 4
      %v981 = vshll.u32 %v779, 16
      %v983 = vrot.slane %v981, 5
      %v984 = vor.u32 %v980, %v983
      %v985 = vrot.slane %v984, 4
      %v987 = vshll.u32 %v780, 16
      %v989 = vrot.slane %v987, 5
      %v990 = vsel %vm808, %v985, %v989
      %v991 = vshrl.u32 %v780, 16
      %v993 = vrot.slane %v991, 4
      %v994 = vor.u32 %v993, %v989
      %v995 = vrot.slane %v994, 4
      %v997 = vshll.u32 %v781, 16
      %v999 = vrot.slane %v997, 5
      %v1000 = vsel %vm808, %v995, %v999
      %v1002 = vshrl.u32 %v782, 16
      %v1004 = vrot.slane %v1002, 4
      %v1005 = vshll.u32 %v782, 16
      %v1007 = vrot.slane %v1005, 5
      %v1008 = vor.u32 %v1004, %v1007
      %v1009 = vrot.slane %v1008, 4
      %v1011 = vshll.u32 %v783, 16
      %v1013 = vrot.slane %v1011, 5
      %v1014 = vsel %vm808, %v1009, %v1013
      %v1015 = vshrl.u32 %v783, 16
      %v1017 = vrot.slane %v1015, 4
      %v1018 = vor.u32 %v1017, %v1013
      %v1019 = vrot.slane %v1018, 4
      %v1021 = vshll.u32 %v784, 16
      %v1023 = vrot.slane %v1021, 5
      %v1024 = vsel %vm808, %v1019, %v1023
      %v1026 = vshrl.u32 %v785, 16
      %v1028 = vrot.slane %v1026, 4
      %v1029 = vshll.u32 %v785, 16
      %v1031 = vrot.slane %v1029, 5
      %v1032 = vor.u32 %v1028, %v1031
      %v1033 = vrot.slane %v1032, 4
      %v1035 = vshll.u32 %v786, 16
      %v1037 = vrot.slane %v1035, 5
      %v1038 = vsel %vm808, %v1033, %v1037
      %v1039 = vshrl.u32 %v786, 16
      %v1041 = vrot.slane %v1039, 4
      %v1042 = vor.u32 %v1041, %v1037
      %v1043 = vrot.slane %v1042, 4
      %v1045 = vshll.u32 %v787, 16
      %v1047 = vrot.slane %v1045, 5
      %v1048 = vsel %vm808, %v1043, %v1047
      %v1050 = vshrl.u32 %v788, 16
      %v1052 = vrot.slane %v1050, 4
      %v1053 = vshll.u32 %v788, 16
      %v1055 = vrot.slane %v1053, 5
      %v1056 = vor.u32 %v1052, %v1055
      %v1057 = vrot.slane %v1056, 4
      %v1059 = vshll.u32 %v789, 16
      %v1061 = vrot.slane %v1059, 5
      %v1062 = vsel %vm808, %v1057, %v1061
      %v1063 = vshrl.u32 %v789, 16
      %v1065 = vrot.slane %v1063, 4
      %v1066 = vor.u32 %v1065, %v1061
      %v1067 = vrot.slane %v1066, 4
      %v1069 = vshll.u32 %v790, 16
      %v1071 = vrot.slane %v1069, 5
      %v1072 = vsel %vm808, %v1067, %v1071
      %v1074 = vshrl.u32 %v791, 16
      %v1076 = vrot.slane %v1074, 4
      %v1077 = vshll.u32 %v791, 16
      %v1079 = vrot.slane %v1077, 5
      %v1080 = vor.u32 %v1076, %v1079
      %v1081 = vrot.slane %v1080, 4
      %v1083 = vshll.u32 %v792, 16
      %v1085 = vrot.slane %v1083, 5
      %v1086 = vsel %vm808, %v1081, %v1085
      %v1087 = vshrl.u32 %v792, 16
      %v1089 = vrot.slane %v1087, 4
      %v1090 = vor.u32 %v1089, %v1085
      %v1091 = vrot.slane %v1090, 4
      %v1093 = vshll.u32 %v793, 16
      %v1095 = vrot.slane %v1093, 5
      %v1096 = vsel %vm808, %v1091, %v1095
      %v1098 = vshrl.u32 %v794, 16
      %v1100 = vrot.slane %v1098, 4
      %v1101 = vshll.u32 %v794, 16
      %v1103 = vrot.slane %v1101, 5
      %v1104 = vor.u32 %v1100, %v1103
      %v1105 = vrot.slane %v1104, 4
      %v1107 = vshll.u32 %v795, 16
      %v1109 = vrot.slane %v1107, 5
      %v1110 = vsel %vm808, %v1105, %v1109
      %v1111 = vshrl.u32 %v795, 16
      %v1113 = vrot.slane %v1111, 4
      %v1114 = vor.u32 %v1113, %v1109
      %v1115 = vrot.slane %v1114, 4
      %v1117 = vshll.u32 %v796, 16
      %v1119 = vrot.slane %v1117, 5
      %v1120 = vsel %vm808, %v1115, %v1119
      %v1122 = vshrl.u32 %v797, 16
      %v1124 = vrot.slane %v1122, 4
      %v1125 = vshll.u32 %v797, 16
      %v1127 = vrot.slane %v1125, 5
      %v1128 = vor.u32 %v1124, %v1127
      %v1129 = vrot.slane %v1128, 4
      %v1131 = vshll.u32 %v798, 16
      %v1133 = vrot.slane %v1131, 5
      %v1134 = vsel %vm808, %v1129, %v1133
      %v1135 = vshrl.u32 %v798, 16
      %v1137 = vrot.slane %v1135, 4
      %v1138 = vor.u32 %v1137, %v1133
      %v1139 = vrot.slane %v1138, 4
      %v1141 = vshll.u32 %v799, 16
      %v1143 = vrot.slane %v1141, 5
      %v1144 = vsel %vm808, %v1139, %v1143
      %v1146 = vshrl.u32 %v800, 16
      %v1148 = vrot.slane %v1146, 4
      %v1149 = vshll.u32 %v800, 16
      %v1151 = vrot.slane %v1149, 5
      %v1152 = vor.u32 %v1148, %v1151
      %v1153 = vrot.slane %v1152, 4
      %v1155 = vshll.u32 %v801, 16
      %v1157 = vrot.slane %v1155, 5
      %v1158 = vsel %vm808, %v1153, %v1157
      %v1159 = vshrl.u32 %v801, 16
      %v1161 = vrot.slane %v1159, 4
      %v1162 = vor.u32 %v1161, %v1157
      %v1163 = vrot.slane %v1162, 4
      %v1165 = vshll.u32 %v802, 16
      %v1167 = vrot.slane %v1165, 5
      %v1168 = vsel %vm808, %v1163, %v1167
      %v1170 = vshrl.u32 %v803, 16
      %v1172 = vrot.slane %v1170, 4
      %v1173 = vshll.u32 %v803, 16
      %v1175 = vrot.slane %v1173, 5
      %v1176 = vor.u32 %v1172, %v1175
      %v1177 = vrot.slane %v1176, 4
      %v1179 = vshll.u32 %v804, 16
      %v1181 = vrot.slane %v1179, 5
      %v1182 = vsel %vm808, %v1177, %v1181
      %v1183 = vshrl.u32 %v804, 16
      %v1185 = vrot.slane %v1183, 4
      %v1186 = vor.u32 %v1185, %v1181
      %v1187 = vrot.slane %v1186, 4
      %v1189 = vshll.u32 %v805, 16
      %v1191 = vrot.slane %v1189, 5
      %v1192 = vsel %vm808, %v1187, %v1191
      %v1193 = vld [vmem:[#allocation2] sm:$0xff]
      %v1194 = vld [vmem:[#allocation2 + $0x8] sm:$0xff]
      %v1195 = vld [vmem:[#allocation2 + $0x10] sm:$0xff]
      %v1196 = vld [vmem:[#allocation2 + $0x18] sm:$0xff]
      %v1197 = vld [vmem:[#allocation2 + $0x20] sm:$0xff]
      %v1198 = vld [vmem:[#allocation2 + $0x28] sm:$0xff]
      %v1199 = vld [vmem:[#allocation2 + $0x30] sm:$0xff]
      %v1200 = vld [vmem:[#allocation2 + $0x38] sm:$0xff]
      %v1201 = vld [vmem:[#allocation2 + $0x40] sm:$0xff]
      %v1202 = vld [vmem:[#allocation2 + $0x48] sm:$0xff]
      %v1203 = vld [vmem:[#allocation2 + $0x50] sm:$0xff]
      %v1204 = vld [vmem:[#allocation2 + $0x58] sm:$0xff]
      %v1205 = vld [vmem:[#allocation2 + $0x60] sm:$0xff]
      %v1206 = vld [vmem:[#allocation2 + $0x68] sm:$0xff]
      %v1207 = vld [vmem:[#allocation2 + $0x70] sm:$0xff]
      %v1208 = vld [vmem:[#allocation2 + $0x78] sm:$0xff]
      %v1209 = vld [vmem:[#allocation2 + $0x80] sm:$0xff]
      %v1210 = vld [vmem:[#allocation2 + $0x88] sm:$0xff]
      %v1211 = vld [vmem:[#allocation2 + $0x90] sm:$0xff]
      %v1212 = vld [vmem:[#allocation2 + $0x98] sm:$0xff]
      %v1213 = vld [vmem:[#allocation2 + $0xa0] sm:$0xff]
      %v1214 = vld [vmem:[#allocation2 + $0xa8] sm:$0xff]
      %v1215 = vld [vmem:[#allocation2 + $0xb0] sm:$0xff]
      %v1216 = vld [vmem:[#allocation2 + $0xb8] sm:$0xff]
      %v1217 = vld [vmem:[#allocation2 + $0xc0] sm:$0xff]
      %v1218 = vld [vmem:[#allocation2 + $0xc8] sm:$0xff]
      %v1219 = vld [vmem:[#allocation2 + $0xd0] sm:$0xff]
      %v1220 = vld [vmem:[#allocation2 + $0xd8] sm:$0xff]
      %v1221 = vld [vmem:[#allocation2 + $0xe0] sm:$0xff]
      %v1222 = vld [vmem:[#allocation2 + $0xe8] sm:$0xff]
      %v1223 = vld [vmem:[#allocation2 + $0xf0] sm:$0xff]
      %v1224 = vld [vmem:[#allocation2 + $0xf8] sm:$0xff]
      %s1225 = scalar_lea.vmem %s273, 8
      %v1226 = vld [vmem:[%s1225] sm:$0xf]
      %v1227 = vld [vmem:[%s1225 + $0x4] sm:$0xf]
      %v1228 = vunpack.c.l.b16 %v822
      %v1229 = vunpack.c.l.b16 %v832
      %v1230 = vunpack.c.l.b16 %v846
      %v1231 = vunpack.c.l.b16 %v856
      %v1232 = vunpack.c.l.b16 %v870
      %v1233 = vunpack.c.l.b16 %v880
      %v1234 = vunpack.c.l.b16 %v894
      %v1235 = vunpack.c.l.b16 %v904
      %v1236 = vunpack.c.l.b16 %v918
      %v1237 = vunpack.c.l.b16 %v928
      %v1238 = vunpack.c.l.b16 %v942
      %v1239 = vunpack.c.l.b16 %v952
      %v1240 = vunpack.c.l.b16 %v966
      %v1241 = vunpack.c.l.b16 %v976
      %v1242 = vunpack.c.l.b16 %v990
      %v1243 = vunpack.c.l.b16 %v1000
      %v1244 = vunpack.c.l.b16 %v1014
      %v1245 = vunpack.c.l.b16 %v1024
      %v1246 = vunpack.c.l.b16 %v1038
      %v1247 = vunpack.c.l.b16 %v1048
      %v1248 = vunpack.c.l.b16 %v1062
      %v1249 = vunpack.c.l.b16 %v1072
      %v1250 = vunpack.c.l.b16 %v1086
      %v1251 = vunpack.c.l.b16 %v1096
      %v1252 = vunpack.c.l.b16 %v1110
      %v1253 = vunpack.c.l.b16 %v1120
      %v1254 = vunpack.c.l.b16 %v1134
      %v1255 = vunpack.c.l.b16 %v1144
      %v1256 = vunpack.c.l.b16 %v1158
      %v1257 = vunpack.c.l.b16 %v1168
      %v1258 = vunpack.c.l.b16 %v1182
      %v1259 = vunpack.c.l.b16 %v1192
      %v1260 = vpack.c.b16 %v1229, %v1228
      %v1261 = vpack.c.b16 %v1231, %v1230
      %v1262 = vpack.c.b16 %v1233, %v1232
      %v1263 = vpack.c.b16 %v1235, %v1234
      %v1264 = vpack.c.b16 %v1237, %v1236
      %v1265 = vpack.c.b16 %v1239, %v1238
      %v1266 = vpack.c.b16 %v1241, %v1240
      %v1267 = vpack.c.b16 %v1243, %v1242
      %v1268 = vpack.c.b16 %v1245, %v1244
      %v1269 = vpack.c.b16 %v1247, %v1246
      %v1270 = vpack.c.b16 %v1249, %v1248
      %v1271 = vpack.c.b16 %v1251, %v1250
      %v1272 = vpack.c.b16 %v1253, %v1252
      %v1273 = vpack.c.b16 %v1255, %v1254
      %v1274 = vpack.c.b16 %v1257, %v1256
      %v1275 = vpack.c.b16 %v1259, %v1258
      %v1278 = vunpack.c.l.b16 %v1226
      %v1279 = vunpack.c.l.b16 %v1227
      %v1280 = vpack.c.b16 %v1279, %v1278
      %v1283 = vsel %vm483, %v1260, 0
      %v1286 = vsel %vm483, %v1261, 0
      %v1289 = vsel %vm483, %v1262, 0
      %v1292 = vsel %vm483, %v1263, 0
      %v1295 = vsel %vm483, %v1264, 0
      %v1298 = vsel %vm483, %v1265, 0
      %v1301 = vsel %vm483, %v1266, 0
      %v1304 = vsel %vm483, %v1267, 0
      %v1307 = vsel %vm483, %v1268, 0
      %v1310 = vsel %vm483, %v1269, 0
      %v1313 = vsel %vm483, %v1270, 0
      %v1316 = vsel %vm483, %v1271, 0
      %v1319 = vsel %vm483, %v1272, 0
      %v1322 = vsel %vm483, %v1273, 0
      %v1325 = vsel %vm483, %v1274, 0
      %v1328 = vsel %vm483, %v1275, 0
      %1330 = vmatprep.subr.bf16.mxu0 0
      %1331 = vmatpush1.bf16.msra.mxu0 %v1280
      %1332 = vmatprep.subr.bf16.mxu0 0
      %1333 = vmatpush1.bf16.msra.mxu0 0
      %1334 = vmatprep.subr.bf16.mxu0 0
      %1335 = vmatpush1.bf16.msra.mxu0 0
      %1336 = vmatprep.subr.bf16.mxu0 0
      %1337 = vmatpush1.bf16.msra.mxu0 0
      %1338 = vmatprep.subr.bf16.mxu0 0
      %1339 = vmatpush1.bf16.msra.mxu0 0
      %1340 = vmatprep.subr.bf16.mxu0 0
      %1341 = vmatpush1.bf16.msra.mxu0 0
      %1342 = vmatprep.subr.bf16.mxu0 0
      %1343 = vmatpush1.bf16.msra.mxu0 0
      %1344 = vmatprep.subr.bf16.mxu0 0
      %1345 = vmatpush1.bf16.msra.mxu0 0
      %1346 = vmatprep.subr.bf16.mxu0 0
      %1347 = vmatpush1.bf16.msra.mxu0 0
      %1348 = vmatprep.subr.bf16.mxu0 0
      %1349 = vmatpush1.bf16.msra.mxu0 0
      %1350 = vmatprep.subr.bf16.mxu0 0
      %1351 = vmatpush1.bf16.msra.mxu0 0
      %1352 = vmatprep.subr.bf16.mxu0 0
      %1353 = vmatpush1.bf16.msra.mxu0 0
      %1354 = vmatprep.subr.bf16.mxu0 0
      %1355 = vmatpush1.bf16.msra.mxu0 0
      %1356 = vmatprep.subr.bf16.mxu0 0
      %1357 = vmatpush1.bf16.msra.mxu0 0
      %1358 = vmatprep.subr.bf16.mxu0 0
      %1359 = vmatpush1.bf16.msra.mxu0 0
      %1360 = vmatprep.subr.bf16.mxu0 0
      %1361 = vmatpush1.bf16.msra.mxu0 0
      %1362 = vmatprep.mubr.bf16.mxu0 0
      %1363 = vmatmul.mubr.bf16.gmra.mrb[0].mxu0 %v1283
      %v1364 = vpop.f32.mrb[0].mxu0
      %v1365 = vadd.f32 0.0, %v1364
      %v1366 = vpop.f32.mrb[0].mxu0
      %v1367 = vpop.f32.mrb[0].mxu0
      %v1368 = vadd.f32 0.0, %v1367
      %v1369 = vpop.f32.mrb[0].mxu0
      %1370 = vmatprep.mubr.bf16.mxu0 0
      %1371 = vmatmul.mubr.bf16.gmra.mrb[0].mxu0 %v1286
      %v1372 = vpop.f32.mrb[0].mxu0
      %v1373 = vadd.f32 0.0, %v1372
      %v1374 = vpop.f32.mrb[0].mxu0
      %v1375 = vpop.f32.mrb[0].mxu0
      %v1376 = vadd.f32 0.0, %v1375
      %v1377 = vpop.f32.mrb[0].mxu0
      %1378 = vmatprep.mubr.bf16.mxu0 0
      %1379 = vmatmul.mubr.bf16.gmra.mrb[0].mxu0 %v1289
      %v1380 = vpop.f32.mrb[0].mxu0
      %v1381 = vadd.f32 0.0, %v1380
      %v1382 = vpop.f32.mrb[0].mxu0
      %v1383 = vpop.f32.mrb[0].mxu0
      %v1384 = vadd.f32 0.0, %v1383
      %v1385 = vpop.f32.mrb[0].mxu0
      %1386 = vmatprep.mubr.bf16.mxu0 0
      %1387 = vmatmul.mubr.bf16.gmra.mrb[0].mxu0 %v1292
      %v1388 = vpop.f32.mrb[0].mxu0
      %v1389 = vadd.f32 0.0, %v1388
      %v1390 = vpop.f32.mrb[0].mxu0
      %v1391 = vpop.f32.mrb[0].mxu0
      %v1392 = vadd.f32 0.0, %v1391
      %v1393 = vpop.f32.mrb[0].mxu0
      %1394 = vmatprep.mubr.bf16.mxu0 0
      %1395 = vmatmul.mubr.bf16.gmra.mrb[0].mxu0 %v1295
      %v1396 = vpop.f32.mrb[0].mxu0
      %v1397 = vadd.f32 0.0, %v1396
      %v1398 = vpop.f32.mrb[0].mxu0
      %v1399 = vpop.f32.mrb[0].mxu0
      %v1400 = vadd.f32 0.0, %v1399
      %v1401 = vpop.f32.mrb[0].mxu0
      %1402 = vmatprep.mubr.bf16.mxu0 0
      %1403 = vmatmul.mubr.bf16.gmra.mrb[0].mxu0 %v1298
      %v1404 = vpop.f32.mrb[0].mxu0
      %v1405 = vadd.f32 0.0, %v1404
      %v1406 = vpop.f32.mrb[0].mxu0
      %v1407 = vpop.f32.mrb[0].mxu0
      %v1408 = vadd.f32 0.0, %v1407
      %v1409 = vpop.f32.mrb[0].mxu0
      %1410 = vmatprep.mubr.bf16.mxu0 0
      %1411 = vmatmul.mubr.bf16.gmra.mrb[0].mxu0 %v1301
      %v1412 = vpop.f32.mrb[0].mxu0
      %v1413 = vadd.f32 0.0, %v1412
      %v1414 = vpop.f32.mrb[0].mxu0
      %v1415 = vpop.f32.mrb[0].mxu0
      %v1416 = vadd.f32 0.0, %v1415
      %v1417 = vpop.f32.mrb[0].mxu0
      %1418 = vmatprep.mubr.bf16.mxu0 0
      %1419 = vmatmul.mubr.bf16.gmra.mrb[0].mxu0 %v1304
      %v1420 = vpop.f32.mrb[0].mxu0
      %v1421 = vadd.f32 0.0, %v1420
      %v1422 = vpop.f32.mrb[0].mxu0
      %v1423 = vpop.f32.mrb[0].mxu0
      %v1424 = vadd.f32 0.0, %v1423
      %v1425 = vpop.f32.mrb[0].mxu0
      %1426 = vmatprep.mubr.bf16.mxu0 0
      %1427 = vmatmul.mubr.bf16.gmra.mrb[0].mxu0 %v1307
      %v1428 = vpop.f32.mrb[0].mxu0
      %v1429 = vadd.f32 0.0, %v1428
      %v1430 = vpop.f32.mrb[0].mxu0
      %v1431 = vpop.f32.mrb[0].mxu0
      %v1432 = vadd.f32 0.0, %v1431
      %v1433 = vpop.f32.mrb[0].mxu0
      %1434 = vmatprep.mubr.bf16.mxu0 0
      %1435 = vmatmul.mubr.bf16.gmra.mrb[0].mxu0 %v1310
      %v1436 = vpop.f32.mrb[0].mxu0
      %v1437 = vadd.f32 0.0, %v1436
      %v1438 = vpop.f32.mrb[0].mxu0
      %v1439 = vpop.f32.mrb[0].mxu0
      %v1440 = vadd.f32 0.0, %v1439
      %v1441 = vpop.f32.mrb[0].mxu0
      %1442 = vmatprep.mubr.bf16.mxu0 0
      %1443 = vmatmul.mubr.bf16.gmra.mrb[0].mxu0 %v1313
      %v1444 = vpop.f32.mrb[0].mxu0
      %v1445 = vadd.f32 0.0, %v1444
      %v1446 = vpop.f32.mrb[0].mxu0
      %v1447 = vpop.f32.mrb[0].mxu0
      %v1448 = vadd.f32 0.0, %v1447
      %v1449 = vpop.f32.mrb[0].mxu0
      %1450 = vmatprep.mubr.bf16.mxu0 0
      %1451 = vmatmul.mubr.bf16.gmra.mrb[0].mxu0 %v1316
      %v1452 = vpop.f32.mrb[0].mxu0
      %v1453 = vadd.f32 0.0, %v1452
      %v1454 = vpop.f32.mrb[0].mxu0
      %v1455 = vpop.f32.mrb[0].mxu0
      %v1456 = vadd.f32 0.0, %v1455
      %v1457 = vpop.f32.mrb[0].mxu0
      %1458 = vmatprep.mubr.bf16.mxu0 0
      %1459 = vmatmul.mubr.bf16.gmra.mrb[0].mxu0 %v1319
      %v1460 = vpop.f32.mrb[0].mxu0
      %v1461 = vadd.f32 0.0, %v1460
      %v1462 = vpop.f32.mrb[0].mxu0
      %v1463 = vpop.f32.mrb[0].mxu0
      %v1464 = vadd.f32 0.0, %v1463
      %v1465 = vpop.f32.mrb[0].mxu0
      %1466 = vmatprep.mubr.bf16.mxu0 0
      %1467 = vmatmul.mubr.bf16.gmra.mrb[0].mxu0 %v1322
      %v1468 = vpop.f32.mrb[0].mxu0
      %v1469 = vadd.f32 0.0, %v1468
      %v1470 = vpop.f32.mrb[0].mxu0
      %v1471 = vpop.f32.mrb[0].mxu0
      %v1472 = vadd.f32 0.0, %v1471
      %v1473 = vpop.f32.mrb[0].mxu0
      %1474 = vmatprep.mubr.bf16.mxu0 0
      %1475 = vmatmul.mubr.bf16.gmra.mrb[0].mxu0 %v1325
      %v1476 = vpop.f32.mrb[0].mxu0
      %v1477 = vadd.f32 0.0, %v1476
      %v1478 = vpop.f32.mrb[0].mxu0
      %v1479 = vpop.f32.mrb[0].mxu0
      %v1480 = vadd.f32 0.0, %v1479
      %v1481 = vpop.f32.mrb[0].mxu0
      %1482 = vmatprep.mubr.bf16.mxu0 0
      %1483 = vmatmul.mubr.bf16.gmra.mrb[0].mxu0 %v1328
      %v1484 = vpop.f32.mrb[0].mxu0
      %v1485 = vadd.f32 0.0, %v1484
      %v1486 = vpop.f32.mrb[0].mxu0
      %v1487 = vpop.f32.mrb[0].mxu0
      %v1488 = vadd.f32 0.0, %v1487
      %v1489 = vpop.f32.mrb[0].mxu0
      %1490 = vdwg.mxu0
      %v1491 = vadd.f32 %v1193, %v1365
      %v1492 = vadd.f32 %v1194, %v1368
      %v1493 = vadd.f32 %v1195, %v1373
      %v1494 = vadd.f32 %v1196, %v1376
      %v1495 = vadd.f32 %v1197, %v1381
      %v1496 = vadd.f32 %v1198, %v1384
      %v1497 = vadd.f32 %v1199, %v1389
      %v1498 = vadd.f32 %v1200, %v1392
      %v1499 = vadd.f32 %v1201, %v1397
      %v1500 = vadd.f32 %v1202, %v1400
      %v1501 = vadd.f32 %v1203, %v1405
      %v1502 = vadd.f32 %v1204, %v1408
      %v1503 = vadd.f32 %v1205, %v1413
      %v1504 = vadd.f32 %v1206, %v1416
      %v1505 = vadd.f32 %v1207, %v1421
      %v1506 = vadd.f32 %v1208, %v1424
      %v1507 = vadd.f32 %v1209, %v1429
      %v1508 = vadd.f32 %v1210, %v1432
      %v1509 = vadd.f32 %v1211, %v1437
      %v1510 = vadd.f32 %v1212, %v1440
      %v1511 = vadd.f32 %v1213, %v1445
      %v1512 = vadd.f32 %v1214, %v1448
      %v1513 = vadd.f32 %v1215, %v1453
      %v1514 = vadd.f32 %v1216, %v1456
      %v1515 = vadd.f32 %v1217, %v1461
      %v1516 = vadd.f32 %v1218, %v1464
      %v1517 = vadd.f32 %v1219, %v1469
      %v1518 = vadd.f32 %v1220, %v1472
      %v1519 = vadd.f32 %v1221, %v1477
      %v1520 = vadd.f32 %v1222, %v1480
      %v1521 = vadd.f32 %v1223, %v1485
      %v1522 = vadd.f32 %v1224, %v1488
      %1523 = vst.msk [vmem:[#allocation2] sm:$0xff] %vm725, %v1491
      %1524 = vst.msk [vmem:[#allocation2 + $0x8] sm:$0xff] %vm725, %v1492
      %1525 = vst.msk [vmem:[#allocation2 + $0x10] sm:$0xff] %vm725, %v1493
      %1526 = vst.msk [vmem:[#allocation2 + $0x18] sm:$0xff] %vm725, %v1494
      %1527 = vst.msk [vmem:[#allocation2 + $0x20] sm:$0xff] %vm725, %v1495
      %1528 = vst.msk [vmem:[#allocation2 + $0x28] sm:$0xff] %vm725, %v1496
      %1529 = vst.msk [vmem:[#allocation2 + $0x30] sm:$0xff] %vm725, %v1497
      %1530 = vst.msk [vmem:[#allocation2 + $0x38] sm:$0xff] %vm725, %v1498
      %1531 = vst.msk [vmem:[#allocation2 + $0x40] sm:$0xff] %vm725, %v1499
      %1532 = vst.msk [vmem:[#allocation2 + $0x48] sm:$0xff] %vm725, %v1500
      %1533 = vst.msk [vmem:[#allocation2 + $0x50] sm:$0xff] %vm725, %v1501
      %1534 = vst.msk [vmem:[#allocation2 + $0x58] sm:$0xff] %vm725, %v1502
      %1535 = vst.msk [vmem:[#allocation2 + $0x60] sm:$0xff] %vm725, %v1503
      %1536 = vst.msk [vmem:[#allocation2 + $0x68] sm:$0xff] %vm725, %v1504
      %1537 = vst.msk [vmem:[#allocation2 + $0x70] sm:$0xff] %vm725, %v1505
      %1538 = vst.msk [vmem:[#allocation2 + $0x78] sm:$0xff] %vm725, %v1506
      %1539 = vst.msk [vmem:[#allocation2 + $0x80] sm:$0xff] %vm725, %v1507
      %1540 = vst.msk [vmem:[#allocation2 + $0x88] sm:$0xff] %vm725, %v1508
      %1541 = vst.msk [vmem:[#allocation2 + $0x90] sm:$0xff] %vm725, %v1509
      %1542 = vst.msk [vmem:[#allocation2 + $0x98] sm:$0xff] %vm725, %v1510
      %1543 = vst.msk [vmem:[#allocation2 + $0xa0] sm:$0xff] %vm725, %v1511
      %1544 = vst.msk [vmem:[#allocation2 + $0xa8] sm:$0xff] %vm725, %v1512
      %1545 = vst.msk [vmem:[#allocation2 + $0xb0] sm:$0xff] %vm725, %v1513
      %1546 = vst.msk [vmem:[#allocation2 + $0xb8] sm:$0xff] %vm725, %v1514
      %1547 = vst.msk [vmem:[#allocation2 + $0xc0] sm:$0xff] %vm725, %v1515
      %1548 = vst.msk [vmem:[#allocation2 + $0xc8] sm:$0xff] %vm725, %v1516
      %1549 = vst.msk [vmem:[#allocation2 + $0xd0] sm:$0xff] %vm725, %v1517
      %1550 = vst.msk [vmem:[#allocation2 + $0xd8] sm:$0xff] %vm725, %v1518
      %1551 = vst.msk [vmem:[#allocation2 + $0xe0] sm:$0xff] %vm725, %v1519
      %1552 = vst.msk [vmem:[#allocation2 + $0xe8] sm:$0xff] %vm725, %v1520
      %1553 = vst.msk [vmem:[#allocation2 + $0xf0] sm:$0xff] %vm725, %v1521
      %1554 = vst.msk [vmem:[#allocation2 + $0xf8] sm:$0xff] %vm725, %v1522
      %v1555 = vld [vmem:[%s265] sm:$0xe]
      %v1556 = vld [vmem:[%s265 + $0x4] sm:$0xf]
      %v1557 = vld [vmem:[%s265 + $0x8] sm:$0x1]
      %v1558 = vld [vmem:[%s265 + $0xc] sm:$0xe]
      %v1559 = vld [vmem:[%s265 + $0x10] sm:$0xf]
      %v1560 = vld [vmem:[%s265 + $0x14] sm:$0x1]
      %v1561 = vld [vmem:[%s265 + $0x18] sm:$0xe]
      %v1562 = vld [vmem:[%s265 + $0x1c] sm:$0xf]
      %v1563 = vld [vmem:[%s265 + $0x20] sm:$0x1]
      %v1564 = vld [vmem:[%s265 + $0x24] sm:$0xe]
      %v1565 = vld [vmem:[%s265 + $0x28] sm:$0xf]
      %v1566 = vld [vmem:[%s265 + $0x2c] sm:$0x1]
      %v1567 = vld [vmem:[%s265 + $0x30] sm:$0xe]
      %v1568 = vld [vmem:[%s265 + $0x34] sm:$0xf]
      %v1569 = vld [vmem:[%s265 + $0x38] sm:$0x1]
      %v1570 = vld [vmem:[%s265 + $0x3c] sm:$0xe]
      %v1571 = vld [vmem:[%s265 + $0x40] sm:$0xf]
      %v1572 = vld [vmem:[%s265 + $0x44] sm:$0x1]
      %v1573 = vld [vmem:[%s265 + $0x48] sm:$0xe]
      %v1574 = vld [vmem:[%s265 + $0x4c] sm:$0xf]
      %v1575 = vld [vmem:[%s265 + $0x50] sm:$0x1]
      %v1576 = vld [vmem:[%s265 + $0x54] sm:$0xe]
      %v1577 = vld [vmem:[%s265 + $0x58] sm:$0xf]
      %v1578 = vld [vmem:[%s265 + $0x5c] sm:$0x1]
      %v1579 = vld [vmem:[%s265 + $0x60] sm:$0xe]
      %v1580 = vld [vmem:[%s265 + $0x64] sm:$0xf]
      %v1581 = vld [vmem:[%s265 + $0x68] sm:$0x1]
      %v1582 = vld [vmem:[%s265 + $0x6c] sm:$0xe]
      %v1583 = vld [vmem:[%s265 + $0x70] sm:$0xf]
      %v1584 = vld [vmem:[%s265 + $0x74] sm:$0x1]
      %v1585 = vld [vmem:[%s265 + $0x78] sm:$0xe]
      %v1586 = vld [vmem:[%s265 + $0x7c] sm:$0xf]
      %v1587 = vld [vmem:[%s265 + $0x80] sm:$0x1]
      %v1588 = vld [vmem:[%s265 + $0x84] sm:$0xe]
      %v1589 = vld [vmem:[%s265 + $0x88] sm:$0xf]
      %v1590 = vld [vmem:[%s265 + $0x8c] sm:$0x1]
      %v1591 = vld [vmem:[%s265 + $0x90] sm:$0xe]
      %v1592 = vld [vmem:[%s265 + $0x94] sm:$0xf]
      %v1593 = vld [vmem:[%s265 + $0x98] sm:$0x1]
      %v1594 = vld [vmem:[%s265 + $0x9c] sm:$0xe]
      %v1595 = vld [vmem:[%s265 + $0xa0] sm:$0xf]
      %v1596 = vld [vmem:[%s265 + $0xa4] sm:$0x1]
      %v1597 = vld [vmem:[%s265 + $0xa8] sm:$0xe]
      %v1598 = vld [vmem:[%s265 + $0xac] sm:$0xf]
      %v1599 = vld [vmem:[%s265 + $0xb0] sm:$0x1]
      %v1600 = vld [vmem:[%s265 + $0xb4] sm:$0xe]
      %v1601 = vld [vmem:[%s265 + $0xb8] sm:$0xf]
      %v1602 = vld [vmem:[%s265 + $0xbc] sm:$0x1]
      %vm1651 = vcmask 1042432
      %vm1652 = vcmask 1046532
      %vm1653 = vmor %vm1651, %vm1652
      %v1654 = vrot.slane %v1555, 5
      %v1655 = vrot.slane %v1654, 4
      %v1656 = vrot.slane %v1556, 5
      %v1657 = vsel %vm1653, %v1655, %v1656
      %v1658 = vrot.slane %v1656, 4
      %v1659 = vrot.slane %v1557, 5
      %v1660 = vsel %vm1653, %v1658, %v1659
      %v1661 = vrot.slane %v1558, 5
      %v1662 = vrot.slane %v1661, 4
      %v1663 = vrot.slane %v1559, 5
      %v1664 = vsel %vm1653, %v1662, %v1663
      %v1665 = vrot.slane %v1663, 4
      %v1666 = vrot.slane %v1560, 5
      %v1667 = vsel %vm1653, %v1665, %v1666
      %v1668 = vrot.slane %v1561, 5
      %v1669 = vrot.slane %v1668, 4
      %v1670 = vrot.slane %v1562, 5
      %v1671 = vsel %vm1653, %v1669, %v1670
      %v1672 = vrot.slane %v1670, 4
      %v1673 = vrot.slane %v1563, 5
      %v1674 = vsel %vm1653, %v1672, %v1673
      %v1675 = vrot.slane %v1564, 5
      %v1676 = vrot.slane %v1675, 4
      %v1677 = vrot.slane %v1565, 5
      %v1678 = vsel %vm1653, %v1676, %v1677
      %v1679 = vrot.slane %v1677, 4
      %v1680 = vrot.slane %v1566, 5
      %v1681 = vsel %vm1653, %v1679, %v1680
      %v1682 = vrot.slane %v1567, 5
      %v1683 = vrot.slane %v1682, 4
      %v1684 = vrot.slane %v1568, 5
      %v1685 = vsel %vm1653, %v1683, %v1684
      %v1686 = vrot.slane %v1684, 4
      %v1687 = vrot.slane %v1569, 5
      %v1688 = vsel %vm1653, %v1686, %v1687
      %v1689 = vrot.slane %v1570, 5
      %v1690 = vrot.slane %v1689, 4
      %v1691 = vrot.slane %v1571, 5
      %v1692 = vsel %vm1653, %v1690, %v1691
      %v1693 = vrot.slane %v1691, 4
      %v1694 = vrot.slane %v1572, 5
      %v1695 = vsel %vm1653, %v1693, %v1694
      %v1696 = vrot.slane %v1573, 5
      %v1697 = vrot.slane %v1696, 4
      %v1698 = vrot.slane %v1574, 5
      %v1699 = vsel %vm1653, %v1697, %v1698
      %v1700 = vrot.slane %v1698, 4
      %v1701 = vrot.slane %v1575, 5
      %v1702 = vsel %vm1653, %v1700, %v1701
      %v1703 = vrot.slane %v1576, 5
      %v1704 = vrot.slane %v1703, 4
      %v1705 = vrot.slane %v1577, 5
      %v1706 = vsel %vm1653, %v1704, %v1705
      %v1707 = vrot.slane %v1705, 4
      %v1708 = vrot.slane %v1578, 5
      %v1709 = vsel %vm1653, %v1707, %v1708
      %v1710 = vrot.slane %v1579, 5
      %v1711 = vrot.slane %v1710, 4
      %v1712 = vrot.slane %v1580, 5
      %v1713 = vsel %vm1653, %v1711, %v1712
      %v1714 = vrot.slane %v1712, 4
      %v1715 = vrot.slane %v1581, 5
      %v1716 = vsel %vm1653, %v1714, %v1715
      %v1717 = vrot.slane %v1582, 5
      %v1718 = vrot.slane %v1717, 4
      %v1719 = vrot.slane %v1583, 5
      %v1720 = vsel %vm1653, %v1718, %v1719
      %v1721 = vrot.slane %v1719, 4
      %v1722 = vrot.slane %v1584, 5
      %v1723 = vsel %vm1653, %v1721, %v1722
      %v1724 = vrot.slane %v1585, 5
      %v1725 = vrot.slane %v1724, 4
      %v1726 = vrot.slane %v1586, 5
      %v1727 = vsel %vm1653, %v1725, %v1726
      %v1728 = vrot.slane %v1726, 4
      %v1729 = vrot.slane %v1587, 5
      %v1730 = vsel %vm1653, %v1728, %v1729
      %v1731 = vrot.slane %v1588, 5
      %v1732 = vrot.slane %v1731, 4
      %v1733 = vrot.slane %v1589, 5
      %v1734 = vsel %vm1653, %v1732, %v1733
      %v1735 = vrot.slane %v1733, 4
      %v1736 = vrot.slane %v1590, 5
      %v1737 = vsel %vm1653, %v1735, %v1736
      %v1738 = vrot.slane %v1591, 5
      %v1739 = vrot.slane %v1738, 4
      %v1740 = vrot.slane %v1592, 5
      %v1741 = vsel %vm1653, %v1739, %v1740
      %v1742 = vrot.slane %v1740, 4
      %v1743 = vrot.slane %v1593, 5
      %v1744 = vsel %vm1653, %v1742, %v1743
      %v1745 = vrot.slane %v1594, 5
      %v1746 = vrot.slane %v1745, 4
      %v1747 = vrot.slane %v1595, 5
      %v1748 = vsel %vm1653, %v1746, %v1747
      %v1749 = vrot.slane %v1747, 4
      %v1750 = vrot.slane %v1596, 5
      %v1751 = vsel %vm1653, %v1749, %v1750
      %v1752 = vrot.slane %v1597, 5
      %v1753 = vrot.slane %v1752, 4
      %v1754 = vrot.slane %v1598, 5
      %v1755 = vsel %vm1653, %v1753, %v1754
      %v1756 = vrot.slane %v1754, 4
      %v1757 = vrot.slane %v1599, 5
      %v1758 = vsel %vm1653, %v1756, %v1757
      %v1759 = vrot.slane %v1600, 5
      %v1760 = vrot.slane %v1759, 4
      %v1761 = vrot.slane %v1601, 5
      %v1762 = vsel %vm1653, %v1760, %v1761
      %v1763 = vrot.slane %v1761, 4
      %v1764 = vrot.slane %v1602, 5
      %v1765 = vsel %vm1653, %v1763, %v1764
      %v1766 = vld [vmem:[#allocation2] sm:$0xff]
      %v1767 = vld [vmem:[#allocation2 + $0x8] sm:$0xff]
      %v1768 = vld [vmem:[#allocation2 + $0x10] sm:$0xff]
      %v1769 = vld [vmem:[#allocation2 + $0x18] sm:$0xff]
      %v1770 = vld [vmem:[#allocation2 + $0x20] sm:$0xff]
      %v1771 = vld [vmem:[#allocation2 + $0x28] sm:$0xff]
      %v1772 = vld [vmem:[#allocation2 + $0x30] sm:$0xff]
      %v1773 = vld [vmem:[#allocation2 + $0x38] sm:$0xff]
      %v1774 = vld [vmem:[#allocation2 + $0x40] sm:$0xff]
      %v1775 = vld [vmem:[#allocation2 + $0x48] sm:$0xff]
      %v1776 = vld [vmem:[#allocation2 + $0x50] sm:$0xff]
      %v1777 = vld [vmem:[#allocation2 + $0x58] sm:$0xff]
      %v1778 = vld [vmem:[#allocation2 + $0x60] sm:$0xff]
      %v1779 = vld [vmem:[#allocation2 + $0x68] sm:$0xff]
      %v1780 = vld [vmem:[#allocation2 + $0x70] sm:$0xff]
      %v1781 = vld [vmem:[#allocation2 + $0x78] sm:$0xff]
      %v1782 = vld [vmem:[#allocation2 + $0x80] sm:$0xff]
      %v1783 = vld [vmem:[#allocation2 + $0x88] sm:$0xff]
      %v1784 = vld [vmem:[#allocation2 + $0x90] sm:$0xff]
      %v1785 = vld [vmem:[#allocation2 + $0x98] sm:$0xff]
      %v1786 = vld [vmem:[#allocation2 + $0xa0] sm:$0xff]
      %v1787 = vld [vmem:[#allocation2 + $0xa8] sm:$0xff]
      %v1788 = vld [vmem:[#allocation2 + $0xb0] sm:$0xff]
      %v1789 = vld [vmem:[#allocation2 + $0xb8] sm:$0xff]
      %v1790 = vld [vmem:[#allocation2 + $0xc0] sm:$0xff]
      %v1791 = vld [vmem:[#allocation2 + $0xc8] sm:$0xff]
      %v1792 = vld [vmem:[#allocation2 + $0xd0] sm:$0xff]
      %v1793 = vld [vmem:[#allocation2 + $0xd8] sm:$0xff]
      %v1794 = vld [vmem:[#allocation2 + $0xe0] sm:$0xff]
      %v1795 = vld [vmem:[#allocation2 + $0xe8] sm:$0xff]
      %v1796 = vld [vmem:[#allocation2 + $0xf0] sm:$0xff]
      %v1797 = vld [vmem:[#allocation2 + $0xf8] sm:$0xff]
      %s1798 = scalar_lea.vmem %s273, 16
      %v1799 = vld [vmem:[%s1798] sm:$0xf]
      %v1800 = vld [vmem:[%s1798 + $0x4] sm:$0xf]
      %v1801 = vunpack.c.l.b16 %v1657
      %v1802 = vunpack.c.l.b16 %v1660
      %v1803 = vunpack.c.l.b16 %v1664
      %v1804 = vunpack.c.l.b16 %v1667
      %v1805 = vunpack.c.l.b16 %v1671
      %v1806 = vunpack.c.l.b16 %v1674
      %v1807 = vunpack.c.l.b16 %v1678
      %v1808 = vunpack.c.l.b16 %v1681
      %v1809 = vunpack.c.l.b16 %v1685
      %v1810 = vunpack.c.l.b16 %v1688
      %v1811 = vunpack.c.l.b16 %v1692
      %v1812 = vunpack.c.l.b16 %v1695
      %v1813 = vunpack.c.l.b16 %v1699
      %v1814 = vunpack.c.l.b16 %v1702
      %v1815 = vunpack.c.l.b16 %v1706
      %v1816 = vunpack.c.l.b16 %v1709
      %v1817 = vunpack.c.l.b16 %v1713
      %v1818 = vunpack.c.l.b16 %v1716
      %v1819 = vunpack.c.l.b16 %v1720
      %v1820 = vunpack.c.l.b16 %v1723
      %v1821 = vunpack.c.l.b16 %v1727
      %v1822 = vunpack.c.l.b16 %v1730
      %v1823 = vunpack.c.l.b16 %v1734
      %v1824 = vunpack.c.l.b16 %v1737
      %v1825 = vunpack.c.l.b16 %v1741
      %v1826 = vunpack.c.l.b16 %v1744
      %v1827 = vunpack.c.l.b16 %v1748
      %v1828 = vunpack.c.l.b16 %v1751
      %v1829 = vunpack.c.l.b16 %v1755
      %v1830 = vunpack.c.l.b16 %v1758
      %v1831 = vunpack.c.l.b16 %v1762
      %v1832 = vunpack.c.l.b16 %v1765
      %v1833 = vpack.c.b16 %v1802, %v1801
      %v1834 = vpack.c.b16 %v1804, %v1803
      %v1835 = vpack.c.b16 %v1806, %v1805
      %v1836 = vpack.c.b16 %v1808, %v1807
      %v1837 = vpack.c.b16 %v1810, %v1809
      %v1838 = vpack.c.b16 %v1812, %v1811
      %v1839 = vpack.c.b16 %v1814, %v1813
      %v1840 = vpack.c.b16 %v1816, %v1815
      %v1841 = vpack.c.b16 %v1818, %v1817
      %v1842 = vpack.c.b16 %v1820, %v1819
      %v1843 = vpack.c.b16 %v1822, %v1821
      %v1844 = vpack.c.b16 %v1824, %v1823
      %v1845 = vpack.c.b16 %v1826, %v1825
      %v1846 = vpack.c.b16 %v1828, %v1827
      %v1847 = vpack.c.b16 %v1830, %v1829
      %v1848 = vpack.c.b16 %v1832, %v1831
      %v1851 = vunpack.c.l.b16 %v1799
      %v1852 = vunpack.c.l.b16 %v1800
      %v1853 = vpack.c.b16 %v1852, %v1851
      %v1856 = vsel %vm483, %v1833, 0
      %v1859 = vsel %vm483, %v1834, 0
      %v1862 = vsel %vm483, %v1835, 0
      %v1865 = vsel %vm483, %v1836, 0
      %v1868 = vsel %vm483, %v1837, 0
      %v1871 = vsel %vm483, %v1838, 0
      %v1874 = vsel %vm483, %v1839, 0
      %v1877 = vsel %vm483, %v1840, 0
      %v1880 = vsel %vm483, %v1841, 0
      %v1883 = vsel %vm483, %v1842, 0
      %v1886 = vsel %vm483, %v1843, 0
      %v1889 = vsel %vm483, %v1844, 0
      %v1892 = vsel %vm483, %v1845, 0
      %v1895 = vsel %vm483, %v1846, 0
      %v1898 = vsel %vm483, %v1847, 0
      %v1901 = vsel %vm483, %v1848, 0
      %1903 = vmatprep.subr.bf16.mxu0 0
      %1904 = vmatpush1.bf16.msra.mxu0 %v1853
      %1905 = vmatprep.subr.bf16.mxu0 0
      %1906 = vmatpush1.bf16.msra.mxu0 0
      %1907 = vmatprep.subr.bf16.mxu0 0
      %1908 = vmatpush1.bf16.msra.mxu0 0
      %1909 = vmatprep.subr.bf16.mxu0 0
      %1910 = vmatpush1.bf16.msra.mxu0 0
      %1911 = vmatprep.subr.bf16.mxu0 0
      %1912 = vmatpush1.bf16.msra.mxu0 0
      %1913 = vmatprep.subr.bf16.mxu0 0
      %1914 = vmatpush1.bf16.msra.mxu0 0
      %1915 = vmatprep.subr.bf16.mxu0 0
      %1916 = vmatpush1.bf16.msra.mxu0 0
      %1917 = vmatprep.subr.bf16.mxu0 0
      %1918 = vmatpush1.bf16.msra.mxu0 0
      %1919 = vmatprep.subr.bf16.mxu0 0
      %1920 = vmatpush1.bf16.msra.mxu0 0
      %1921 = vmatprep.subr.bf16.mxu0 0
      %1922 = vmatpush1.bf16.msra.mxu0 0
      %1923 = vmatprep.subr.bf16.mxu0 0
      %1924 = vmatpush1.bf16.msra.mxu0 0
      %1925 = vmatprep.subr.bf16.mxu0 0
      %1926 = vmatpush1.bf16.msra.mxu0 0
      %1927 = vmatprep.subr.bf16.mxu0 0
      %1928 = vmatpush1.bf16.msra.mxu0 0
      %1929 = vmatprep.subr.bf16.mxu0 0
      %1930 = vmatpush1.bf16.msra.mxu0 0
      %1931 = vmatprep.subr.bf16.mxu0 0
      %1932 = vmatpush1.bf16.msra.mxu0 0
      %1933 = vmatprep.subr.bf16.mxu0 0
      %1934 = vmatpush1.bf16.msra.mxu0 0
      %1935 = vmatprep.mubr.bf16.mxu0 0
      %1936 = vmatmul.mubr.bf16.gmra.mrb[0].mxu0 %v1856
      %v1937 = vpop.f32.mrb[0].mxu0
      %v1938 = vadd.f32 0.0, %v1937
      %v1939 = vpop.f32.mrb[0].mxu0
      %v1940 = vpop.f32.mrb[0].mxu0
      %v1941 = vadd.f32 0.0, %v1940
      %v1942 = vpop.f32.mrb[0].mxu0
      %1943 = vmatprep.mubr.bf16.mxu0 0
      %1944 = vmatmul.mubr.bf16.gmra.mrb[0].mxu0 %v1859
      %v1945 = vpop.f32.mrb[0].mxu0
      %v1946 = vadd.f32 0.0, %v1945
      %v1947 = vpop.f32.mrb[0].mxu0
      %v1948 = vpop.f32.mrb[0].mxu0
      %v1949 = vadd.f32 0.0, %v1948
      %v1950 = vpop.f32.mrb[0].mxu0
      %1951 = vmatprep.mubr.bf16.mxu0 0
      %1952 = vmatmul.mubr.bf16.gmra.mrb[0].mxu0 %v1862
      %v1953 = vpop.f32.mrb[0].mxu0
      %v1954 = vadd.f32 0.0, %v1953
      %v1955 = vpop.f32.mrb[0].mxu0
      %v1956 = vpop.f32.mrb[0].mxu0
      %v1957 = vadd.f32 0.0, %v1956
      %v1958 = vpop.f32.mrb[0].mxu0
      %1959 = vmatprep.mubr.bf16.mxu0 0
      %1960 = vmatmul.mubr.bf16.gmra.mrb[0].mxu0 %v1865
      %v1961 = vpop.f32.mrb[0].mxu0
      %v1962 = vadd.f32 0.0, %v1961
      %v1963 = vpop.f32.mrb[0].mxu0
      %v1964 = vpop.f32.mrb[0].mxu0
      %v1965 = vadd.f32 0.0, %v1964
      %v1966 = vpop.f32.mrb[0].mxu0
      %1967 = vmatprep.mubr.bf16.mxu0 0
      %1968 = vmatmul.mubr.bf16.gmra.mrb[0].mxu0 %v1868
      %v1969 = vpop.f32.mrb[0].mxu0
      %v1970 = vadd.f32 0.0, %v1969
      %v1971 = vpop.f32.mrb[0].mxu0
      %v1972 = vpop.f32.mrb[0].mxu0
      %v1973 = vadd.f32 0.0, %v1972
      %v1974 = vpop.f32.mrb[0].mxu0
      %1975 = vmatprep.mubr.bf16.mxu0 0
      %1976 = vmatmul.mubr.bf16.gmra.mrb[0].mxu0 %v1871
      %v1977 = vpop.f32.mrb[0].mxu0
      %v1978 = vadd.f32 0.0, %v1977
      %v1979 = vpop.f32.mrb[0].mxu0
      %v1980 = vpop.f32.mrb[0].mxu0
      %v1981 = vadd.f32 0.0, %v1980
      %v1982 = vpop.f32.mrb[0].mxu0
      %1983 = vmatprep.mubr.bf16.mxu0 0
      %1984 = vmatmul.mubr.bf16.gmra.mrb[0].mxu0 %v1874
      %v1985 = vpop.f32.mrb[0].mxu0
      %v1986 = vadd.f32 0.0, %v1985
      %v1987 = vpop.f32.mrb[0].mxu0
      %v1988 = vpop.f32.mrb[0].mxu0
      %v1989 = vadd.f32 0.0, %v1988
      %v1990 = vpop.f32.mrb[0].mxu0
      %1991 = vmatprep.mubr.bf16.mxu0 0
      %1992 = vmatmul.mubr.bf16.gmra.mrb[0].mxu0 %v1877
      %v1993 = vpop.f32.mrb[0].mxu0
      %v1994 = vadd.f32 0.0, %v1993
      %v1995 = vpop.f32.mrb[0].mxu0
      %v1996 = vpop.f32.mrb[0].mxu0
      %v1997 = vadd.f32 0.0, %v1996
      %v1998 = vpop.f32.mrb[0].mxu0
      %1999 = vmatprep.mubr.bf16.mxu0 0
      %2000 = vmatmul.mubr.bf16.gmra.mrb[0].mxu0 %v1880
      %v2001 = vpop.f32.mrb[0].mxu0
      %v2002 = vadd.f32 0.0, %v2001
      %v2003 = vpop.f32.mrb[0].mxu0
      %v2004 = vpop.f32.mrb[0].mxu0
      %v2005 = vadd.f32 0.0, %v2004
      %v2006 = vpop.f32.mrb[0].mxu0
      %2007 = vmatprep.mubr.bf16.mxu0 0
      %2008 = vmatmul.mubr.bf16.gmra.mrb[0].mxu0 %v1883
      %v2009 = vpop.f32.mrb[0].mxu0
      %v2010 = vadd.f32 0.0, %v2009
      %v2011 = vpop.f32.mrb[0].mxu0
      %v2012 = vpop.f32.mrb[0].mxu0
      %v2013 = vadd.f32 0.0, %v2012
      %v2014 = vpop.f32.mrb[0].mxu0
      %2015 = vmatprep.mubr.bf16.mxu0 0
      %2016 = vmatmul.mubr.bf16.gmra.mrb[0].mxu0 %v1886
      %v2017 = vpop.f32.mrb[0].mxu0
      %v2018 = vadd.f32 0.0, %v2017
      %v2019 = vpop.f32.mrb[0].mxu0
      %v2020 = vpop.f32.mrb[0].mxu0
      %v2021 = vadd.f32 0.0, %v2020
      %v2022 = vpop.f32.mrb[0].mxu0
      %2023 = vmatprep.mubr.bf16.mxu0 0
      %2024 = vmatmul.mubr.bf16.gmra.mrb[0].mxu0 %v1889
      %v2025 = vpop.f32.mrb[0].mxu0
      %v2026 = vadd.f32 0.0, %v2025
      %v2027 = vpop.f32.mrb[0].mxu0
      %v2028 = vpop.f32.mrb[0].mxu0
      %v2029 = vadd.f32 0.0, %v2028
      %v2030 = vpop.f32.mrb[0].mxu0
      %2031 = vmatprep.mubr.bf16.mxu0 0
      %2032 = vmatmul.mubr.bf16.gmra.mrb[0].mxu0 %v1892
      %v2033 = vpop.f32.mrb[0].mxu0
      %v2034 = vadd.f32 0.0, %v2033
      %v2035 = vpop.f32.mrb[0].mxu0
      %v2036 = vpop.f32.mrb[0].mxu0
      %v2037 = vadd.f32 0.0, %v2036
      %v2038 = vpop.f32.mrb[0].mxu0
      %2039 = vmatprep.mubr.bf16.mxu0 0
      %2040 = vmatmul.mubr.bf16.gmra.mrb[0].mxu0 %v1895
      %v2041 = vpop.f32.mrb[0].mxu0
      %v2042 = vadd.f32 0.0, %v2041
      %v2043 = vpop.f32.mrb[0].mxu0
      %v2044 = vpop.f32.mrb[0].mxu0
      %v2045 = vadd.f32 0.0, %v2044
      %v2046 = vpop.f32.mrb[0].mxu0
      %2047 = vmatprep.mubr.bf16.mxu0 0
      %2048 = vmatmul.mubr.bf16.gmra.mrb[0].mxu0 %v1898
      %v2049 = vpop.f32.mrb[0].mxu0
      %v2050 = vadd.f32 0.0, %v2049
      %v2051 = vpop.f32.mrb[0].mxu0
      %v2052 = vpop.f32.mrb[0].mxu0
      %v2053 = vadd.f32 0.0, %v2052
      %v2054 = vpop.f32.mrb[0].mxu0
      %2055 = vmatprep.mubr.bf16.mxu0 0
      %2056 = vmatmul.mubr.bf16.gmra.mrb[0].mxu0 %v1901
      %v2057 = vpop.f32.mrb[0].mxu0
      %v2058 = vadd.f32 0.0, %v2057
      %v2059 = vpop.f32.mrb[0].mxu0
      %v2060 = vpop.f32.mrb[0].mxu0
      %v2061 = vadd.f32 0.0, %v2060
      %v2062 = vpop.f32.mrb[0].mxu0
      %2063 = vdwg.mxu0
      %v2064 = vadd.f32 %v1766, %v1938
      %v2065 = vadd.f32 %v1767, %v1941
      %v2066 = vadd.f32 %v1768, %v1946
      %v2067 = vadd.f32 %v1769, %v1949
      %v2068 = vadd.f32 %v1770, %v1954
      %v2069 = vadd.f32 %v1771, %v1957
      %v2070 = vadd.f32 %v1772, %v1962
      %v2071 = vadd.f32 %v1773, %v1965
      %v2072 = vadd.f32 %v1774, %v1970
      %v2073 = vadd.f32 %v1775, %v1973
      %v2074 = vadd.f32 %v1776, %v1978
      %v2075 = vadd.f32 %v1777, %v1981
      %v2076 = vadd.f32 %v1778, %v1986
      %v2077 = vadd.f32 %v1779, %v1989
      %v2078 = vadd.f32 %v1780, %v1994
      %v2079 = vadd.f32 %v1781, %v1997
      %v2080 = vadd.f32 %v1782, %v2002
      %v2081 = vadd.f32 %v1783, %v2005
      %v2082 = vadd.f32 %v1784, %v2010
      %v2083 = vadd.f32 %v1785, %v2013
      %v2084 = vadd.f32 %v1786, %v2018
      %v2085 = vadd.f32 %v1787, %v2021
      %v2086 = vadd.f32 %v1788, %v2026
      %v2087 = vadd.f32 %v1789, %v2029
      %v2088 = vadd.f32 %v1790, %v2034
      %v2089 = vadd.f32 %v1791, %v2037
      %v2090 = vadd.f32 %v1792, %v2042
      %v2091 = vadd.f32 %v1793, %v2045
      %v2092 = vadd.f32 %v1794, %v2050
      %v2093 = vadd.f32 %v1795, %v2053
      %v2094 = vadd.f32 %v1796, %v2058
      %v2095 = vadd.f32 %v1797, %v2061
      %2096 = vst.msk [vmem:[#allocation2] sm:$0xff] %vm725, %v2064
      %2097 = vst.msk [vmem:[#allocation2 + $0x8] sm:$0xff] %vm725, %v2065
      %2098 = vst.msk [vmem:[#allocation2 + $0x10] sm:$0xff] %vm725, %v2066
      %2099 = vst.msk [vmem:[#allocation2 + $0x18] sm:$0xff] %vm725, %v2067
      %2100 = vst.msk [vmem:[#allocation2 + $0x20] sm:$0xff] %vm725, %v2068
      %2101 = vst.msk [vmem:[#allocation2 + $0x28] sm:$0xff] %vm725, %v2069
      %2102 = vst.msk [vmem:[#allocation2 + $0x30] sm:$0xff] %vm725, %v2070
      %2103 = vst.msk [vmem:[#allocation2 + $0x38] sm:$0xff] %vm725, %v2071
      %2104 = vst.msk [vmem:[#allocation2 + $0x40] sm:$0xff] %vm725, %v2072
      %2105 = vst.msk [vmem:[#allocation2 + $0x48] sm:$0xff] %vm725, %v2073
      %2106 = vst.msk [vmem:[#allocation2 + $0x50] sm:$0xff] %vm725, %v2074
      %2107 = vst.msk [vmem:[#allocation2 + $0x58] sm:$0xff] %vm725, %v2075
      %2108 = vst.msk [vmem:[#allocation2 + $0x60] sm:$0xff] %vm725, %v2076
      %2109 = vst.msk [vmem:[#allocation2 + $0x68] sm:$0xff] %vm725, %v2077
      %2110 = vst.msk [vmem:[#allocation2 + $0x70] sm:$0xff] %vm725, %v2078
      %2111 = vst.msk [vmem:[#allocation2 + $0x78] sm:$0xff] %vm725, %v2079
      %2112 = vst.msk [vmem:[#allocation2 + $0x80] sm:$0xff] %vm725, %v2080
      %2113 = vst.msk [vmem:[#allocation2 + $0x88] sm:$0xff] %vm725, %v2081
      %2114 = vst.msk [vmem:[#allocation2 + $0x90] sm:$0xff] %vm725, %v2082
      %2115 = vst.msk [vmem:[#allocation2 + $0x98] sm:$0xff] %vm725, %v2083
      %2116 = vst.msk [vmem:[#allocation2 + $0xa0] sm:$0xff] %vm725, %v2084
      %2117 = vst.msk [vmem:[#allocation2 + $0xa8] sm:$0xff] %vm725, %v2085
      %2118 = vst.msk [vmem:[#allocation2 + $0xb0] sm:$0xff] %vm725, %v2086
      %2119 = vst.msk [vmem:[#allocation2 + $0xb8] sm:$0xff] %vm725, %v2087
      %2120 = vst.msk [vmem:[#allocation2 + $0xc0] sm:$0xff] %vm725, %v2088
      %2121 = vst.msk [vmem:[#allocation2 + $0xc8] sm:$0xff] %vm725, %v2089
      %2122 = vst.msk [vmem:[#allocation2 + $0xd0] sm:$0xff] %vm725, %v2090
      %2123 = vst.msk [vmem:[#allocation2 + $0xd8] sm:$0xff] %vm725, %v2091
      %2124 = vst.msk [vmem:[#allocation2 + $0xe0] sm:$0xff] %vm725, %v2092
      %2125 = vst.msk [vmem:[#allocation2 + $0xe8] sm:$0xff] %vm725, %v2093
      %2126 = vst.msk [vmem:[#allocation2 + $0xf0] sm:$0xff] %vm725, %v2094
      %2127 = vst.msk [vmem:[#allocation2 + $0xf8] sm:$0xff] %vm725, %v2095
      %s2128 = scalar_lea.vmem %s265, 12
      %v2129 = vld [vmem:[%s2128] sm:$0xf]
      %v2130 = vld [vmem:[%s2128 + $0x4] sm:$0xf]
      %v2131 = vld [vmem:[%s2128 + $0xc] sm:$0xf]
      %v2132 = vld [vmem:[%s2128 + $0x10] sm:$0xf]
      %v2133 = vld [vmem:[%s2128 + $0x18] sm:$0xf]
      %v2134 = vld [vmem:[%s2128 + $0x1c] sm:$0xf]
      %v2135 = vld [vmem:[%s2128 + $0x24] sm:$0xf]
      %v2136 = vld [vmem:[%s2128 + $0x28] sm:$0xf]
      %v2137 = vld [vmem:[%s2128 + $0x30] sm:$0xf]
      %v2138 = vld [vmem:[%s2128 + $0x34] sm:$0xf]
      %v2139 = vld [vmem:[%s2128 + $0x3c] sm:$0xf]
      %v2140 = vld [vmem:[%s2128 + $0x40] sm:$0xf]
      %v2141 = vld [vmem:[%s2128 + $0x48] sm:$0xf]
      %v2142 = vld [vmem:[%s2128 + $0x4c] sm:$0xf]
      %v2143 = vld [vmem:[%s2128 + $0x54] sm:$0xf]
      %v2144 = vld [vmem:[%s2128 + $0x58] sm:$0xf]
      %v2145 = vld [vmem:[%s2128 + $0x60] sm:$0xf]
      %v2146 = vld [vmem:[%s2128 + $0x64] sm:$0xf]
      %v2147 = vld [vmem:[%s2128 + $0x6c] sm:$0xf]
      %v2148 = vld [vmem:[%s2128 + $0x70] sm:$0xf]
      %v2149 = vld [vmem:[%s2128 + $0x78] sm:$0xf]
      %v2150 = vld [vmem:[%s2128 + $0x7c] sm:$0xf]
      %v2151 = vld [vmem:[%s2128 + $0x84] sm:$0xf]
      %v2152 = vld [vmem:[%s2128 + $0x88] sm:$0xf]
      %v2153 = vld [vmem:[%s2128 + $0x90] sm:$0xf]
      %v2154 = vld [vmem:[%s2128 + $0x94] sm:$0xf]
      %v2155 = vld [vmem:[%s2128 + $0x9c] sm:$0xf]
      %v2156 = vld [vmem:[%s2128 + $0xa0] sm:$0xf]
      %v2157 = vld [vmem:[%s2128 + $0xa8] sm:$0xf]
      %v2158 = vld [vmem:[%s2128 + $0xac] sm:$0xf]
      %v2159 = vld [vmem:[%s2128 + $0xb4] sm:$0xf]
      %v2160 = vld [vmem:[%s2128 + $0xb8] sm:$0xf]
      %v2161 = vld [vmem:[#allocation2] sm:$0xff]
      %v2162 = vld [vmem:[#allocation2 + $0x8] sm:$0xff]
      %v2163 = vld [vmem:[#allocation2 + $0x10] sm:$0xff]
      %v2164 = vld [vmem:[#allocation2 + $0x18] sm:$0xff]
      %v2165 = vld [vmem:[#allocation2 + $0x20] sm:$0xff]
      %v2166 = vld [vmem:[#allocation2 + $0x28] sm:$0xff]
      %v2167 = vld [vmem:[#allocation2 + $0x30] sm:$0xff]
      %v2168 = vld [vmem:[#allocation2 + $0x38] sm:$0xff]
      %v2169 = vld [vmem:[#allocation2 + $0x40] sm:$0xff]
      %v2170 = vld [vmem:[#allocation2 + $0x48] sm:$0xff]
      %v2171 = vld [vmem:[#allocation2 + $0x50] sm:$0xff]
      %v2172 = vld [vmem:[#allocation2 + $0x58] sm:$0xff]
      %v2173 = vld [vmem:[#allocation2 + $0x60] sm:$0xff]
      %v2174 = vld [vmem:[#allocation2 + $0x68] sm:$0xff]
      %v2175 = vld [vmem:[#allocation2 + $0x70] sm:$0xff]
      %v2176 = vld [vmem:[#allocation2 + $0x78] sm:$0xff]
      %v2177 = vld [vmem:[#allocation2 + $0x80] sm:$0xff]
      %v2178 = vld [vmem:[#allocation2 + $0x88] sm:$0xff]
      %v2179 = vld [vmem:[#allocation2 + $0x90] sm:$0xff]
      %v2180 = vld [vmem:[#allocation2 + $0x98] sm:$0xff]
      %v2181 = vld [vmem:[#allocation2 + $0xa0] sm:$0xff]
      %v2182 = vld [vmem:[#allocation2 + $0xa8] sm:$0xff]
      %v2183 = vld [vmem:[#allocation2 + $0xb0] sm:$0xff]
      %v2184 = vld [vmem:[#allocation2 + $0xb8] sm:$0xff]
      %v2185 = vld [vmem:[#allocation2 + $0xc0] sm:$0xff]
      %v2186 = vld [vmem:[#allocation2 + $0xc8] sm:$0xff]
      %v2187 = vld [vmem:[#allocation2 + $0xd0] sm:$0xff]
      %v2188 = vld [vmem:[#allocation2 + $0xd8] sm:$0xff]
      %v2189 = vld [vmem:[#allocation2 + $0xe0] sm:$0xff]
      %v2190 = vld [vmem:[#allocation2 + $0xe8] sm:$0xff]
      %v2191 = vld [vmem:[#allocation2 + $0xf0] sm:$0xff]
      %v2192 = vld [vmem:[#allocation2 + $0xf8] sm:$0xff]
      %s2193 = scalar_lea.vmem %s273, 24
      %v2194 = vld [vmem:[%s2193] sm:$0xf]
      %v2195 = vld [vmem:[%s2193 + $0x4] sm:$0xf]
      %v2228 = vunpack.c.l.b16 %v2129
      %v2229 = vunpack.c.l.b16 %v2130
      %v2230 = vunpack.c.l.b16 %v2131
      %v2231 = vunpack.c.l.b16 %v2132
      %v2232 = vunpack.c.l.b16 %v2133
      %v2233 = vunpack.c.l.b16 %v2134
      %v2234 = vunpack.c.l.b16 %v2135
      %v2235 = vunpack.c.l.b16 %v2136
      %v2236 = vunpack.c.l.b16 %v2137
      %v2237 = vunpack.c.l.b16 %v2138
      %v2238 = vunpack.c.l.b16 %v2139
      %v2239 = vunpack.c.l.b16 %v2140
      %v2240 = vunpack.c.l.b16 %v2141
      %v2241 = vunpack.c.l.b16 %v2142
      %v2242 = vunpack.c.l.b16 %v2143
      %v2243 = vunpack.c.l.b16 %v2144
      %v2244 = vunpack.c.l.b16 %v2145
      %v2245 = vunpack.c.l.b16 %v2146
      %v2246 = vunpack.c.l.b16 %v2147
      %v2247 = vunpack.c.l.b16 %v2148
      %v2248 = vunpack.c.l.b16 %v2149
      %v2249 = vunpack.c.l.b16 %v2150
      %v2250 = vunpack.c.l.b16 %v2151
      %v2251 = vunpack.c.l.b16 %v2152
      %v2252 = vunpack.c.l.b16 %v2153
      %v2253 = vunpack.c.l.b16 %v2154
      %v2254 = vunpack.c.l.b16 %v2155
      %v2255 = vunpack.c.l.b16 %v2156
      %v2256 = vunpack.c.l.b16 %v2157
      %v2257 = vunpack.c.l.b16 %v2158
      %v2258 = vunpack.c.l.b16 %v2159
      %v2259 = vunpack.c.l.b16 %v2160
      %v2260 = vpack.c.b16 %v2229, %v2228
      %v2261 = vpack.c.b16 %v2231, %v2230
      %v2262 = vpack.c.b16 %v2233, %v2232
      %v2263 = vpack.c.b16 %v2235, %v2234
      %v2264 = vpack.c.b16 %v2237, %v2236
      %v2265 = vpack.c.b16 %v2239, %v2238
      %v2266 = vpack.c.b16 %v2241, %v2240
      %v2267 = vpack.c.b16 %v2243, %v2242
      %v2268 = vpack.c.b16 %v2245, %v2244
      %v2269 = vpack.c.b16 %v2247, %v2246
      %v2270 = vpack.c.b16 %v2249, %v2248
      %v2271 = vpack.c.b16 %v2251, %v2250
      %v2272 = vpack.c.b16 %v2253, %v2252
      %v2273 = vpack.c.b16 %v2255, %v2254
      %v2274 = vpack.c.b16 %v2257, %v2256
      %v2275 = vpack.c.b16 %v2259, %v2258
      %v2278 = vunpack.c.l.b16 %v2194
      %v2279 = vunpack.c.l.b16 %v2195
      %v2280 = vpack.c.b16 %v2279, %v2278
      %v2283 = vsel %vm483, %v2260, 0
      %v2286 = vsel %vm483, %v2261, 0
      %v2289 = vsel %vm483, %v2262, 0
      %v2292 = vsel %vm483, %v2263, 0
      %v2295 = vsel %vm483, %v2264, 0
      %v2298 = vsel %vm483, %v2265, 0
      %v2301 = vsel %vm483, %v2266, 0
      %v2304 = vsel %vm483, %v2267, 0
      %v2307 = vsel %vm483, %v2268, 0
      %v2310 = vsel %vm483, %v2269, 0
      %v2313 = vsel %vm483, %v2270, 0
      %v2316 = vsel %vm483, %v2271, 0
      %v2319 = vsel %vm483, %v2272, 0
      %v2322 = vsel %vm483, %v2273, 0
      %v2325 = vsel %vm483, %v2274, 0
      %v2328 = vsel %vm483, %v2275, 0
      %2330 = vmatprep.subr.bf16.mxu0 0
      %2331 = vmatpush1.bf16.msra.mxu0 %v2280
      %2332 = vmatprep.subr.bf16.mxu0 0
      %2333 = vmatpush1.bf16.msra.mxu0 0
      %2334 = vmatprep.subr.bf16.mxu0 0
      %2335 = vmatpush1.bf16.msra.mxu0 0
      %2336 = vmatprep.subr.bf16.mxu0 0
      %2337 = vmatpush1.bf16.msra.mxu0 0
      %2338 = vmatprep.subr.bf16.mxu0 0
      %2339 = vmatpush1.bf16.msra.mxu0 0
      %2340 = vmatprep.subr.bf16.mxu0 0
      %2341 = vmatpush1.bf16.msra.mxu0 0
      %2342 = vmatprep.subr.bf16.mxu0 0
      %2343 = vmatpush1.bf16.msra.mxu0 0
      %2344 = vmatprep.subr.bf16.mxu0 0
      %2345 = vmatpush1.bf16.msra.mxu0 0
      %2346 = vmatprep.subr.bf16.mxu0 0
      %2347 = vmatpush1.bf16.msra.mxu0 0
      %2348 = vmatprep.subr.bf16.mxu0 0
      %2349 = vmatpush1.bf16.msra.mxu0 0
      %2350 = vmatprep.subr.bf16.mxu0 0
      %2351 = vmatpush1.bf16.msra.mxu0 0
      %2352 = vmatprep.subr.bf16.mxu0 0
      %2353 = vmatpush1.bf16.msra.mxu0 0
      %2354 = vmatprep.subr.bf16.mxu0 0
      %2355 = vmatpush1.bf16.msra.mxu0 0
      %2356 = vmatprep.subr.bf16.mxu0 0
      %2357 = vmatpush1.bf16.msra.mxu0 0
      %2358 = vmatprep.subr.bf16.mxu0 0
      %2359 = vmatpush1.bf16.msra.mxu0 0
      %2360 = vmatprep.subr.bf16.mxu0 0
      %2361 = vmatpush1.bf16.msra.mxu0 0
      %2362 = vmatprep.mubr.bf16.mxu0 0
      %2363 = vmatmul.mubr.bf16.gmra.mrb[0].mxu0 %v2283
      %v2364 = vpop.f32.mrb[0].mxu0
      %v2365 = vadd.f32 0.0, %v2364
      %v2366 = vpop.f32.mrb[0].mxu0
      %v2367 = vpop.f32.mrb[0].mxu0
      %v2368 = vadd.f32 0.0, %v2367
      %v2369 = vpop.f32.mrb[0].mxu0
      %2370 = vmatprep.mubr.bf16.mxu0 0
      %2371 = vmatmul.mubr.bf16.gmra.mrb[0].mxu0 %v2286
      %v2372 = vpop.f32.mrb[0].mxu0
      %v2373 = vadd.f32 0.0, %v2372
      %v2374 = vpop.f32.mrb[0].mxu0
      %v2375 = vpop.f32.mrb[0].mxu0
      %v2376 = vadd.f32 0.0, %v2375
      %v2377 = vpop.f32.mrb[0].mxu0
      %2378 = vmatprep.mubr.bf16.mxu0 0
      %2379 = vmatmul.mubr.bf16.gmra.mrb[0].mxu0 %v2289
      %v2380 = vpop.f32.mrb[0].mxu0
      %v2381 = vadd.f32 0.0, %v2380
      %v2382 = vpop.f32.mrb[0].mxu0
      %v2383 = vpop.f32.mrb[0].mxu0
      %v2384 = vadd.f32 0.0, %v2383
      %v2385 = vpop.f32.mrb[0].mxu0
      %2386 = vmatprep.mubr.bf16.mxu0 0
      %2387 = vmatmul.mubr.bf16.gmra.mrb[0].mxu0 %v2292
      %v2388 = vpop.f32.mrb[0].mxu0
      %v2389 = vadd.f32 0.0, %v2388
      %v2390 = vpop.f32.mrb[0].mxu0
      %v2391 = vpop.f32.mrb[0].mxu0
      %v2392 = vadd.f32 0.0, %v2391
      %v2393 = vpop.f32.mrb[0].mxu0
      %2394 = vmatprep.mubr.bf16.mxu0 0
      %2395 = vmatmul.mubr.bf16.gmra.mrb[0].mxu0 %v2295
      %v2396 = vpop.f32.mrb[0].mxu0
      %v2397 = vadd.f32 0.0, %v2396
      %v2398 = vpop.f32.mrb[0].mxu0
      %v2399 = vpop.f32.mrb[0].mxu0
      %v2400 = vadd.f32 0.0, %v2399
      %v2401 = vpop.f32.mrb[0].mxu0
      %2402 = vmatprep.mubr.bf16.mxu0 0
      %2403 = vmatmul.mubr.bf16.gmra.mrb[0].mxu0 %v2298
      %v2404 = vpop.f32.mrb[0].mxu0
      %v2405 = vadd.f32 0.0, %v2404
      %v2406 = vpop.f32.mrb[0].mxu0
      %v2407 = vpop.f32.mrb[0].mxu0
      %v2408 = vadd.f32 0.0, %v2407
      %v2409 = vpop.f32.mrb[0].mxu0
      %2410 = vmatprep.mubr.bf16.mxu0 0
      %2411 = vmatmul.mubr.bf16.gmra.mrb[0].mxu0 %v2301
      %v2412 = vpop.f32.mrb[0].mxu0
      %v2413 = vadd.f32 0.0, %v2412
      %v2414 = vpop.f32.mrb[0].mxu0
      %v2415 = vpop.f32.mrb[0].mxu0
      %v2416 = vadd.f32 0.0, %v2415
      %v2417 = vpop.f32.mrb[0].mxu0
      %2418 = vmatprep.mubr.bf16.mxu0 0
      %2419 = vmatmul.mubr.bf16.gmra.mrb[0].mxu0 %v2304
      %v2420 = vpop.f32.mrb[0].mxu0
      %v2421 = vadd.f32 0.0, %v2420
      %v2422 = vpop.f32.mrb[0].mxu0
      %v2423 = vpop.f32.mrb[0].mxu0
      %v2424 = vadd.f32 0.0, %v2423
      %v2425 = vpop.f32.mrb[0].mxu0
      %2426 = vmatprep.mubr.bf16.mxu0 0
      %2427 = vmatmul.mubr.bf16.gmra.mrb[0].mxu0 %v2307
      %v2428 = vpop.f32.mrb[0].mxu0
      %v2429 = vadd.f32 0.0, %v2428
      %v2430 = vpop.f32.mrb[0].mxu0
      %v2431 = vpop.f32.mrb[0].mxu0
      %v2432 = vadd.f32 0.0, %v2431
      %v2433 = vpop.f32.mrb[0].mxu0
      %2434 = vmatprep.mubr.bf16.mxu0 0
      %2435 = vmatmul.mubr.bf16.gmra.mrb[0].mxu0 %v2310
      %v2436 = vpop.f32.mrb[0].mxu0
      %v2437 = vadd.f32 0.0, %v2436
      %v2438 = vpop.f32.mrb[0].mxu0
      %v2439 = vpop.f32.mrb[0].mxu0
      %v2440 = vadd.f32 0.0, %v2439
      %v2441 = vpop.f32.mrb[0].mxu0
      %2442 = vmatprep.mubr.bf16.mxu0 0
      %2443 = vmatmul.mubr.bf16.gmra.mrb[0].mxu0 %v2313
      %v2444 = vpop.f32.mrb[0].mxu0
      %v2445 = vadd.f32 0.0, %v2444
      %v2446 = vpop.f32.mrb[0].mxu0
      %v2447 = vpop.f32.mrb[0].mxu0
      %v2448 = vadd.f32 0.0, %v2447
      %v2449 = vpop.f32.mrb[0].mxu0
      %2450 = vmatprep.mubr.bf16.mxu0 0
      %2451 = vmatmul.mubr.bf16.gmra.mrb[0].mxu0 %v2316
      %v2452 = vpop.f32.mrb[0].mxu0
      %v2453 = vadd.f32 0.0, %v2452
      %v2454 = vpop.f32.mrb[0].mxu0
      %v2455 = vpop.f32.mrb[0].mxu0
      %v2456 = vadd.f32 0.0, %v2455
      %v2457 = vpop.f32.mrb[0].mxu0
      %2458 = vmatprep.mubr.bf16.mxu0 0
      %2459 = vmatmul.mubr.bf16.gmra.mrb[0].mxu0 %v2319
      %v2460 = vpop.f32.mrb[0].mxu0
      %v2461 = vadd.f32 0.0, %v2460
      %v2462 = vpop.f32.mrb[0].mxu0
      %v2463 = vpop.f32.mrb[0].mxu0
      %v2464 = vadd.f32 0.0, %v2463
      %v2465 = vpop.f32.mrb[0].mxu0
      %2466 = vmatprep.mubr.bf16.mxu0 0
      %2467 = vmatmul.mubr.bf16.gmra.mrb[0].mxu0 %v2322
      %v2468 = vpop.f32.mrb[0].mxu0
      %v2469 = vadd.f32 0.0, %v2468
      %v2470 = vpop.f32.mrb[0].mxu0
      %v2471 = vpop.f32.mrb[0].mxu0
      %v2472 = vadd.f32 0.0, %v2471
      %v2473 = vpop.f32.mrb[0].mxu0
      %2474 = vmatprep.mubr.bf16.mxu0 0
      %2475 = vmatmul.mubr.bf16.gmra.mrb[0].mxu0 %v2325
      %v2476 = vpop.f32.mrb[0].mxu0
      %v2477 = vadd.f32 0.0, %v2476
      %v2478 = vpop.f32.mrb[0].mxu0
      %v2479 = vpop.f32.mrb[0].mxu0
      %v2480 = vadd.f32 0.0, %v2479
      %v2481 = vpop.f32.mrb[0].mxu0
      %2482 = vmatprep.mubr.bf16.mxu0 0
      %2483 = vmatmul.mubr.bf16.gmra.mrb[0].mxu0 %v2328
      %v2484 = vpop.f32.mrb[0].mxu0
      %v2485 = vadd.f32 0.0, %v2484
      %v2486 = vpop.f32.mrb[0].mxu0
      %v2487 = vpop.f32.mrb[0].mxu0
      %v2488 = vadd.f32 0.0, %v2487
      %v2489 = vpop.f32.mrb[0].mxu0
      %2490 = vdwg.mxu0
      %v2491 = vadd.f32 %v2161, %v2365
      %v2492 = vadd.f32 %v2162, %v2368
      %v2493 = vadd.f32 %v2163, %v2373
      %v2494 = vadd.f32 %v2164, %v2376
      %v2495 = vadd.f32 %v2165, %v2381
      %v2496 = vadd.f32 %v2166, %v2384
      %v2497 = vadd.f32 %v2167, %v2389
      %v2498 = vadd.f32 %v2168, %v2392
      %v2499 = vadd.f32 %v2169, %v2397
      %v2500 = vadd.f32 %v2170, %v2400
      %v2501 = vadd.f32 %v2171, %v2405
      %v2502 = vadd.f32 %v2172, %v2408
      %v2503 = vadd.f32 %v2173, %v2413
      %v2504 = vadd.f32 %v2174, %v2416
      %v2505 = vadd.f32 %v2175, %v2421
      %v2506 = vadd.f32 %v2176, %v2424
      %v2507 = vadd.f32 %v2177, %v2429
      %v2508 = vadd.f32 %v2178, %v2432
      %v2509 = vadd.f32 %v2179, %v2437
      %v2510 = vadd.f32 %v2180, %v2440
      %v2511 = vadd.f32 %v2181, %v2445
      %v2512 = vadd.f32 %v2182, %v2448
      %v2513 = vadd.f32 %v2183, %v2453
      %v2514 = vadd.f32 %v2184, %v2456
      %v2515 = vadd.f32 %v2185, %v2461
      %v2516 = vadd.f32 %v2186, %v2464
      %v2517 = vadd.f32 %v2187, %v2469
      %v2518 = vadd.f32 %v2188, %v2472
      %v2519 = vadd.f32 %v2189, %v2477
      %v2520 = vadd.f32 %v2190, %v2480
      %v2521 = vadd.f32 %v2191, %v2485
      %v2522 = vadd.f32 %v2192, %v2488
      %2523 = vst.msk [vmem:[#allocation2] sm:$0xff] %vm725, %v2491
      %2524 = vst.msk [vmem:[#allocation2 + $0x8] sm:$0xff] %vm725, %v2492
      %2525 = vst.msk [vmem:[#allocation2 + $0x10] sm:$0xff] %vm725, %v2493
      %2526 = vst.msk [vmem:[#allocation2 + $0x18] sm:$0xff] %vm725, %v2494
      %2527 = vst.msk [vmem:[#allocation2 + $0x20] sm:$0xff] %vm725, %v2495
      %2528 = vst.msk [vmem:[#allocation2 + $0x28] sm:$0xff] %vm725, %v2496
      %2529 = vst.msk [vmem:[#allocation2 + $0x30] sm:$0xff] %vm725, %v2497
      %2530 = vst.msk [vmem:[#allocation2 + $0x38] sm:$0xff] %vm725, %v2498
      %2531 = vst.msk [vmem:[#allocation2 + $0x40] sm:$0xff] %vm725, %v2499
      %2532 = vst.msk [vmem:[#allocation2 + $0x48] sm:$0xff] %vm725, %v2500
      %2533 = vst.msk [vmem:[#allocation2 + $0x50] sm:$0xff] %vm725, %v2501
      %2534 = vst.msk [vmem:[#allocation2 + $0x58] sm:$0xff] %vm725, %v2502
      %2535 = vst.msk [vmem:[#allocation2 + $0x60] sm:$0xff] %vm725, %v2503
      %2536 = vst.msk [vmem:[#allocation2 + $0x68] sm:$0xff] %vm725, %v2504
      %2537 = vst.msk [vmem:[#allocation2 + $0x70] sm:$0xff] %vm725, %v2505
      %2538 = vst.msk [vmem:[#allocation2 + $0x78] sm:$0xff] %vm725, %v2506
      %2539 = vst.msk [vmem:[#allocation2 + $0x80] sm:$0xff] %vm725, %v2507
      %2540 = vst.msk [vmem:[#allocation2 + $0x88] sm:$0xff] %vm725, %v2508
      %2541 = vst.msk [vmem:[#allocation2 + $0x90] sm:$0xff] %vm725, %v2509
      %2542 = vst.msk [vmem:[#allocation2 + $0x98] sm:$0xff] %vm725, %v2510
      %2543 = vst.msk [vmem:[#allocation2 + $0xa0] sm:$0xff] %vm725, %v2511
      %2544 = vst.msk [vmem:[#allocation2 + $0xa8] sm:$0xff] %vm725, %v2512
      %2545 = vst.msk [vmem:[#allocation2 + $0xb0] sm:$0xff] %vm725, %v2513
      %2546 = vst.msk [vmem:[#allocation2 + $0xb8] sm:$0xff] %vm725, %v2514
      %2547 = vst.msk [vmem:[#allocation2 + $0xc0] sm:$0xff] %vm725, %v2515
      %2548 = vst.msk [vmem:[#allocation2 + $0xc8] sm:$0xff] %vm725, %v2516
      %2549 = vst.msk [vmem:[#allocation2 + $0xd0] sm:$0xff] %vm725, %v2517
      %2550 = vst.msk [vmem:[#allocation2 + $0xd8] sm:$0xff] %vm725, %v2518
      %2551 = vst.msk [vmem:[#allocation2 + $0xe0] sm:$0xff] %vm725, %v2519
      %2552 = vst.msk [vmem:[#allocation2 + $0xe8] sm:$0xff] %vm725, %v2520
      %2553 = vst.msk [vmem:[#allocation2 + $0xf0] sm:$0xff] %vm725, %v2521
      %2554 = vst.msk [vmem:[#allocation2 + $0xf8] sm:$0xff] %vm725, %v2522
      %v2555 = vld [vmem:[%s2128] sm:$0xf]
      %v2556 = vld [vmem:[%s2128 + $0x4] sm:$0xf]
      %v2557 = vld [vmem:[%s2128 + $0x8] sm:$0x1]
      %v2558 = vld [vmem:[%s2128 + $0xc] sm:$0xf]
      %v2559 = vld [vmem:[%s2128 + $0x10] sm:$0xf]
      %v2560 = vld [vmem:[%s2128 + $0x14] sm:$0x1]
      %v2561 = vld [vmem:[%s2128 + $0x18] sm:$0xf]
      %v2562 = vld [vmem:[%s2128 + $0x1c] sm:$0xf]
      %v2563 = vld [vmem:[%s2128 + $0x20] sm:$0x1]
      %v2564 = vld [vmem:[%s2128 + $0x24] sm:$0xf]
      %v2565 = vld [vmem:[%s2128 + $0x28] sm:$0xf]
      %v2566 = vld [vmem:[%s2128 + $0x2c] sm:$0x1]
      %v2567 = vld [vmem:[%s2128 + $0x30] sm:$0xf]
      %v2568 = vld [vmem:[%s2128 + $0x34] sm:$0xf]
      %v2569 = vld [vmem:[%s2128 + $0x38] sm:$0x1]
      %v2570 = vld [vmem:[%s2128 + $0x3c] sm:$0xf]
      %v2571 = vld [vmem:[%s2128 + $0x40] sm:$0xf]
      %v2572 = vld [vmem:[%s2128 + $0x44] sm:$0x1]
      %v2573 = vld [vmem:[%s2128 + $0x48] sm:$0xf]
      %v2574 = vld [vmem:[%s2128 + $0x4c] sm:$0xf]
      %v2575 = vld [vmem:[%s2128 + $0x50] sm:$0x1]
      %v2576 = vld [vmem:[%s2128 + $0x54] sm:$0xf]
      %v2577 = vld [vmem:[%s2128 + $0x58] sm:$0xf]
      %v2578 = vld [vmem:[%s2128 + $0x5c] sm:$0x1]
      %v2579 = vld [vmem:[%s2128 + $0x60] sm:$0xf]
      %v2580 = vld [vmem:[%s2128 + $0x64] sm:$0xf]
      %v2581 = vld [vmem:[%s2128 + $0x68] sm:$0x1]
      %v2582 = vld [vmem:[%s2128 + $0x6c] sm:$0xf]
      %v2583 = vld [vmem:[%s2128 + $0x70] sm:$0xf]
      %v2584 = vld [vmem:[%s2128 + $0x74] sm:$0x1]
      %v2585 = vld [vmem:[%s2128 + $0x78] sm:$0xf]
      %v2586 = vld [vmem:[%s2128 + $0x7c] sm:$0xf]
      %v2587 = vld [vmem:[%s2128 + $0x80] sm:$0x1]
      %v2588 = vld [vmem:[%s2128 + $0x84] sm:$0xf]
      %v2589 = vld [vmem:[%s2128 + $0x88] sm:$0xf]
      %v2590 = vld [vmem:[%s2128 + $0x8c] sm:$0x1]
      %v2591 = vld [vmem:[%s2128 + $0x90] sm:$0xf]
      %v2592 = vld [vmem:[%s2128 + $0x94] sm:$0xf]
      %v2593 = vld [vmem:[%s2128 + $0x98] sm:$0x1]
      %v2594 = vld [vmem:[%s2128 + $0x9c] sm:$0xf]
      %v2595 = vld [vmem:[%s2128 + $0xa0] sm:$0xf]
      %v2596 = vld [vmem:[%s2128 + $0xa4] sm:$0x1]
      %v2597 = vld [vmem:[%s2128 + $0xa8] sm:$0xf]
      %v2598 = vld [vmem:[%s2128 + $0xac] sm:$0xf]
      %v2599 = vld [vmem:[%s2128 + $0xb0] sm:$0x1]
      %v2600 = vld [vmem:[%s2128 + $0xb4] sm:$0xf]
      %v2601 = vld [vmem:[%s2128 + $0xb8] sm:$0xf]
      %v2602 = vld [vmem:[%s2128 + $0xbc] sm:$0x1]
      %v2604 = vshrl.u32 %v2555, 16
      %v2606 = vrot.slane %v2604, 4
      %v2607 = vshll.u32 %v2555, 16
      %v2609 = vrot.slane %v2607, 5
      %v2610 = vor.u32 %v2606, %v2609
      %v2611 = vrot.slane %v2610, 4
      %v2613 = vshll.u32 %v2556, 16
      %v2615 = vrot.slane %v2613, 5
      %v2616 = vsel %vm808, %v2611, %v2615
      %v2617 = vshrl.u32 %v2556, 16
      %v2619 = vrot.slane %v2617, 4
      %v2620 = vor.u32 %v2619, %v2615
      %v2621 = vrot.slane %v2620, 4
      %v2623 = vshll.u32 %v2557, 16
      %v2625 = vrot.slane %v2623, 5
      %v2626 = vsel %vm808, %v2621, %v2625
      %v2628 = vshrl.u32 %v2558, 16
      %v2630 = vrot.slane %v2628, 4
      %v2631 = vshll.u32 %v2558, 16
      %v2633 = vrot.slane %v2631, 5
      %v2634 = vor.u32 %v2630, %v2633
      %v2635 = vrot.slane %v2634, 4
      %v2637 = vshll.u32 %v2559, 16
      %v2639 = vrot.slane %v2637, 5
      %v2640 = vsel %vm808, %v2635, %v2639
      %v2641 = vshrl.u32 %v2559, 16
      %v2643 = vrot.slane %v2641, 4
      %v2644 = vor.u32 %v2643, %v2639
      %v2645 = vrot.slane %v2644, 4
      %v2647 = vshll.u32 %v2560, 16
      %v2649 = vrot.slane %v2647, 5
      %v2650 = vsel %vm808, %v2645, %v2649
      %v2652 = vshrl.u32 %v2561, 16
      %v2654 = vrot.slane %v2652, 4
      %v2655 = vshll.u32 %v2561, 16
      %v2657 = vrot.slane %v2655, 5
      %v2658 = vor.u32 %v2654, %v2657
      %v2659 = vrot.slane %v2658, 4
      %v2661 = vshll.u32 %v2562, 16
      %v2663 = vrot.slane %v2661, 5
      %v2664 = vsel %vm808, %v2659, %v2663
      %v2665 = vshrl.u32 %v2562, 16
      %v2667 = vrot.slane %v2665, 4
      %v2668 = vor.u32 %v2667, %v2663
      %v2669 = vrot.slane %v2668, 4
      %v2671 = vshll.u32 %v2563, 16
      %v2673 = vrot.slane %v2671, 5
      %v2674 = vsel %vm808, %v2669, %v2673
      %v2676 = vshrl.u32 %v2564, 16
      %v2678 = vrot.slane %v2676, 4
      %v2679 = vshll.u32 %v2564, 16
      %v2681 = vrot.slane %v2679, 5
      %v2682 = vor.u32 %v2678, %v2681
      %v2683 = vrot.slane %v2682, 4
      %v2685 = vshll.u32 %v2565, 16
      %v2687 = vrot.slane %v2685, 5
      %v2688 = vsel %vm808, %v2683, %v2687
      %v2689 = vshrl.u32 %v2565, 16
      %v2691 = vrot.slane %v2689, 4
      %v2692 = vor.u32 %v2691, %v2687
      %v2693 = vrot.slane %v2692, 4
      %v2695 = vshll.u32 %v2566, 16
      %v2697 = vrot.slane %v2695, 5
      %v2698 = vsel %vm808, %v2693, %v2697
      %v2700 = vshrl.u32 %v2567, 16
      %v2702 = vrot.slane %v2700, 4
      %v2703 = vshll.u32 %v2567, 16
      %v2705 = vrot.slane %v2703, 5
      %v2706 = vor.u32 %v2702, %v2705
      %v2707 = vrot.slane %v2706, 4
      %v2709 = vshll.u32 %v2568, 16
      %v2711 = vrot.slane %v2709, 5
      %v2712 = vsel %vm808, %v2707, %v2711
      %v2713 = vshrl.u32 %v2568, 16
      %v2715 = vrot.slane %v2713, 4
      %v2716 = vor.u32 %v2715, %v2711
      %v2717 = vrot.slane %v2716, 4
      %v2719 = vshll.u32 %v2569, 16
      %v2721 = vrot.slane %v2719, 5
      %v2722 = vsel %vm808, %v2717, %v2721
      %v2724 = vshrl.u32 %v2570, 16
      %v2726 = vrot.slane %v2724, 4
      %v2727 = vshll.u32 %v2570, 16
      %v2729 = vrot.slane %v2727, 5
      %v2730 = vor.u32 %v2726, %v2729
      %v2731 = vrot.slane %v2730, 4
      %v2733 = vshll.u32 %v2571, 16
      %v2735 = vrot.slane %v2733, 5
      %v2736 = vsel %vm808, %v2731, %v2735
      %v2737 = vshrl.u32 %v2571, 16
      %v2739 = vrot.slane %v2737, 4
      %v2740 = vor.u32 %v2739, %v2735
      %v2741 = vrot.slane %v2740, 4
      %v2743 = vshll.u32 %v2572, 16
      %v2745 = vrot.slane %v2743, 5
      %v2746 = vsel %vm808, %v2741, %v2745
      %v2748 = vshrl.u32 %v2573, 16
      %v2750 = vrot.slane %v2748, 4
      %v2751 = vshll.u32 %v2573, 16
      %v2753 = vrot.slane %v2751, 5
      %v2754 = vor.u32 %v2750, %v2753
      %v2755 = vrot.slane %v2754, 4
      %v2757 = vshll.u32 %v2574, 16
      %v2759 = vrot.slane %v2757, 5
      %v2760 = vsel %vm808, %v2755, %v2759
      %v2761 = vshrl.u32 %v2574, 16
      %v2763 = vrot.slane %v2761, 4
      %v2764 = vor.u32 %v2763, %v2759
      %v2765 = vrot.slane %v2764, 4
      %v2767 = vshll.u32 %v2575, 16
      %v2769 = vrot.slane %v2767, 5
      %v2770 = vsel %vm808, %v2765, %v2769
      %v2772 = vshrl.u32 %v2576, 16
      %v2774 = vrot.slane %v2772, 4
      %v2775 = vshll.u32 %v2576, 16
      %v2777 = vrot.slane %v2775, 5
      %v2778 = vor.u32 %v2774, %v2777
      %v2779 = vrot.slane %v2778, 4
      %v2781 = vshll.u32 %v2577, 16
      %v2783 = vrot.slane %v2781, 5
      %v2784 = vsel %vm808, %v2779, %v2783
      %v2785 = vshrl.u32 %v2577, 16
      %v2787 = vrot.slane %v2785, 4
      %v2788 = vor.u32 %v2787, %v2783
      %v2789 = vrot.slane %v2788, 4
      %v2791 = vshll.u32 %v2578, 16
      %v2793 = vrot.slane %v2791, 5
      %v2794 = vsel %vm808, %v2789, %v2793
      %v2796 = vshrl.u32 %v2579, 16
      %v2798 = vrot.slane %v2796, 4
      %v2799 = vshll.u32 %v2579, 16
      %v2801 = vrot.slane %v2799, 5
      %v2802 = vor.u32 %v2798, %v2801
      %v2803 = vrot.slane %v2802, 4
      %v2805 = vshll.u32 %v2580, 16
      %v2807 = vrot.slane %v2805, 5
      %v2808 = vsel %vm808, %v2803, %v2807
      %v2809 = vshrl.u32 %v2580, 16
      %v2811 = vrot.slane %v2809, 4
      %v2812 = vor.u32 %v2811, %v2807
      %v2813 = vrot.slane %v2812, 4
      %v2815 = vshll.u32 %v2581, 16
      %v2817 = vrot.slane %v2815, 5
      %v2818 = vsel %vm808, %v2813, %v2817
      %v2820 = vshrl.u32 %v2582, 16
      %v2822 = vrot.slane %v2820, 4
      %v2823 = vshll.u32 %v2582, 16
      %v2825 = vrot.slane %v2823, 5
      %v2826 = vor.u32 %v2822, %v2825
      %v2827 = vrot.slane %v2826, 4
      %v2829 = vshll.u32 %v2583, 16
      %v2831 = vrot.slane %v2829, 5
      %v2832 = vsel %vm808, %v2827, %v2831
      %v2833 = vshrl.u32 %v2583, 16
      %v2835 = vrot.slane %v2833, 4
      %v2836 = vor.u32 %v2835, %v2831
      %v2837 = vrot.slane %v2836, 4
      %v2839 = vshll.u32 %v2584, 16
      %v2841 = vrot.slane %v2839, 5
      %v2842 = vsel %vm808, %v2837, %v2841
      %v2844 = vshrl.u32 %v2585, 16
      %v2846 = vrot.slane %v2844, 4
      %v2847 = vshll.u32 %v2585, 16
      %v2849 = vrot.slane %v2847, 5
      %v2850 = vor.u32 %v2846, %v2849
      %v2851 = vrot.slane %v2850, 4
      %v2853 = vshll.u32 %v2586, 16
      %v2855 = vrot.slane %v2853, 5
      %v2856 = vsel %vm808, %v2851, %v2855
      %v2857 = vshrl.u32 %v2586, 16
      %v2859 = vrot.slane %v2857, 4
      %v2860 = vor.u32 %v2859, %v2855
      %v2861 = vrot.slane %v2860, 4
      %v2863 = vshll.u32 %v2587, 16
      %v2865 = vrot.slane %v2863, 5
      %v2866 = vsel %vm808, %v2861, %v2865
      %v2868 = vshrl.u32 %v2588, 16
      %v2870 = vrot.slane %v2868, 4
      %v2871 = vshll.u32 %v2588, 16
      %v2873 = vrot.slane %v2871, 5
      %v2874 = vor.u32 %v2870, %v2873
      %v2875 = vrot.slane %v2874, 4
      %v2877 = vshll.u32 %v2589, 16
      %v2879 = vrot.slane %v2877, 5
      %v2880 = vsel %vm808, %v2875, %v2879
      %v2881 = vshrl.u32 %v2589, 16
      %v2883 = vrot.slane %v2881, 4
      %v2884 = vor.u32 %v2883, %v2879
      %v2885 = vrot.slane %v2884, 4
      %v2887 = vshll.u32 %v2590, 16
      %v2889 = vrot.slane %v2887, 5
      %v2890 = vsel %vm808, %v2885, %v2889
      %v2892 = vshrl.u32 %v2591, 16
      %v2894 = vrot.slane %v2892, 4
      %v2895 = vshll.u32 %v2591, 16
      %v2897 = vrot.slane %v2895, 5
      %v2898 = vor.u32 %v2894, %v2897
      %v2899 = vrot.slane %v2898, 4
      %v2901 = vshll.u32 %v2592, 16
      %v2903 = vrot.slane %v2901, 5
      %v2904 = vsel %vm808, %v2899, %v2903
      %v2905 = vshrl.u32 %v2592, 16
      %v2907 = vrot.slane %v2905, 4
      %v2908 = vor.u32 %v2907, %v2903
      %v2909 = vrot.slane %v2908, 4
      %v2911 = vshll.u32 %v2593, 16
      %v2913 = vrot.slane %v2911, 5
      %v2914 = vsel %vm808, %v2909, %v2913
      %v2916 = vshrl.u32 %v2594, 16
      %v2918 = vrot.slane %v2916, 4
      %v2919 = vshll.u32 %v2594, 16
      %v2921 = vrot.slane %v2919, 5
      %v2922 = vor.u32 %v2918, %v2921
      %v2923 = vrot.slane %v2922, 4
      %v2925 = vshll.u32 %v2595, 16
      %v2927 = vrot.slane %v2925, 5
      %v2928 = vsel %vm808, %v2923, %v2927
      %v2929 = vshrl.u32 %v2595, 16
      %v2931 = vrot.slane %v2929, 4
      %v2932 = vor.u32 %v2931, %v2927
      %v2933 = vrot.slane %v2932, 4
      %v2935 = vshll.u32 %v2596, 16
      %v2937 = vrot.slane %v2935, 5
      %v2938 = vsel %vm808, %v2933, %v2937
      %v2940 = vshrl.u32 %v2597, 16
      %v2942 = vrot.slane %v2940, 4
      %v2943 = vshll.u32 %v2597, 16
      %v2945 = vrot.slane %v2943, 5
      %v2946 = vor.u32 %v2942, %v2945
      %v2947 = vrot.slane %v2946, 4
      %v2949 = vshll.u32 %v2598, 16
      %v2951 = vrot.slane %v2949, 5
      %v2952 = vsel %vm808, %v2947, %v2951
      %v2953 = vshrl.u32 %v2598, 16
      %v2955 = vrot.slane %v2953, 4
      %v2956 = vor.u32 %v2955, %v2951
      %v2957 = vrot.slane %v2956, 4
      %v2959 = vshll.u32 %v2599, 16
      %v2961 = vrot.slane %v2959, 5
      %v2962 = vsel %vm808, %v2957, %v2961
      %v2964 = vshrl.u32 %v2600, 16
      %v2966 = vrot.slane %v2964, 4
      %v2967 = vshll.u32 %v2600, 16
      %v2969 = vrot.slane %v2967, 5
      %v2970 = vor.u32 %v2966, %v2969
      %v2971 = vrot.slane %v2970, 4
      %v2973 = vshll.u32 %v2601, 16
      %v2975 = vrot.slane %v2973, 5
      %v2976 = vsel %vm808, %v2971, %v2975
      %v2977 = vshrl.u32 %v2601, 16
      %v2979 = vrot.slane %v2977, 4
      %v2980 = vor.u32 %v2979, %v2975
      %v2981 = vrot.slane %v2980, 4
      %v2983 = vshll.u32 %v2602, 16
      %v2985 = vrot.slane %v2983, 5
      %v2986 = vsel %vm808, %v2981, %v2985
      %v2987 = vld [vmem:[#allocation2] sm:$0xff]
      %v2988 = vld [vmem:[#allocation2 + $0x8] sm:$0xff]
      %v2989 = vld [vmem:[#allocation2 + $0x10] sm:$0xff]
      %v2990 = vld [vmem:[#allocation2 + $0x18] sm:$0xff]
      %v2991 = vld [vmem:[#allocation2 + $0x20] sm:$0xff]
      %v2992 = vld [vmem:[#allocation2 + $0x28] sm:$0xff]
      %v2993 = vld [vmem:[#allocation2 + $0x30] sm:$0xff]
      %v2994 = vld [vmem:[#allocation2 + $0x38] sm:$0xff]
      %v2995 = vld [vmem:[#allocation2 + $0x40] sm:$0xff]
      %v2996 = vld [vmem:[#allocation2 + $0x48] sm:$0xff]
      %v2997 = vld [vmem:[#allocation2 + $0x50] sm:$0xff]
      %v2998 = vld [vmem:[#allocation2 + $0x58] sm:$0xff]
      %v2999 = vld [vmem:[#allocation2 + $0x60] sm:$0xff]
      %v3000 = vld [vmem:[#allocation2 + $0x68] sm:$0xff]
      %v3001 = vld [vmem:[#allocation2 + $0x70] sm:$0xff]
      %v3002 = vld [vmem:[#allocation2 + $0x78] sm:$0xff]
      %v3003 = vld [vmem:[#allocation2 + $0x80] sm:$0xff]
      %v3004 = vld [vmem:[#allocation2 + $0x88] sm:$0xff]
      %v3005 = vld [vmem:[#allocation2 + $0x90] sm:$0xff]
      %v3006 = vld [vmem:[#allocation2 + $0x98] sm:$0xff]
      %v3007 = vld [vmem:[#allocation2 + $0xa0] sm:$0xff]
      %v3008 = vld [vmem:[#allocation2 + $0xa8] sm:$0xff]
      %v3009 = vld [vmem:[#allocation2 + $0xb0] sm:$0xff]
      %v3010 = vld [vmem:[#allocation2 + $0xb8] sm:$0xff]
      %v3011 = vld [vmem:[#allocation2 + $0xc0] sm:$0xff]
      %v3012 = vld [vmem:[#allocation2 + $0xc8] sm:$0xff]
      %v3013 = vld [vmem:[#allocation2 + $0xd0] sm:$0xff]
      %v3014 = vld [vmem:[#allocation2 + $0xd8] sm:$0xff]
      %v3015 = vld [vmem:[#allocation2 + $0xe0] sm:$0xff]
      %v3016 = vld [vmem:[#allocation2 + $0xe8] sm:$0xff]
      %v3017 = vld [vmem:[#allocation2 + $0xf0] sm:$0xff]
      %v3018 = vld [vmem:[#allocation2 + $0xf8] sm:$0xff]
      %s3019 = scalar_lea.vmem %s273, 32
      %v3020 = vld [vmem:[%s3019] sm:$0xf]
      %v3021 = vld [vmem:[%s3019 + $0x4] sm:$0xf]
      %v3022 = vunpack.c.l.b16 %v2616
      %v3023 = vunpack.c.l.b16 %v2626
      %v3024 = vunpack.c.l.b16 %v2640
      %v3025 = vunpack.c.l.b16 %v2650
      %v3026 = vunpack.c.l.b16 %v2664
      %v3027 = vunpack.c.l.b16 %v2674
      %v3028 = vunpack.c.l.b16 %v2688
      %v3029 = vunpack.c.l.b16 %v2698
      %v3030 = vunpack.c.l.b16 %v2712
      %v3031 = vunpack.c.l.b16 %v2722
      %v3032 = vunpack.c.l.b16 %v2736
      %v3033 = vunpack.c.l.b16 %v2746
      %v3034 = vunpack.c.l.b16 %v2760
      %v3035 = vunpack.c.l.b16 %v2770
      %v3036 = vunpack.c.l.b16 %v2784
      %v3037 = vunpack.c.l.b16 %v2794
      %v3038 = vunpack.c.l.b16 %v2808
      %v3039 = vunpack.c.l.b16 %v2818
      %v3040 = vunpack.c.l.b16 %v2832
      %v3041 = vunpack.c.l.b16 %v2842
      %v3042 = vunpack.c.l.b16 %v2856
      %v3043 = vunpack.c.l.b16 %v2866
      %v3044 = vunpack.c.l.b16 %v2880
      %v3045 = vunpack.c.l.b16 %v2890
      %v3046 = vunpack.c.l.b16 %v2904
      %v3047 = vunpack.c.l.b16 %v2914
      %v3048 = vunpack.c.l.b16 %v2928
      %v3049 = vunpack.c.l.b16 %v2938
      %v3050 = vunpack.c.l.b16 %v2952
      %v3051 = vunpack.c.l.b16 %v2962
      %v3052 = vunpack.c.l.b16 %v2976
      %v3053 = vunpack.c.l.b16 %v2986
      %v3054 = vpack.c.b16 %v3023, %v3022
      %v3055 = vpack.c.b16 %v3025, %v3024
      %v3056 = vpack.c.b16 %v3027, %v3026
      %v3057 = vpack.c.b16 %v3029, %v3028
      %v3058 = vpack.c.b16 %v3031, %v3030
      %v3059 = vpack.c.b16 %v3033, %v3032
      %v3060 = vpack.c.b16 %v3035, %v3034
      %v3061 = vpack.c.b16 %v3037, %v3036
      %v3062 = vpack.c.b16 %v3039, %v3038
      %v3063 = vpack.c.b16 %v3041, %v3040
      %v3064 = vpack.c.b16 %v3043, %v3042
      %v3065 = vpack.c.b16 %v3045, %v3044
      %v3066 = vpack.c.b16 %v3047, %v3046
      %v3067 = vpack.c.b16 %v3049, %v3048
      %v3068 = vpack.c.b16 %v3051, %v3050
      %v3069 = vpack.c.b16 %v3053, %v3052
      %v3072 = vunpack.c.l.b16 %v3020
      %v3073 = vunpack.c.l.b16 %v3021
      %v3074 = vpack.c.b16 %v3073, %v3072
      %v3077 = vsel %vm483, %v3054, 0
      %v3080 = vsel %vm483, %v3055, 0
      %v3083 = vsel %vm483, %v3056, 0
      %v3086 = vsel %vm483, %v3057, 0
      %v3089 = vsel %vm483, %v3058, 0
      %v3092 = vsel %vm483, %v3059, 0
      %v3095 = vsel %vm483, %v3060, 0
      %v3098 = vsel %vm483, %v3061, 0
      %v3101 = vsel %vm483, %v3062, 0
      %v3104 = vsel %vm483, %v3063, 0
      %v3107 = vsel %vm483, %v3064, 0
      %v3110 = vsel %vm483, %v3065, 0
      %v3113 = vsel %vm483, %v3066, 0
      %v3116 = vsel %vm483, %v3067, 0
      %v3119 = vsel %vm483, %v3068, 0
      %v3122 = vsel %vm483, %v3069, 0
      %3124 = vmatprep.subr.bf16.mxu0 0
      %3125 = vmatpush1.bf16.msra.mxu0 %v3074
      %3126 = vmatprep.subr.bf16.mxu0 0
      %3127 = vmatpush1.bf16.msra.mxu0 0
      %3128 = vmatprep.subr.bf16.mxu0 0
      %3129 = vmatpush1.bf16.msra.mxu0 0
      %3130 = vmatprep.subr.bf16.mxu0 0
      %3131 = vmatpush1.bf16.msra.mxu0 0
      %3132 = vmatprep.subr.bf16.mxu0 0
      %3133 = vmatpush1.bf16.msra.mxu0 0
      %3134 = vmatprep.subr.bf16.mxu0 0
      %3135 = vmatpush1.bf16.msra.mxu0 0
      %3136 = vmatprep.subr.bf16.mxu0 0
      %3137 = vmatpush1.bf16.msra.mxu0 0
      %3138 = vmatprep.subr.bf16.mxu0 0
      %3139 = vmatpush1.bf16.msra.mxu0 0
      %3140 = vmatprep.subr.bf16.mxu0 0
      %3141 = vmatpush1.bf16.msra.mxu0 0
      %3142 = vmatprep.subr.bf16.mxu0 0
      %3143 = vmatpush1.bf16.msra.mxu0 0
      %3144 = vmatprep.subr.bf16.mxu0 0
      %3145 = vmatpush1.bf16.msra.mxu0 0
      %3146 = vmatprep.subr.bf16.mxu0 0
      %3147 = vmatpush1.bf16.msra.mxu0 0
      %3148 = vmatprep.subr.bf16.mxu0 0
      %3149 = vmatpush1.bf16.msra.mxu0 0
      %3150 = vmatprep.subr.bf16.mxu0 0
      %3151 = vmatpush1.bf16.msra.mxu0 0
      %3152 = vmatprep.subr.bf16.mxu0 0
      %3153 = vmatpush1.bf16.msra.mxu0 0
      %3154 = vmatprep.subr.bf16.mxu0 0
      %3155 = vmatpush1.bf16.msra.mxu0 0
      %3156 = vmatprep.mubr.bf16.mxu0 0
      %3157 = vmatmul.mubr.bf16.gmra.mrb[0].mxu0 %v3077
      %v3158 = vpop.f32.mrb[0].mxu0
      %v3159 = vadd.f32 0.0, %v3158
      %v3160 = vpop.f32.mrb[0].mxu0
      %v3161 = vpop.f32.mrb[0].mxu0
      %v3162 = vadd.f32 0.0, %v3161
      %v3163 = vpop.f32.mrb[0].mxu0
      %3164 = vmatprep.mubr.bf16.mxu0 0
      %3165 = vmatmul.mubr.bf16.gmra.mrb[0].mxu0 %v3080
      %v3166 = vpop.f32.mrb[0].mxu0
      %v3167 = vadd.f32 0.0, %v3166
      %v3168 = vpop.f32.mrb[0].mxu0
      %v3169 = vpop.f32.mrb[0].mxu0
      %v3170 = vadd.f32 0.0, %v3169
      %v3171 = vpop.f32.mrb[0].mxu0
      %3172 = vmatprep.mubr.bf16.mxu0 0
      %3173 = vmatmul.mubr.bf16.gmra.mrb[0].mxu0 %v3083
      %v3174 = vpop.f32.mrb[0].mxu0
      %v3175 = vadd.f32 0.0, %v3174
      %v3176 = vpop.f32.mrb[0].mxu0
      %v3177 = vpop.f32.mrb[0].mxu0
      %v3178 = vadd.f32 0.0, %v3177
      %v3179 = vpop.f32.mrb[0].mxu0
      %3180 = vmatprep.mubr.bf16.mxu0 0
      %3181 = vmatmul.mubr.bf16.gmra.mrb[0].mxu0 %v3086
      %v3182 = vpop.f32.mrb[0].mxu0
      %v3183 = vadd.f32 0.0, %v3182
      %v3184 = vpop.f32.mrb[0].mxu0
      %v3185 = vpop.f32.mrb[0].mxu0
      %v3186 = vadd.f32 0.0, %v3185
      %v3187 = vpop.f32.mrb[0].mxu0
      %3188 = vmatprep.mubr.bf16.mxu0 0
      %3189 = vmatmul.mubr.bf16.gmra.mrb[0].mxu0 %v3089
      %v3190 = vpop.f32.mrb[0].mxu0
      %v3191 = vadd.f32 0.0, %v3190
      %v3192 = vpop.f32.mrb[0].mxu0
      %v3193 = vpop.f32.mrb[0].mxu0
      %v3194 = vadd.f32 0.0, %v3193
      %v3195 = vpop.f32.mrb[0].mxu0
      %3196 = vmatprep.mubr.bf16.mxu0 0
      %3197 = vmatmul.mubr.bf16.gmra.mrb[0].mxu0 %v3092
      %v3198 = vpop.f32.mrb[0].mxu0
      %v3199 = vadd.f32 0.0, %v3198
      %v3200 = vpop.f32.mrb[0].mxu0
      %v3201 = vpop.f32.mrb[0].mxu0
      %v3202 = vadd.f32 0.0, %v3201
      %v3203 = vpop.f32.mrb[0].mxu0
      %3204 = vmatprep.mubr.bf16.mxu0 0
      %3205 = vmatmul.mubr.bf16.gmra.mrb[0].mxu0 %v3095
      %v3206 = vpop.f32.mrb[0].mxu0
      %v3207 = vadd.f32 0.0, %v3206
      %v3208 = vpop.f32.mrb[0].mxu0
      %v3209 = vpop.f32.mrb[0].mxu0
      %v3210 = vadd.f32 0.0, %v3209
      %v3211 = vpop.f32.mrb[0].mxu0
      %3212 = vmatprep.mubr.bf16.mxu0 0
      %3213 = vmatmul.mubr.bf16.gmra.mrb[0].mxu0 %v3098
      %v3214 = vpop.f32.mrb[0].mxu0
      %v3215 = vadd.f32 0.0, %v3214
      %v3216 = vpop.f32.mrb[0].mxu0
      %v3217 = vpop.f32.mrb[0].mxu0
      %v3218 = vadd.f32 0.0, %v3217
      %v3219 = vpop.f32.mrb[0].mxu0
      %3220 = vmatprep.mubr.bf16.mxu0 0
      %3221 = vmatmul.mubr.bf16.gmra.mrb[0].mxu0 %v3101
      %v3222 = vpop.f32.mrb[0].mxu0
      %v3223 = vadd.f32 0.0, %v3222
      %v3224 = vpop.f32.mrb[0].mxu0
      %v3225 = vpop.f32.mrb[0].mxu0
      %v3226 = vadd.f32 0.0, %v3225
      %v3227 = vpop.f32.mrb[0].mxu0
      %3228 = vmatprep.mubr.bf16.mxu0 0
      %3229 = vmatmul.mubr.bf16.gmra.mrb[0].mxu0 %v3104
      %v3230 = vpop.f32.mrb[0].mxu0
      %v3231 = vadd.f32 0.0, %v3230
      %v3232 = vpop.f32.mrb[0].mxu0
      %v3233 = vpop.f32.mrb[0].mxu0
      %v3234 = vadd.f32 0.0, %v3233
      %v3235 = vpop.f32.mrb[0].mxu0
      %3236 = vmatprep.mubr.bf16.mxu0 0
      %3237 = vmatmul.mubr.bf16.gmra.mrb[0].mxu0 %v3107
      %v3238 = vpop.f32.mrb[0].mxu0
      %v3239 = vadd.f32 0.0, %v3238
      %v3240 = vpop.f32.mrb[0].mxu0
      %v3241 = vpop.f32.mrb[0].mxu0
      %v3242 = vadd.f32 0.0, %v3241
      %v3243 = vpop.f32.mrb[0].mxu0
      %3244 = vmatprep.mubr.bf16.mxu0 0
      %3245 = vmatmul.mubr.bf16.gmra.mrb[0].mxu0 %v3110
      %v3246 = vpop.f32.mrb[0].mxu0
      %v3247 = vadd.f32 0.0, %v3246
      %v3248 = vpop.f32.mrb[0].mxu0
      %v3249 = vpop.f32.mrb[0].mxu0
      %v3250 = vadd.f32 0.0, %v3249
      %v3251 = vpop.f32.mrb[0].mxu0
      %3252 = vmatprep.mubr.bf16.mxu0 0
      %3253 = vmatmul.mubr.bf16.gmra.mrb[0].mxu0 %v3113
      %v3254 = vpop.f32.mrb[0].mxu0
      %v3255 = vadd.f32 0.0, %v3254
      %v3256 = vpop.f32.mrb[0].mxu0
      %v3257 = vpop.f32.mrb[0].mxu0
      %v3258 = vadd.f32 0.0, %v3257
      %v3259 = vpop.f32.mrb[0].mxu0
      %3260 = vmatprep.mubr.bf16.mxu0 0
      %3261 = vmatmul.mubr.bf16.gmra.mrb[0].mxu0 %v3116
      %v3262 = vpop.f32.mrb[0].mxu0
      %v3263 = vadd.f32 0.0, %v3262
      %v3264 = vpop.f32.mrb[0].mxu0
      %v3265 = vpop.f32.mrb[0].mxu0
      %v3266 = vadd.f32 0.0, %v3265
      %v3267 = vpop.f32.mrb[0].mxu0
      %3268 = vmatprep.mubr.bf16.mxu0 0
      %3269 = vmatmul.mubr.bf16.gmra.mrb[0].mxu0 %v3119
      %v3270 = vpop.f32.mrb[0].mxu0
      %v3271 = vadd.f32 0.0, %v3270
      %v3272 = vpop.f32.mrb[0].mxu0
      %v3273 = vpop.f32.mrb[0].mxu0
      %v3274 = vadd.f32 0.0, %v3273
      %v3275 = vpop.f32.mrb[0].mxu0
      %3276 = vmatprep.mubr.bf16.mxu0 0
      %3277 = vmatmul.mubr.bf16.gmra.mrb[0].mxu0 %v3122
      %v3278 = vpop.f32.mrb[0].mxu0
      %v3279 = vadd.f32 0.0, %v3278
      %v3280 = vpop.f32.mrb[0].mxu0
      %v3281 = vpop.f32.mrb[0].mxu0
      %v3282 = vadd.f32 0.0, %v3281
      %v3283 = vpop.f32.mrb[0].mxu0
      %3284 = vdwg.mxu0
      %v3285 = vadd.f32 %v2987, %v3159
      %v3286 = vadd.f32 %v2988, %v3162
      %v3287 = vadd.f32 %v2989, %v3167
      %v3288 = vadd.f32 %v2990, %v3170
      %v3289 = vadd.f32 %v2991, %v3175
      %v3290 = vadd.f32 %v2992, %v3178
      %v3291 = vadd.f32 %v2993, %v3183
      %v3292 = vadd.f32 %v2994, %v3186
      %v3293 = vadd.f32 %v2995, %v3191
      %v3294 = vadd.f32 %v2996, %v3194
      %v3295 = vadd.f32 %v2997, %v3199
      %v3296 = vadd.f32 %v2998, %v3202
      %v3297 = vadd.f32 %v2999, %v3207
      %v3298 = vadd.f32 %v3000, %v3210
      %v3299 = vadd.f32 %v3001, %v3215
      %v3300 = vadd.f32 %v3002, %v3218
      %v3301 = vadd.f32 %v3003, %v3223
      %v3302 = vadd.f32 %v3004, %v3226
      %v3303 = vadd.f32 %v3005, %v3231
      %v3304 = vadd.f32 %v3006, %v3234
      %v3305 = vadd.f32 %v3007, %v3239
      %v3306 = vadd.f32 %v3008, %v3242
      %v3307 = vadd.f32 %v3009, %v3247
      %v3308 = vadd.f32 %v3010, %v3250
      %v3309 = vadd.f32 %v3011, %v3255
      %v3310 = vadd.f32 %v3012, %v3258
      %v3311 = vadd.f32 %v3013, %v3263
      %v3312 = vadd.f32 %v3014, %v3266
      %v3313 = vadd.f32 %v3015, %v3271
      %v3314 = vadd.f32 %v3016, %v3274
      %v3315 = vadd.f32 %v3017, %v3279
      %v3316 = vadd.f32 %v3018, %v3282
      %3317 = vst.msk [vmem:[#allocation2] sm:$0xff] %vm725, %v3285
      %3318 = vst.msk [vmem:[#allocation2 + $0x8] sm:$0xff] %vm725, %v3286
      %3319 = vst.msk [vmem:[#allocation2 + $0x10] sm:$0xff] %vm725, %v3287
      %3320 = vst.msk [vmem:[#allocation2 + $0x18] sm:$0xff] %vm725, %v3288
      %3321 = vst.msk [vmem:[#allocation2 + $0x20] sm:$0xff] %vm725, %v3289
      %3322 = vst.msk [vmem:[#allocation2 + $0x28] sm:$0xff] %vm725, %v3290
      %3323 = vst.msk [vmem:[#allocation2 + $0x30] sm:$0xff] %vm725, %v3291
      %3324 = vst.msk [vmem:[#allocation2 + $0x38] sm:$0xff] %vm725, %v3292
      %3325 = vst.msk [vmem:[#allocation2 + $0x40] sm:$0xff] %vm725, %v3293
      %3326 = vst.msk [vmem:[#allocation2 + $0x48] sm:$0xff] %vm725, %v3294
      %3327 = vst.msk [vmem:[#allocation2 + $0x50] sm:$0xff] %vm725, %v3295
      %3328 = vst.msk [vmem:[#allocation2 + $0x58] sm:$0xff] %vm725, %v3296
      %3329 = vst.msk [vmem:[#allocation2 + $0x60] sm:$0xff] %vm725, %v3297
      %3330 = vst.msk [vmem:[#allocation2 + $0x68] sm:$0xff] %vm725, %v3298
      %3331 = vst.msk [vmem:[#allocation2 + $0x70] sm:$0xff] %vm725, %v3299
      %3332 = vst.msk [vmem:[#allocation2 + $0x78] sm:$0xff] %vm725, %v3300
      %3333 = vst.msk [vmem:[#allocation2 + $0x80] sm:$0xff] %vm725, %v3301
      %3334 = vst.msk [vmem:[#allocation2 + $0x88] sm:$0xff] %vm725, %v3302
      %3335 = vst.msk [vmem:[#allocation2 + $0x90] sm:$0xff] %vm725, %v3303
      %3336 = vst.msk [vmem:[#allocation2 + $0x98] sm:$0xff] %vm725, %v3304
      %3337 = vst.msk [vmem:[#allocation2 + $0xa0] sm:$0xff] %vm725, %v3305
      %3338 = vst.msk [vmem:[#allocation2 + $0xa8] sm:$0xff] %vm725, %v3306
      %3339 = vst.msk [vmem:[#allocation2 + $0xb0] sm:$0xff] %vm725, %v3307
      %3340 = vst.msk [vmem:[#allocation2 + $0xb8] sm:$0xff] %vm725, %v3308
      %3341 = vst.msk [vmem:[#allocation2 + $0xc0] sm:$0xff] %vm725, %v3309
      %3342 = vst.msk [vmem:[#allocation2 + $0xc8] sm:$0xff] %vm725, %v3310
      %3343 = vst.msk [vmem:[#allocation2 + $0xd0] sm:$0xff] %vm725, %v3311
      %3344 = vst.msk [vmem:[#allocation2 + $0xd8] sm:$0xff] %vm725, %v3312
      %3345 = vst.msk [vmem:[#allocation2 + $0xe0] sm:$0xff] %vm725, %v3313
      %3346 = vst.msk [vmem:[#allocation2 + $0xe8] sm:$0xff] %vm725, %v3314
      %3347 = vst.msk [vmem:[#allocation2 + $0xf0] sm:$0xff] %vm725, %v3315
      %3348 = vst.msk [vmem:[#allocation2 + $0xf8] sm:$0xff] %vm725, %v3316
      %v3349 = vld [vmem:[%s2128] sm:$0xe]
      %v3350 = vld [vmem:[%s2128 + $0x4] sm:$0xf]
      %v3351 = vld [vmem:[%s2128 + $0x8] sm:$0x1]
      %v3352 = vld [vmem:[%s2128 + $0xc] sm:$0xe]
      %v3353 = vld [vmem:[%s2128 + $0x10] sm:$0xf]
      %v3354 = vld [vmem:[%s2128 + $0x14] sm:$0x1]
      %v3355 = vld [vmem:[%s2128 + $0x18] sm:$0xe]
      %v3356 = vld [vmem:[%s2128 + $0x1c] sm:$0xf]
      %v3357 = vld [vmem:[%s2128 + $0x20] sm:$0x1]
      %v3358 = vld [vmem:[%s2128 + $0x24] sm:$0xe]
      %v3359 = vld [vmem:[%s2128 + $0x28] sm:$0xf]
      %v3360 = vld [vmem:[%s2128 + $0x2c] sm:$0x1]
      %v3361 = vld [vmem:[%s2128 + $0x30] sm:$0xe]
      %v3362 = vld [vmem:[%s2128 + $0x34] sm:$0xf]
      %v3363 = vld [vmem:[%s2128 + $0x38] sm:$0x1]
      %v3364 = vld [vmem:[%s2128 + $0x3c] sm:$0xe]
      %v3365 = vld [vmem:[%s2128 + $0x40] sm:$0xf]
      %v3366 = vld [vmem:[%s2128 + $0x44] sm:$0x1]
      %v3367 = vld [vmem:[%s2128 + $0x48] sm:$0xe]
      %v3368 = vld [vmem:[%s2128 + $0x4c] sm:$0xf]
      %v3369 = vld [vmem:[%s2128 + $0x50] sm:$0x1]
      %v3370 = vld [vmem:[%s2128 + $0x54] sm:$0xe]
      %v3371 = vld [vmem:[%s2128 + $0x58] sm:$0xf]
      %v3372 = vld [vmem:[%s2128 + $0x5c] sm:$0x1]
      %v3373 = vld [vmem:[%s2128 + $0x60] sm:$0xe]
      %v3374 = vld [vmem:[%s2128 + $0x64] sm:$0xf]
      %v3375 = vld [vmem:[%s2128 + $0x68] sm:$0x1]
      %v3376 = vld [vmem:[%s2128 + $0x6c] sm:$0xe]
      %v3377 = vld [vmem:[%s2128 + $0x70] sm:$0xf]
      %v3378 = vld [vmem:[%s2128 + $0x74] sm:$0x1]
      %v3379 = vld [vmem:[%s2128 + $0x78] sm:$0xe]
      %v3380 = vld [vmem:[%s2128 + $0x7c] sm:$0xf]
      %v3381 = vld [vmem:[%s2128 + $0x80] sm:$0x1]
      %v3382 = vld [vmem:[%s2128 + $0x84] sm:$0xe]
      %v3383 = vld [vmem:[%s2128 + $0x88] sm:$0xf]
      %v3384 = vld [vmem:[%s2128 + $0x8c] sm:$0x1]
      %v3385 = vld [vmem:[%s2128 + $0x90] sm:$0xe]
      %v3386 = vld [vmem:[%s2128 + $0x94] sm:$0xf]
      %v3387 = vld [vmem:[%s2128 + $0x98] sm:$0x1]
      %v3388 = vld [vmem:[%s2128 + $0x9c] sm:$0xe]
      %v3389 = vld [vmem:[%s2128 + $0xa0] sm:$0xf]
      %v3390 = vld [vmem:[%s2128 + $0xa4] sm:$0x1]
      %v3391 = vld [vmem:[%s2128 + $0xa8] sm:$0xe]
      %v3392 = vld [vmem:[%s2128 + $0xac] sm:$0xf]
      %v3393 = vld [vmem:[%s2128 + $0xb0] sm:$0x1]
      %v3394 = vld [vmem:[%s2128 + $0xb4] sm:$0xe]
      %v3395 = vld [vmem:[%s2128 + $0xb8] sm:$0xf]
      %v3396 = vld [vmem:[%s2128 + $0xbc] sm:$0x1]
      %v3445 = vrot.slane %v3349, 5
      %v3446 = vrot.slane %v3445, 4
      %v3447 = vrot.slane %v3350, 5
      %v3448 = vsel %vm1653, %v3446, %v3447
      %v3449 = vrot.slane %v3447, 4
      %v3450 = vrot.slane %v3351, 5
      %v3451 = vsel %vm1653, %v3449, %v3450
      %v3452 = vrot.slane %v3352, 5
      %v3453 = vrot.slane %v3452, 4
      %v3454 = vrot.slane %v3353, 5
      %v3455 = vsel %vm1653, %v3453, %v3454
      %v3456 = vrot.slane %v3454, 4
      %v3457 = vrot.slane %v3354, 5
      %v3458 = vsel %vm1653, %v3456, %v3457
      %v3459 = vrot.slane %v3355, 5
      %v3460 = vrot.slane %v3459, 4
      %v3461 = vrot.slane %v3356, 5
      %v3462 = vsel %vm1653, %v3460, %v3461
      %v3463 = vrot.slane %v3461, 4
      %v3464 = vrot.slane %v3357, 5
      %v3465 = vsel %vm1653, %v3463, %v3464
      %v3466 = vrot.slane %v3358, 5
      %v3467 = vrot.slane %v3466, 4
      %v3468 = vrot.slane %v3359, 5
      %v3469 = vsel %vm1653, %v3467, %v3468
      %v3470 = vrot.slane %v3468, 4
      %v3471 = vrot.slane %v3360, 5
      %v3472 = vsel %vm1653, %v3470, %v3471
      %v3473 = vrot.slane %v3361, 5
      %v3474 = vrot.slane %v3473, 4
      %v3475 = vrot.slane %v3362, 5
      %v3476 = vsel %vm1653, %v3474, %v3475
      %v3477 = vrot.slane %v3475, 4
      %v3478 = vrot.slane %v3363, 5
      %v3479 = vsel %vm1653, %v3477, %v3478
      %v3480 = vrot.slane %v3364, 5
      %v3481 = vrot.slane %v3480, 4
      %v3482 = vrot.slane %v3365, 5
      %v3483 = vsel %vm1653, %v3481, %v3482
      %v3484 = vrot.slane %v3482, 4
      %v3485 = vrot.slane %v3366, 5
      %v3486 = vsel %vm1653, %v3484, %v3485
      %v3487 = vrot.slane %v3367, 5
      %v3488 = vrot.slane %v3487, 4
      %v3489 = vrot.slane %v3368, 5
      %v3490 = vsel %vm1653, %v3488, %v3489
      %v3491 = vrot.slane %v3489, 4
      %v3492 = vrot.slane %v3369, 5
      %v3493 = vsel %vm1653, %v3491, %v3492
      %v3494 = vrot.slane %v3370, 5
      %v3495 = vrot.slane %v3494, 4
      %v3496 = vrot.slane %v3371, 5
      %v3497 = vsel %vm1653, %v3495, %v3496
      %v3498 = vrot.slane %v3496, 4
      %v3499 = vrot.slane %v3372, 5
      %v3500 = vsel %vm1653, %v3498, %v3499
      %v3501 = vrot.slane %v3373, 5
      %v3502 = vrot.slane %v3501, 4
      %v3503 = vrot.slane %v3374, 5
      %v3504 = vsel %vm1653, %v3502, %v3503
      %v3505 = vrot.slane %v3503, 4
      %v3506 = vrot.slane %v3375, 5
      %v3507 = vsel %vm1653, %v3505, %v3506
      %v3508 = vrot.slane %v3376, 5
      %v3509 = vrot.slane %v3508, 4
      %v3510 = vrot.slane %v3377, 5
      %v3511 = vsel %vm1653, %v3509, %v3510
      %v3512 = vrot.slane %v3510, 4
      %v3513 = vrot.slane %v3378, 5
      %v3514 = vsel %vm1653, %v3512, %v3513
      %v3515 = vrot.slane %v3379, 5
      %v3516 = vrot.slane %v3515, 4
      %v3517 = vrot.slane %v3380, 5
      %v3518 = vsel %vm1653, %v3516, %v3517
      %v3519 = vrot.slane %v3517, 4
      %v3520 = vrot.slane %v3381, 5
      %v3521 = vsel %vm1653, %v3519, %v3520
      %v3522 = vrot.slane %v3382, 5
      %v3523 = vrot.slane %v3522, 4
      %v3524 = vrot.slane %v3383, 5
      %v3525 = vsel %vm1653, %v3523, %v3524
      %v3526 = vrot.slane %v3524, 4
      %v3527 = vrot.slane %v3384, 5
      %v3528 = vsel %vm1653, %v3526, %v3527
      %v3529 = vrot.slane %v3385, 5
      %v3530 = vrot.slane %v3529, 4
      %v3531 = vrot.slane %v3386, 5
      %v3532 = vsel %vm1653, %v3530, %v3531
      %v3533 = vrot.slane %v3531, 4
      %v3534 = vrot.slane %v3387, 5
      %v3535 = vsel %vm1653, %v3533, %v3534
      %v3536 = vrot.slane %v3388, 5
      %v3537 = vrot.slane %v3536, 4
      %v3538 = vrot.slane %v3389, 5
      %v3539 = vsel %vm1653, %v3537, %v3538
      %v3540 = vrot.slane %v3538, 4
      %v3541 = vrot.slane %v3390, 5
      %v3542 = vsel %vm1653, %v3540, %v3541
      %v3543 = vrot.slane %v3391, 5
      %v3544 = vrot.slane %v3543, 4
      %v3545 = vrot.slane %v3392, 5
      %v3546 = vsel %vm1653, %v3544, %v3545
      %v3547 = vrot.slane %v3545, 4
      %v3548 = vrot.slane %v3393, 5
      %v3549 = vsel %vm1653, %v3547, %v3548
      %v3550 = vrot.slane %v3394, 5
      %v3551 = vrot.slane %v3550, 4
      %v3552 = vrot.slane %v3395, 5
      %v3553 = vsel %vm1653, %v3551, %v3552
      %v3554 = vrot.slane %v3552, 4
      %v3555 = vrot.slane %v3396, 5
      %v3556 = vsel %vm1653, %v3554, %v3555
      %v3557 = vld [vmem:[#allocation2] sm:$0xff]
      %v3558 = vld [vmem:[#allocation2 + $0x8] sm:$0xff]
      %v3559 = vld [vmem:[#allocation2 + $0x10] sm:$0xff]
      %v3560 = vld [vmem:[#allocation2 + $0x18] sm:$0xff]
      %v3561 = vld [vmem:[#allocation2 + $0x20] sm:$0xff]
      %v3562 = vld [vmem:[#allocation2 + $0x28] sm:$0xff]
      %v3563 = vld [vmem:[#allocation2 + $0x30] sm:$0xff]
      %v3564 = vld [vmem:[#allocation2 + $0x38] sm:$0xff]
      %v3565 = vld [vmem:[#allocation2 + $0x40] sm:$0xff]
      %v3566 = vld [vmem:[#allocation2 + $0x48] sm:$0xff]
      %v3567 = vld [vmem:[#allocation2 + $0x50] sm:$0xff]
      %v3568 = vld [vmem:[#allocation2 + $0x58] sm:$0xff]
      %v3569 = vld [vmem:[#allocation2 + $0x60] sm:$0xff]
      %v3570 = vld [vmem:[#allocation2 + $0x68] sm:$0xff]
      %v3571 = vld [vmem:[#allocation2 + $0x70] sm:$0xff]
      %v3572 = vld [vmem:[#allocation2 + $0x78] sm:$0xff]
      %v3573 = vld [vmem:[#allocation2 + $0x80] sm:$0xff]
      %v3574 = vld [vmem:[#allocation2 + $0x88] sm:$0xff]
      %v3575 = vld [vmem:[#allocation2 + $0x90] sm:$0xff]
      %v3576 = vld [vmem:[#allocation2 + $0x98] sm:$0xff]
      %v3577 = vld [vmem:[#allocation2 + $0xa0] sm:$0xff]
      %v3578 = vld [vmem:[#allocation2 + $0xa8] sm:$0xff]
      %v3579 = vld [vmem:[#allocation2 + $0xb0] sm:$0xff]
      %v3580 = vld [vmem:[#allocation2 + $0xb8] sm:$0xff]
      %v3581 = vld [vmem:[#allocation2 + $0xc0] sm:$0xff]
      %v3582 = vld [vmem:[#allocation2 + $0xc8] sm:$0xff]
      %v3583 = vld [vmem:[#allocation2 + $0xd0] sm:$0xff]
      %v3584 = vld [vmem:[#allocation2 + $0xd8] sm:$0xff]
      %v3585 = vld [vmem:[#allocation2 + $0xe0] sm:$0xff]
      %v3586 = vld [vmem:[#allocation2 + $0xe8] sm:$0xff]
      %v3587 = vld [vmem:[#allocation2 + $0xf0] sm:$0xff]
      %v3588 = vld [vmem:[#allocation2 + $0xf8] sm:$0xff]
      %s3589 = scalar_lea.vmem %s273, 40
      %v3590 = vld [vmem:[%s3589] sm:$0xf]
      %v3591 = vld [vmem:[%s3589 + $0x4] sm:$0xf]
      %v3592 = vunpack.c.l.b16 %v3448
      %v3593 = vunpack.c.l.b16 %v3451
      %v3594 = vunpack.c.l.b16 %v3455
      %v3595 = vunpack.c.l.b16 %v3458
      %v3596 = vunpack.c.l.b16 %v3462
      %v3597 = vunpack.c.l.b16 %v3465
      %v3598 = vunpack.c.l.b16 %v3469
      %v3599 = vunpack.c.l.b16 %v3472
      %v3600 = vunpack.c.l.b16 %v3476
      %v3601 = vunpack.c.l.b16 %v3479
      %v3602 = vunpack.c.l.b16 %v3483
      %v3603 = vunpack.c.l.b16 %v3486
      %v3604 = vunpack.c.l.b16 %v3490
      %v3605 = vunpack.c.l.b16 %v3493
      %v3606 = vunpack.c.l.b16 %v3497
      %v3607 = vunpack.c.l.b16 %v3500
      %v3608 = vunpack.c.l.b16 %v3504
      %v3609 = vunpack.c.l.b16 %v3507
      %v3610 = vunpack.c.l.b16 %v3511
      %v3611 = vunpack.c.l.b16 %v3514
      %v3612 = vunpack.c.l.b16 %v3518
      %v3613 = vunpack.c.l.b16 %v3521
      %v3614 = vunpack.c.l.b16 %v3525
      %v3615 = vunpack.c.l.b16 %v3528
      %v3616 = vunpack.c.l.b16 %v3532
      %v3617 = vunpack.c.l.b16 %v3535
      %v3618 = vunpack.c.l.b16 %v3539
      %v3619 = vunpack.c.l.b16 %v3542
      %v3620 = vunpack.c.l.b16 %v3546
      %v3621 = vunpack.c.l.b16 %v3549
      %v3622 = vunpack.c.l.b16 %v3553
      %v3623 = vunpack.c.l.b16 %v3556
      %v3624 = vpack.c.b16 %v3593, %v3592
      %v3625 = vpack.c.b16 %v3595, %v3594
      %v3626 = vpack.c.b16 %v3597, %v3596
      %v3627 = vpack.c.b16 %v3599, %v3598
      %v3628 = vpack.c.b16 %v3601, %v3600
      %v3629 = vpack.c.b16 %v3603, %v3602
      %v3630 = vpack.c.b16 %v3605, %v3604
      %v3631 = vpack.c.b16 %v3607, %v3606
      %v3632 = vpack.c.b16 %v3609, %v3608
      %v3633 = vpack.c.b16 %v3611, %v3610
      %v3634 = vpack.c.b16 %v3613, %v3612
      %v3635 = vpack.c.b16 %v3615, %v3614
      %v3636 = vpack.c.b16 %v3617, %v3616
      %v3637 = vpack.c.b16 %v3619, %v3618
      %v3638 = vpack.c.b16 %v3621, %v3620
      %v3639 = vpack.c.b16 %v3623, %v3622
      %v3642 = vunpack.c.l.b16 %v3590
      %v3643 = vunpack.c.l.b16 %v3591
      %v3644 = vpack.c.b16 %v3643, %v3642
      %v3647 = vsel %vm483, %v3624, 0
      %v3650 = vsel %vm483, %v3625, 0
      %v3653 = vsel %vm483, %v3626, 0
      %v3656 = vsel %vm483, %v3627, 0
      %v3659 = vsel %vm483, %v3628, 0
      %v3662 = vsel %vm483, %v3629, 0
      %v3665 = vsel %vm483, %v3630, 0
      %v3668 = vsel %vm483, %v3631, 0
      %v3671 = vsel %vm483, %v3632, 0
      %v3674 = vsel %vm483, %v3633, 0
      %v3677 = vsel %vm483, %v3634, 0
      %v3680 = vsel %vm483, %v3635, 0
      %v3683 = vsel %vm483, %v3636, 0
      %v3686 = vsel %vm483, %v3637, 0
      %v3689 = vsel %vm483, %v3638, 0
      %v3692 = vsel %vm483, %v3639, 0
      %3694 = vmatprep.subr.bf16.mxu0 0
      %3695 = vmatpush1.bf16.msra.mxu0 %v3644
      %3696 = vmatprep.subr.bf16.mxu0 0
      %3697 = vmatpush1.bf16.msra.mxu0 0
      %3698 = vmatprep.subr.bf16.mxu0 0
      %3699 = vmatpush1.bf16.msra.mxu0 0
      %3700 = vmatprep.subr.bf16.mxu0 0
      %3701 = vmatpush1.bf16.msra.mxu0 0
      %3702 = vmatprep.subr.bf16.mxu0 0
      %3703 = vmatpush1.bf16.msra.mxu0 0
      %3704 = vmatprep.subr.bf16.mxu0 0
      %3705 = vmatpush1.bf16.msra.mxu0 0
      %3706 = vmatprep.subr.bf16.mxu0 0
      %3707 = vmatpush1.bf16.msra.mxu0 0
      %3708 = vmatprep.subr.bf16.mxu0 0
      %3709 = vmatpush1.bf16.msra.mxu0 0
      %3710 = vmatprep.subr.bf16.mxu0 0
      %3711 = vmatpush1.bf16.msra.mxu0 0
      %3712 = vmatprep.subr.bf16.mxu0 0
      %3713 = vmatpush1.bf16.msra.mxu0 0
      %3714 = vmatprep.subr.bf16.mxu0 0
      %3715 = vmatpush1.bf16.msra.mxu0 0
      %3716 = vmatprep.subr.bf16.mxu0 0
      %3717 = vmatpush1.bf16.msra.mxu0 0
      %3718 = vmatprep.subr.bf16.mxu0 0
      %3719 = vmatpush1.bf16.msra.mxu0 0
      %3720 = vmatprep.subr.bf16.mxu0 0
      %3721 = vmatpush1.bf16.msra.mxu0 0
      %3722 = vmatprep.subr.bf16.mxu0 0
      %3723 = vmatpush1.bf16.msra.mxu0 0
      %3724 = vmatprep.subr.bf16.mxu0 0
      %3725 = vmatpush1.bf16.msra.mxu0 0
      %3726 = vmatprep.mubr.bf16.mxu0 0
      %3727 = vmatmul.mubr.bf16.gmra.mrb[0].mxu0 %v3647
      %v3728 = vpop.f32.mrb[0].mxu0
      %v3729 = vadd.f32 0.0, %v3728
      %v3730 = vpop.f32.mrb[0].mxu0
      %v3731 = vpop.f32.mrb[0].mxu0
      %v3732 = vadd.f32 0.0, %v3731
      %v3733 = vpop.f32.mrb[0].mxu0
      %3734 = vmatprep.mubr.bf16.mxu0 0
      %3735 = vmatmul.mubr.bf16.gmra.mrb[0].mxu0 %v3650
      %v3736 = vpop.f32.mrb[0].mxu0
      %v3737 = vadd.f32 0.0, %v3736
      %v3738 = vpop.f32.mrb[0].mxu0
      %v3739 = vpop.f32.mrb[0].mxu0
      %v3740 = vadd.f32 0.0, %v3739
      %v3741 = vpop.f32.mrb[0].mxu0
      %3742 = vmatprep.mubr.bf16.mxu0 0
      %3743 = vmatmul.mubr.bf16.gmra.mrb[0].mxu0 %v3653
      %v3744 = vpop.f32.mrb[0].mxu0
      %v3745 = vadd.f32 0.0, %v3744
      %v3746 = vpop.f32.mrb[0].mxu0
      %v3747 = vpop.f32.mrb[0].mxu0
      %v3748 = vadd.f32 0.0, %v3747
      %v3749 = vpop.f32.mrb[0].mxu0
      %3750 = vmatprep.mubr.bf16.mxu0 0
      %3751 = vmatmul.mubr.bf16.gmra.mrb[0].mxu0 %v3656
      %v3752 = vpop.f32.mrb[0].mxu0
      %v3753 = vadd.f32 0.0, %v3752
      %v3754 = vpop.f32.mrb[0].mxu0
      %v3755 = vpop.f32.mrb[0].mxu0
      %v3756 = vadd.f32 0.0, %v3755
      %v3757 = vpop.f32.mrb[0].mxu0
      %3758 = vmatprep.mubr.bf16.mxu0 0
      %3759 = vmatmul.mubr.bf16.gmra.mrb[0].mxu0 %v3659
      %v3760 = vpop.f32.mrb[0].mxu0
      %v3761 = vadd.f32 0.0, %v3760
      %v3762 = vpop.f32.mrb[0].mxu0
      %v3763 = vpop.f32.mrb[0].mxu0
      %v3764 = vadd.f32 0.0, %v3763
      %v3765 = vpop.f32.mrb[0].mxu0
      %3766 = vmatprep.mubr.bf16.mxu0 0
      %3767 = vmatmul.mubr.bf16.gmra.mrb[0].mxu0 %v3662
      %v3768 = vpop.f32.mrb[0].mxu0
      %v3769 = vadd.f32 0.0, %v3768
      %v3770 = vpop.f32.mrb[0].mxu0
      %v3771 = vpop.f32.mrb[0].mxu0
      %v3772 = vadd.f32 0.0, %v3771
      %v3773 = vpop.f32.mrb[0].mxu0
      %3774 = vmatprep.mubr.bf16.mxu0 0
      %3775 = vmatmul.mubr.bf16.gmra.mrb[0].mxu0 %v3665
      %v3776 = vpop.f32.mrb[0].mxu0
      %v3777 = vadd.f32 0.0, %v3776
      %v3778 = vpop.f32.mrb[0].mxu0
      %v3779 = vpop.f32.mrb[0].mxu0
      %v3780 = vadd.f32 0.0, %v3779
      %v3781 = vpop.f32.mrb[0].mxu0
      %3782 = vmatprep.mubr.bf16.mxu0 0
      %3783 = vmatmul.mubr.bf16.gmra.mrb[0].mxu0 %v3668
      %v3784 = vpop.f32.mrb[0].mxu0
      %v3785 = vadd.f32 0.0, %v3784
      %v3786 = vpop.f32.mrb[0].mxu0
      %v3787 = vpop.f32.mrb[0].mxu0
      %v3788 = vadd.f32 0.0, %v3787
      %v3789 = vpop.f32.mrb[0].mxu0
      %3790 = vmatprep.mubr.bf16.mxu0 0
      %3791 = vmatmul.mubr.bf16.gmra.mrb[0].mxu0 %v3671
      %v3792 = vpop.f32.mrb[0].mxu0
      %v3793 = vadd.f32 0.0, %v3792
      %v3794 = vpop.f32.mrb[0].mxu0
      %v3795 = vpop.f32.mrb[0].mxu0
      %v3796 = vadd.f32 0.0, %v3795
      %v3797 = vpop.f32.mrb[0].mxu0
      %3798 = vmatprep.mubr.bf16.mxu0 0
      %3799 = vmatmul.mubr.bf16.gmra.mrb[0].mxu0 %v3674
      %v3800 = vpop.f32.mrb[0].mxu0
      %v3801 = vadd.f32 0.0, %v3800
      %v3802 = vpop.f32.mrb[0].mxu0
      %v3803 = vpop.f32.mrb[0].mxu0
      %v3804 = vadd.f32 0.0, %v3803
      %v3805 = vpop.f32.mrb[0].mxu0
      %3806 = vmatprep.mubr.bf16.mxu0 0
      %3807 = vmatmul.mubr.bf16.gmra.mrb[0].mxu0 %v3677
      %v3808 = vpop.f32.mrb[0].mxu0
      %v3809 = vadd.f32 0.0, %v3808
      %v3810 = vpop.f32.mrb[0].mxu0
      %v3811 = vpop.f32.mrb[0].mxu0
      %v3812 = vadd.f32 0.0, %v3811
      %v3813 = vpop.f32.mrb[0].mxu0
      %3814 = vmatprep.mubr.bf16.mxu0 0
      %3815 = vmatmul.mubr.bf16.gmra.mrb[0].mxu0 %v3680
      %v3816 = vpop.f32.mrb[0].mxu0
      %v3817 = vadd.f32 0.0, %v3816
      %v3818 = vpop.f32.mrb[0].mxu0
      %v3819 = vpop.f32.mrb[0].mxu0
      %v3820 = vadd.f32 0.0, %v3819
      %v3821 = vpop.f32.mrb[0].mxu0
      %3822 = vmatprep.mubr.bf16.mxu0 0
      %3823 = vmatmul.mubr.bf16.gmra.mrb[0].mxu0 %v3683
      %v3824 = vpop.f32.mrb[0].mxu0
      %v3825 = vadd.f32 0.0, %v3824
      %v3826 = vpop.f32.mrb[0].mxu0
      %v3827 = vpop.f32.mrb[0].mxu0
      %v3828 = vadd.f32 0.0, %v3827
      %v3829 = vpop.f32.mrb[0].mxu0
      %3830 = vmatprep.mubr.bf16.mxu0 0
      %3831 = vmatmul.mubr.bf16.gmra.mrb[0].mxu0 %v3686
      %v3832 = vpop.f32.mrb[0].mxu0
      %v3833 = vadd.f32 0.0, %v3832
      %v3834 = vpop.f32.mrb[0].mxu0
      %v3835 = vpop.f32.mrb[0].mxu0
      %v3836 = vadd.f32 0.0, %v3835
      %v3837 = vpop.f32.mrb[0].mxu0
      %3838 = vmatprep.mubr.bf16.mxu0 0
      %3839 = vmatmul.mubr.bf16.gmra.mrb[0].mxu0 %v3689
      %v3840 = vpop.f32.mrb[0].mxu0
      %v3841 = vadd.f32 0.0, %v3840
      %v3842 = vpop.f32.mrb[0].mxu0
      %v3843 = vpop.f32.mrb[0].mxu0
      %v3844 = vadd.f32 0.0, %v3843
      %v3845 = vpop.f32.mrb[0].mxu0
      %3846 = vmatprep.mubr.bf16.mxu0 0
      %3847 = vmatmul.mubr.bf16.gmra.mrb[0].mxu0 %v3692
      %v3848 = vpop.f32.mrb[0].mxu0
      %v3849 = vadd.f32 0.0, %v3848
      %v3850 = vpop.f32.mrb[0].mxu0
      %v3851 = vpop.f32.mrb[0].mxu0
      %v3852 = vadd.f32 0.0, %v3851
      %v3853 = vpop.f32.mrb[0].mxu0
      %3854 = vdwg.mxu0
      %v3855 = vadd.f32 %v3557, %v3729
      %v3856 = vadd.f32 %v3558, %v3732
      %v3857 = vadd.f32 %v3559, %v3737
      %v3858 = vadd.f32 %v3560, %v3740
      %v3859 = vadd.f32 %v3561, %v3745
      %v3860 = vadd.f32 %v3562, %v3748
      %v3861 = vadd.f32 %v3563, %v3753
      %v3862 = vadd.f32 %v3564, %v3756
      %v3863 = vadd.f32 %v3565, %v3761
      %v3864 = vadd.f32 %v3566, %v3764
      %v3865 = vadd.f32 %v3567, %v3769
      %v3866 = vadd.f32 %v3568, %v3772
      %v3867 = vadd.f32 %v3569, %v3777
      %v3868 = vadd.f32 %v3570, %v3780
      %v3869 = vadd.f32 %v3571, %v3785
      %v3870 = vadd.f32 %v3572, %v3788
      %v3871 = vadd.f32 %v3573, %v3793
      %v3872 = vadd.f32 %v3574, %v3796
      %v3873 = vadd.f32 %v3575, %v3801
      %v3874 = vadd.f32 %v3576, %v3804
      %v3875 = vadd.f32 %v3577, %v3809
      %v3876 = vadd.f32 %v3578, %v3812
      %v3877 = vadd.f32 %v3579, %v3817
      %v3878 = vadd.f32 %v3580, %v3820
      %v3879 = vadd.f32 %v3581, %v3825
      %v3880 = vadd.f32 %v3582, %v3828
      %v3881 = vadd.f32 %v3583, %v3833
      %v3882 = vadd.f32 %v3584, %v3836
      %v3883 = vadd.f32 %v3585, %v3841
      %v3884 = vadd.f32 %v3586, %v3844
      %v3885 = vadd.f32 %v3587, %v3849
      %v3886 = vadd.f32 %v3588, %v3852
      %3887 = vst.msk [vmem:[#allocation2] sm:$0xff] %vm725, %v3855
      %3888 = vst.msk [vmem:[#allocation2 + $0x8] sm:$0xff] %vm725, %v3856
      %3889 = vst.msk [vmem:[#allocation2 + $0x10] sm:$0xff] %vm725, %v3857
      %3890 = vst.msk [vmem:[#allocation2 + $0x18] sm:$0xff] %vm725, %v3858
      %3891 = vst.msk [vmem:[#allocation2 + $0x20] sm:$0xff] %vm725, %v3859
      %3892 = vst.msk [vmem:[#allocation2 + $0x28] sm:$0xff] %vm725, %v3860
      %3893 = vst.msk [vmem:[#allocation2 + $0x30] sm:$0xff] %vm725, %v3861
      %3894 = vst.msk [vmem:[#allocation2 + $0x38] sm:$0xff] %vm725, %v3862
      %3895 = vst.msk [vmem:[#allocation2 + $0x40] sm:$0xff] %vm725, %v3863
      %3896 = vst.msk [vmem:[#allocation2 + $0x48] sm:$0xff] %vm725, %v3864
      %3897 = vst.msk [vmem:[#allocation2 + $0x50] sm:$0xff] %vm725, %v3865
      %3898 = vst.msk [vmem:[#allocation2 + $0x58] sm:$0xff] %vm725, %v3866
      %3899 = vst.msk [vmem:[#allocation2 + $0x60] sm:$0xff] %vm725, %v3867
      %3900 = vst.msk [vmem:[#allocation2 + $0x68] sm:$0xff] %vm725, %v3868
      %3901 = vst.msk [vmem:[#allocation2 + $0x70] sm:$0xff] %vm725, %v3869
      %3902 = vst.msk [vmem:[#allocation2 + $0x78] sm:$0xff] %vm725, %v3870
      %3903 = vst.msk [vmem:[#allocation2 + $0x80] sm:$0xff] %vm725, %v3871
      %3904 = vst.msk [vmem:[#allocation2 + $0x88] sm:$0xff] %vm725, %v3872
      %3905 = vst.msk [vmem:[#allocation2 + $0x90] sm:$0xff] %vm725, %v3873
      %3906 = vst.msk [vmem:[#allocation2 + $0x98] sm:$0xff] %vm725, %v3874
      %3907 = vst.msk [vmem:[#allocation2 + $0xa0] sm:$0xff] %vm725, %v3875
      %3908 = vst.msk [vmem:[#allocation2 + $0xa8] sm:$0xff] %vm725, %v3876
      %3909 = vst.msk [vmem:[#allocation2 + $0xb0] sm:$0xff] %vm725, %v3877
      %3910 = vst.msk [vmem:[#allocation2 + $0xb8] sm:$0xff] %vm725, %v3878
      %3911 = vst.msk [vmem:[#allocation2 + $0xc0] sm:$0xff] %vm725, %v3879
      %3912 = vst.msk [vmem:[#allocation2 + $0xc8] sm:$0xff] %vm725, %v3880
      %3913 = vst.msk [vmem:[#allocation2 + $0xd0] sm:$0xff] %vm725, %v3881
      %3914 = vst.msk [vmem:[#allocation2 + $0xd8] sm:$0xff] %vm725, %v3882
      %3915 = vst.msk [vmem:[#allocation2 + $0xe0] sm:$0xff] %vm725, %v3883
      %3916 = vst.msk [vmem:[#allocation2 + $0xe8] sm:$0xff] %vm725, %v3884
      %3917 = vst.msk [vmem:[#allocation2 + $0xf0] sm:$0xff] %vm725, %v3885
      %3918 = vst.msk [vmem:[#allocation2 + $0xf8] sm:$0xff] %vm725, %v3886
      %s3919 = scalar_lea.vmem %s265, 24
      %v3920 = vld [vmem:[%s3919] sm:$0xf]
      %v3921 = vld [vmem:[%s3919 + $0x4] sm:$0xf]
      %v3922 = vld [vmem:[%s3919 + $0xc] sm:$0xf]
      %v3923 = vld [vmem:[%s3919 + $0x10] sm:$0xf]
      %v3924 = vld [vmem:[%s3919 + $0x18] sm:$0xf]
      %v3925 = vld [vmem:[%s3919 + $0x1c] sm:$0xf]
      %v3926 = vld [vmem:[%s3919 + $0x24] sm:$0xf]
      %v3927 = vld [vmem:[%s3919 + $0x28] sm:$0xf]
      %v3928 = vld [vmem:[%s3919 + $0x30] sm:$0xf]
      %v3929 = vld [vmem:[%s3919 + $0x34] sm:$0xf]
      %v3930 = vld [vmem:[%s3919 + $0x3c] sm:$0xf]
      %v3931 = vld [vmem:[%s3919 + $0x40] sm:$0xf]
      %v3932 = vld [vmem:[%s3919 + $0x48] sm:$0xf]
      %v3933 = vld [vmem:[%s3919 + $0x4c] sm:$0xf]
      %v3934 = vld [vmem:[%s3919 + $0x54] sm:$0xf]
      %v3935 = vld [vmem:[%s3919 + $0x58] sm:$0xf]
      %v3936 = vld [vmem:[%s3919 + $0x60] sm:$0xf]
      %v3937 = vld [vmem:[%s3919 + $0x64] sm:$0xf]
      %v3938 = vld [vmem:[%s3919 + $0x6c] sm:$0xf]
      %v3939 = vld [vmem:[%s3919 + $0x70] sm:$0xf]
      %v3940 = vld [vmem:[%s3919 + $0x78] sm:$0xf]
      %v3941 = vld [vmem:[%s3919 + $0x7c] sm:$0xf]
      %v3942 = vld [vmem:[%s3919 + $0x84] sm:$0xf]
      %v3943 = vld [vmem:[%s3919 + $0x88] sm:$0xf]
      %v3944 = vld [vmem:[%s3919 + $0x90] sm:$0xf]
      %v3945 = vld [vmem:[%s3919 + $0x94] sm:$0xf]
      %v3946 = vld [vmem:[%s3919 + $0x9c] sm:$0xf]
      %v3947 = vld [vmem:[%s3919 + $0xa0] sm:$0xf]
      %v3948 = vld [vmem:[%s3919 + $0xa8] sm:$0xf]
      %v3949 = vld [vmem:[%s3919 + $0xac] sm:$0xf]
      %v3950 = vld [vmem:[%s3919 + $0xb4] sm:$0xf]
      %v3951 = vld [vmem:[%s3919 + $0xb8] sm:$0xf]
      %v3952 = vld [vmem:[#allocation2] sm:$0xff]
      %v3953 = vld [vmem:[#allocation2 + $0x8] sm:$0xff]
      %v3954 = vld [vmem:[#allocation2 + $0x10] sm:$0xff]
      %v3955 = vld [vmem:[#allocation2 + $0x18] sm:$0xff]
      %v3956 = vld [vmem:[#allocation2 + $0x20] sm:$0xff]
      %v3957 = vld [vmem:[#allocation2 + $0x28] sm:$0xff]
      %v3958 = vld [vmem:[#allocation2 + $0x30] sm:$0xff]
      %v3959 = vld [vmem:[#allocation2 + $0x38] sm:$0xff]
      %v3960 = vld [vmem:[#allocation2 + $0x40] sm:$0xff]
      %v3961 = vld [vmem:[#allocation2 + $0x48] sm:$0xff]
      %v3962 = vld [vmem:[#allocation2 + $0x50] sm:$0xff]
      %v3963 = vld [vmem:[#allocation2 + $0x58] sm:$0xff]
      %v3964 = vld [vmem:[#allocation2 + $0x60] sm:$0xff]
      %v3965 = vld [vmem:[#allocation2 + $0x68] sm:$0xff]
      %v3966 = vld [vmem:[#allocation2 + $0x70] sm:$0xff]
      %v3967 = vld [vmem:[#allocation2 + $0x78] sm:$0xff]
      %v3968 = vld [vmem:[#allocation2 + $0x80] sm:$0xff]
      %v3969 = vld [vmem:[#allocation2 + $0x88] sm:$0xff]
      %v3970 = vld [vmem:[#allocation2 + $0x90] sm:$0xff]
      %v3971 = vld [vmem:[#allocation2 + $0x98] sm:$0xff]
      %v3972 = vld [vmem:[#allocation2 + $0xa0] sm:$0xff]
      %v3973 = vld [vmem:[#allocation2 + $0xa8] sm:$0xff]
      %v3974 = vld [vmem:[#allocation2 + $0xb0] sm:$0xff]
      %v3975 = vld [vmem:[#allocation2 + $0xb8] sm:$0xff]
      %v3976 = vld [vmem:[#allocation2 + $0xc0] sm:$0xff]
      %v3977 = vld [vmem:[#allocation2 + $0xc8] sm:$0xff]
      %v3978 = vld [vmem:[#allocation2 + $0xd0] sm:$0xff]
      %v3979 = vld [vmem:[#allocation2 + $0xd8] sm:$0xff]
      %v3980 = vld [vmem:[#allocation2 + $0xe0] sm:$0xff]
      %v3981 = vld [vmem:[#allocation2 + $0xe8] sm:$0xff]
      %v3982 = vld [vmem:[#allocation2 + $0xf0] sm:$0xff]
      %v3983 = vld [vmem:[#allocation2 + $0xf8] sm:$0xff]
      %s3984 = scalar_lea.vmem %s273, 48
      %v3985 = vld [vmem:[%s3984] sm:$0xf]
      %v3986 = vld [vmem:[%s3984 + $0x4] sm:$0xf]
      %v4019 = vunpack.c.l.b16 %v3920
      %v4020 = vunpack.c.l.b16 %v3921
      %v4021 = vunpack.c.l.b16 %v3922
      %v4022 = vunpack.c.l.b16 %v3923
      %v4023 = vunpack.c.l.b16 %v3924
      %v4024 = vunpack.c.l.b16 %v3925
      %v4025 = vunpack.c.l.b16 %v3926
      %v4026 = vunpack.c.l.b16 %v3927
      %v4027 = vunpack.c.l.b16 %v3928
      %v4028 = vunpack.c.l.b16 %v3929
      %v4029 = vunpack.c.l.b16 %v3930
      %v4030 = vunpack.c.l.b16 %v3931
      %v4031 = vunpack.c.l.b16 %v3932
      %v4032 = vunpack.c.l.b16 %v3933
      %v4033 = vunpack.c.l.b16 %v3934
      %v4034 = vunpack.c.l.b16 %v3935
      %v4035 = vunpack.c.l.b16 %v3936
      %v4036 = vunpack.c.l.b16 %v3937
      %v4037 = vunpack.c.l.b16 %v3938
      %v4038 = vunpack.c.l.b16 %v3939
      %v4039 = vunpack.c.l.b16 %v3940
      %v4040 = vunpack.c.l.b16 %v3941
      %v4041 = vunpack.c.l.b16 %v3942
      %v4042 = vunpack.c.l.b16 %v3943
      %v4043 = vunpack.c.l.b16 %v3944
      %v4044 = vunpack.c.l.b16 %v3945
      %v4045 = vunpack.c.l.b16 %v3946
      %v4046 = vunpack.c.l.b16 %v3947
      %v4047 = vunpack.c.l.b16 %v3948
      %v4048 = vunpack.c.l.b16 %v3949
      %v4049 = vunpack.c.l.b16 %v3950
      %v4050 = vunpack.c.l.b16 %v3951
      %v4051 = vpack.c.b16 %v4020, %v4019
      %v4052 = vpack.c.b16 %v4022, %v4021
      %v4053 = vpack.c.b16 %v4024, %v4023
      %v4054 = vpack.c.b16 %v4026, %v4025
      %v4055 = vpack.c.b16 %v4028, %v4027
      %v4056 = vpack.c.b16 %v4030, %v4029
      %v4057 = vpack.c.b16 %v4032, %v4031
      %v4058 = vpack.c.b16 %v4034, %v4033
      %v4059 = vpack.c.b16 %v4036, %v4035
      %v4060 = vpack.c.b16 %v4038, %v4037
      %v4061 = vpack.c.b16 %v4040, %v4039
      %v4062 = vpack.c.b16 %v4042, %v4041
      %v4063 = vpack.c.b16 %v4044, %v4043
      %v4064 = vpack.c.b16 %v4046, %v4045
      %v4065 = vpack.c.b16 %v4048, %v4047
      %v4066 = vpack.c.b16 %v4050, %v4049
      %v4069 = vunpack.c.l.b16 %v3985
      %v4070 = vunpack.c.l.b16 %v3986
      %v4071 = vpack.c.b16 %v4070, %v4069
      %v4074 = vsel %vm483, %v4051, 0
      %v4077 = vsel %vm483, %v4052, 0
      %v4080 = vsel %vm483, %v4053, 0
      %v4083 = vsel %vm483, %v4054, 0
      %v4086 = vsel %vm483, %v4055, 0
      %v4089 = vsel %vm483, %v4056, 0
      %v4092 = vsel %vm483, %v4057, 0
      %v4095 = vsel %vm483, %v4058, 0
      %v4098 = vsel %vm483, %v4059, 0
      %v4101 = vsel %vm483, %v4060, 0
      %v4104 = vsel %vm483, %v4061, 0
      %v4107 = vsel %vm483, %v4062, 0
      %v4110 = vsel %vm483, %v4063, 0
      %v4113 = vsel %vm483, %v4064, 0
      %v4116 = vsel %vm483, %v4065, 0
      %v4119 = vsel %vm483, %v4066, 0
      %4121 = vmatprep.subr.bf16.mxu0 0
      %4122 = vmatpush1.bf16.msra.mxu0 %v4071
      %4123 = vmatprep.subr.bf16.mxu0 0
      %4124 = vmatpush1.bf16.msra.mxu0 0
      %4125 = vmatprep.subr.bf16.mxu0 0
      %4126 = vmatpush1.bf16.msra.mxu0 0
      %4127 = vmatprep.subr.bf16.mxu0 0
      %4128 = vmatpush1.bf16.msra.mxu0 0
      %4129 = vmatprep.subr.bf16.mxu0 0
      %4130 = vmatpush1.bf16.msra.mxu0 0
      %4131 = vmatprep.subr.bf16.mxu0 0
      %4132 = vmatpush1.bf16.msra.mxu0 0
      %4133 = vmatprep.subr.bf16.mxu0 0
      %4134 = vmatpush1.bf16.msra.mxu0 0
      %4135 = vmatprep.subr.bf16.mxu0 0
      %4136 = vmatpush1.bf16.msra.mxu0 0
      %4137 = vmatprep.subr.bf16.mxu0 0
      %4138 = vmatpush1.bf16.msra.mxu0 0
      %4139 = vmatprep.subr.bf16.mxu0 0
      %4140 = vmatpush1.bf16.msra.mxu0 0
      %4141 = vmatprep.subr.bf16.mxu0 0
      %4142 = vmatpush1.bf16.msra.mxu0 0
      %4143 = vmatprep.subr.bf16.mxu0 0
      %4144 = vmatpush1.bf16.msra.mxu0 0
      %4145 = vmatprep.subr.bf16.mxu0 0
      %4146 = vmatpush1.bf16.msra.mxu0 0
      %4147 = vmatprep.subr.bf16.mxu0 0
      %4148 = vmatpush1.bf16.msra.mxu0 0
      %4149 = vmatprep.subr.bf16.mxu0 0
      %4150 = vmatpush1.bf16.msra.mxu0 0
      %4151 = vmatprep.subr.bf16.mxu0 0
      %4152 = vmatpush1.bf16.msra.mxu0 0
      %4153 = vmatprep.mubr.bf16.mxu0 0
      %4154 = vmatmul.mubr.bf16.gmra.mrb[0].mxu0 %v4074
      %v4155 = vpop.f32.mrb[0].mxu0
      %v4156 = vadd.f32 0.0, %v4155
      %v4157 = vpop.f32.mrb[0].mxu0
      %v4158 = vpop.f32.mrb[0].mxu0
      %v4159 = vadd.f32 0.0, %v4158
      %v4160 = vpop.f32.mrb[0].mxu0
      %4161 = vmatprep.mubr.bf16.mxu0 0
      %4162 = vmatmul.mubr.bf16.gmra.mrb[0].mxu0 %v4077
      %v4163 = vpop.f32.mrb[0].mxu0
      %v4164 = vadd.f32 0.0, %v4163
      %v4165 = vpop.f32.mrb[0].mxu0
      %v4166 = vpop.f32.mrb[0].mxu0
      %v4167 = vadd.f32 0.0, %v4166
      %v4168 = vpop.f32.mrb[0].mxu0
      %4169 = vmatprep.mubr.bf16.mxu0 0
      %4170 = vmatmul.mubr.bf16.gmra.mrb[0].mxu0 %v4080
      %v4171 = vpop.f32.mrb[0].mxu0
      %v4172 = vadd.f32 0.0, %v4171
      %v4173 = vpop.f32.mrb[0].mxu0
      %v4174 = vpop.f32.mrb[0].mxu0
      %v4175 = vadd.f32 0.0, %v4174
      %v4176 = vpop.f32.mrb[0].mxu0
      %4177 = vmatprep.mubr.bf16.mxu0 0
      %4178 = vmatmul.mubr.bf16.gmra.mrb[0].mxu0 %v4083
      %v4179 = vpop.f32.mrb[0].mxu0
      %v4180 = vadd.f32 0.0, %v4179
      %v4181 = vpop.f32.mrb[0].mxu0
      %v4182 = vpop.f32.mrb[0].mxu0
      %v4183 = vadd.f32 0.0, %v4182
      %v4184 = vpop.f32.mrb[0].mxu0
      %4185 = vmatprep.mubr.bf16.mxu0 0
      %4186 = vmatmul.mubr.bf16.gmra.mrb[0].mxu0 %v4086
      %v4187 = vpop.f32.mrb[0].mxu0
      %v4188 = vadd.f32 0.0, %v4187
      %v4189 = vpop.f32.mrb[0].mxu0
      %v4190 = vpop.f32.mrb[0].mxu0
      %v4191 = vadd.f32 0.0, %v4190
      %v4192 = vpop.f32.mrb[0].mxu0
      %4193 = vmatprep.mubr.bf16.mxu0 0
      %4194 = vmatmul.mubr.bf16.gmra.mrb[0].mxu0 %v4089
      %v4195 = vpop.f32.mrb[0].mxu0
      %v4196 = vadd.f32 0.0, %v4195
      %v4197 = vpop.f32.mrb[0].mxu0
      %v4198 = vpop.f32.mrb[0].mxu0
      %v4199 = vadd.f32 0.0, %v4198
      %v4200 = vpop.f32.mrb[0].mxu0
      %4201 = vmatprep.mubr.bf16.mxu0 0
      %4202 = vmatmul.mubr.bf16.gmra.mrb[0].mxu0 %v4092
      %v4203 = vpop.f32.mrb[0].mxu0
      %v4204 = vadd.f32 0.0, %v4203
      %v4205 = vpop.f32.mrb[0].mxu0
      %v4206 = vpop.f32.mrb[0].mxu0
      %v4207 = vadd.f32 0.0, %v4206
      %v4208 = vpop.f32.mrb[0].mxu0
      %4209 = vmatprep.mubr.bf16.mxu0 0
      %4210 = vmatmul.mubr.bf16.gmra.mrb[0].mxu0 %v4095
      %v4211 = vpop.f32.mrb[0].mxu0
      %v4212 = vadd.f32 0.0, %v4211
      %v4213 = vpop.f32.mrb[0].mxu0
      %v4214 = vpop.f32.mrb[0].mxu0
      %v4215 = vadd.f32 0.0, %v4214
      %v4216 = vpop.f32.mrb[0].mxu0
      %4217 = vmatprep.mubr.bf16.mxu0 0
      %4218 = vmatmul.mubr.bf16.gmra.mrb[0].mxu0 %v4098
      %v4219 = vpop.f32.mrb[0].mxu0
      %v4220 = vadd.f32 0.0, %v4219
      %v4221 = vpop.f32.mrb[0].mxu0
      %v4222 = vpop.f32.mrb[0].mxu0
      %v4223 = vadd.f32 0.0, %v4222
      %v4224 = vpop.f32.mrb[0].mxu0
      %4225 = vmatprep.mubr.bf16.mxu0 0
      %4226 = vmatmul.mubr.bf16.gmra.mrb[0].mxu0 %v4101
      %v4227 = vpop.f32.mrb[0].mxu0
      %v4228 = vadd.f32 0.0, %v4227
      %v4229 = vpop.f32.mrb[0].mxu0
      %v4230 = vpop.f32.mrb[0].mxu0
      %v4231 = vadd.f32 0.0, %v4230
      %v4232 = vpop.f32.mrb[0].mxu0
      %4233 = vmatprep.mubr.bf16.mxu0 0
      %4234 = vmatmul.mubr.bf16.gmra.mrb[0].mxu0 %v4104
      %v4235 = vpop.f32.mrb[0].mxu0
      %v4236 = vadd.f32 0.0, %v4235
      %v4237 = vpop.f32.mrb[0].mxu0
      %v4238 = vpop.f32.mrb[0].mxu0
      %v4239 = vadd.f32 0.0, %v4238
      %v4240 = vpop.f32.mrb[0].mxu0
      %4241 = vmatprep.mubr.bf16.mxu0 0
      %4242 = vmatmul.mubr.bf16.gmra.mrb[0].mxu0 %v4107
      %v4243 = vpop.f32.mrb[0].mxu0
      %v4244 = vadd.f32 0.0, %v4243
      %v4245 = vpop.f32.mrb[0].mxu0
      %v4246 = vpop.f32.mrb[0].mxu0
      %v4247 = vadd.f32 0.0, %v4246
      %v4248 = vpop.f32.mrb[0].mxu0
      %4249 = vmatprep.mubr.bf16.mxu0 0
      %4250 = vmatmul.mubr.bf16.gmra.mrb[0].mxu0 %v4110
      %v4251 = vpop.f32.mrb[0].mxu0
      %v4252 = vadd.f32 0.0, %v4251
      %v4253 = vpop.f32.mrb[0].mxu0
      %v4254 = vpop.f32.mrb[0].mxu0
      %v4255 = vadd.f32 0.0, %v4254
      %v4256 = vpop.f32.mrb[0].mxu0
      %4257 = vmatprep.mubr.bf16.mxu0 0
      %4258 = vmatmul.mubr.bf16.gmra.mrb[0].mxu0 %v4113
      %v4259 = vpop.f32.mrb[0].mxu0
      %v4260 = vadd.f32 0.0, %v4259
      %v4261 = vpop.f32.mrb[0].mxu0
      %v4262 = vpop.f32.mrb[0].mxu0
      %v4263 = vadd.f32 0.0, %v4262
      %v4264 = vpop.f32.mrb[0].mxu0
      %4265 = vmatprep.mubr.bf16.mxu0 0
      %4266 = vmatmul.mubr.bf16.gmra.mrb[0].mxu0 %v4116
      %v4267 = vpop.f32.mrb[0].mxu0
      %v4268 = vadd.f32 0.0, %v4267
      %v4269 = vpop.f32.mrb[0].mxu0
      %v4270 = vpop.f32.mrb[0].mxu0
      %v4271 = vadd.f32 0.0, %v4270
      %v4272 = vpop.f32.mrb[0].mxu0
      %4273 = vmatprep.mubr.bf16.mxu0 0
      %4274 = vmatmul.mubr.bf16.gmra.mrb[0].mxu0 %v4119
      %v4275 = vpop.f32.mrb[0].mxu0
      %v4276 = vadd.f32 0.0, %v4275
      %v4277 = vpop.f32.mrb[0].mxu0
      %v4278 = vpop.f32.mrb[0].mxu0
      %v4279 = vadd.f32 0.0, %v4278
      %v4280 = vpop.f32.mrb[0].mxu0
      %4281 = vdwg.mxu0
      %v4282 = vadd.f32 %v3952, %v4156
      %v4283 = vadd.f32 %v3953, %v4159
      %v4284 = vadd.f32 %v3954, %v4164
      %v4285 = vadd.f32 %v3955, %v4167
      %v4286 = vadd.f32 %v3956, %v4172
      %v4287 = vadd.f32 %v3957, %v4175
      %v4288 = vadd.f32 %v3958, %v4180
      %v4289 = vadd.f32 %v3959, %v4183
      %v4290 = vadd.f32 %v3960, %v4188
      %v4291 = vadd.f32 %v3961, %v4191
      %v4292 = vadd.f32 %v3962, %v4196
      %v4293 = vadd.f32 %v3963, %v4199
      %v4294 = vadd.f32 %v3964, %v4204
      %v4295 = vadd.f32 %v3965, %v4207
      %v4296 = vadd.f32 %v3966, %v4212
      %v4297 = vadd.f32 %v3967, %v4215
      %v4298 = vadd.f32 %v3968, %v4220
      %v4299 = vadd.f32 %v3969, %v4223
      %v4300 = vadd.f32 %v3970, %v4228
      %v4301 = vadd.f32 %v3971, %v4231
      %v4302 = vadd.f32 %v3972, %v4236
      %v4303 = vadd.f32 %v3973, %v4239
      %v4304 = vadd.f32 %v3974, %v4244
      %v4305 = vadd.f32 %v3975, %v4247
      %v4306 = vadd.f32 %v3976, %v4252
      %v4307 = vadd.f32 %v3977, %v4255
      %v4308 = vadd.f32 %v3978, %v4260
      %v4309 = vadd.f32 %v3979, %v4263
      %v4310 = vadd.f32 %v3980, %v4268
      %v4311 = vadd.f32 %v3981, %v4271
      %v4312 = vadd.f32 %v3982, %v4276
      %v4313 = vadd.f32 %v3983, %v4279
      %4314 = vst.msk [vmem:[#allocation2] sm:$0xff] %vm725, %v4282
      %4315 = vst.msk [vmem:[#allocation2 + $0x8] sm:$0xff] %vm725, %v4283
      %4316 = vst.msk [vmem:[#allocation2 + $0x10] sm:$0xff] %vm725, %v4284
      %4317 = vst.msk [vmem:[#allocation2 + $0x18] sm:$0xff] %vm725, %v4285
      %4318 = vst.msk [vmem:[#allocation2 + $0x20] sm:$0xff] %vm725, %v4286
      %4319 = vst.msk [vmem:[#allocation2 + $0x28] sm:$0xff] %vm725, %v4287
      %4320 = vst.msk [vmem:[#allocation2 + $0x30] sm:$0xff] %vm725, %v4288
      %4321 = vst.msk [vmem:[#allocation2 + $0x38] sm:$0xff] %vm725, %v4289
      %4322 = vst.msk [vmem:[#allocation2 + $0x40] sm:$0xff] %vm725, %v4290
      %4323 = vst.msk [vmem:[#allocation2 + $0x48] sm:$0xff] %vm725, %v4291
      %4324 = vst.msk [vmem:[#allocation2 + $0x50] sm:$0xff] %vm725, %v4292
      %4325 = vst.msk [vmem:[#allocation2 + $0x58] sm:$0xff] %vm725, %v4293
      %4326 = vst.msk [vmem:[#allocation2 + $0x60] sm:$0xff] %vm725, %v4294
      %4327 = vst.msk [vmem:[#allocation2 + $0x68] sm:$0xff] %vm725, %v4295
      %4328 = vst.msk [vmem:[#allocation2 + $0x70] sm:$0xff] %vm725, %v4296
      %4329 = vst.msk [vmem:[#allocation2 + $0x78] sm:$0xff] %vm725, %v4297
      %4330 = vst.msk [vmem:[#allocation2 + $0x80] sm:$0xff] %vm725, %v4298
      %4331 = vst.msk [vmem:[#allocation2 + $0x88] sm:$0xff] %vm725, %v4299
      %4332 = vst.msk [vmem:[#allocation2 + $0x90] sm:$0xff] %vm725, %v4300
      %4333 = vst.msk [vmem:[#allocation2 + $0x98] sm:$0xff] %vm725, %v4301
      %4334 = vst.msk [vmem:[#allocation2 + $0xa0] sm:$0xff] %vm725, %v4302
      %4335 = vst.msk [vmem:[#allocation2 + $0xa8] sm:$0xff] %vm725, %v4303
      %4336 = vst.msk [vmem:[#allocation2 + $0xb0] sm:$0xff] %vm725, %v4304
      %4337 = vst.msk [vmem:[#allocation2 + $0xb8] sm:$0xff] %vm725, %v4305
      %4338 = vst.msk [vmem:[#allocation2 + $0xc0] sm:$0xff] %vm725, %v4306
      %4339 = vst.msk [vmem:[#allocation2 + $0xc8] sm:$0xff] %vm725, %v4307
      %4340 = vst.msk [vmem:[#allocation2 + $0xd0] sm:$0xff] %vm725, %v4308
      %4341 = vst.msk [vmem:[#allocation2 + $0xd8] sm:$0xff] %vm725, %v4309
      %4342 = vst.msk [vmem:[#allocation2 + $0xe0] sm:$0xff] %vm725, %v4310
      %4343 = vst.msk [vmem:[#allocation2 + $0xe8] sm:$0xff] %vm725, %v4311
      %4344 = vst.msk [vmem:[#allocation2 + $0xf0] sm:$0xff] %vm725, %v4312
      %4345 = vst.msk [vmem:[#allocation2 + $0xf8] sm:$0xff] %vm725, %v4313
      %v4346 = vld [vmem:[%s3919] sm:$0xf]
      %v4347 = vld [vmem:[%s3919 + $0x4] sm:$0xf]
      %v4348 = vld [vmem:[%s3919 + $0x8] sm:$0x1]
      %v4349 = vld [vmem:[%s3919 + $0xc] sm:$0xf]
      %v4350 = vld [vmem:[%s3919 + $0x10] sm:$0xf]
      %v4351 = vld [vmem:[%s3919 + $0x14] sm:$0x1]
      %v4352 = vld [vmem:[%s3919 + $0x18] sm:$0xf]
      %v4353 = vld [vmem:[%s3919 + $0x1c] sm:$0xf]
      %v4354 = vld [vmem:[%s3919 + $0x20] sm:$0x1]
      %v4355 = vld [vmem:[%s3919 + $0x24] sm:$0xf]
      %v4356 = vld [vmem:[%s3919 + $0x28] sm:$0xf]
      %v4357 = vld [vmem:[%s3919 + $0x2c] sm:$0x1]
      %v4358 = vld [vmem:[%s3919 + $0x30] sm:$0xf]
      %v4359 = vld [vmem:[%s3919 + $0x34] sm:$0xf]
      %v4360 = vld [vmem:[%s3919 + $0x38] sm:$0x1]
      %v4361 = vld [vmem:[%s3919 + $0x3c] sm:$0xf]
      %v4362 = vld [vmem:[%s3919 + $0x40] sm:$0xf]
      %v4363 = vld [vmem:[%s3919 + $0x44] sm:$0x1]
      %v4364 = vld [vmem:[%s3919 + $0x48] sm:$0xf]
      %v4365 = vld [vmem:[%s3919 + $0x4c] sm:$0xf]
      %v4366 = vld [vmem:[%s3919 + $0x50] sm:$0x1]
      %v4367 = vld [vmem:[%s3919 + $0x54] sm:$0xf]
      %v4368 = vld [vmem:[%s3919 + $0x58] sm:$0xf]
      %v4369 = vld [vmem:[%s3919 + $0x5c] sm:$0x1]
      %v4370 = vld [vmem:[%s3919 + $0x60] sm:$0xf]
      %v4371 = vld [vmem:[%s3919 + $0x64] sm:$0xf]
      %v4372 = vld [vmem:[%s3919 + $0x68] sm:$0x1]
      %v4373 = vld [vmem:[%s3919 + $0x6c] sm:$0xf]
      %v4374 = vld [vmem:[%s3919 + $0x70] sm:$0xf]
      %v4375 = vld [vmem:[%s3919 + $0x74] sm:$0x1]
      %v4376 = vld [vmem:[%s3919 + $0x78] sm:$0xf]
      %v4377 = vld [vmem:[%s3919 + $0x7c] sm:$0xf]
      %v4378 = vld [vmem:[%s3919 + $0x80] sm:$0x1]
      %v4379 = vld [vmem:[%s3919 + $0x84] sm:$0xf]
      %v4380 = vld [vmem:[%s3919 + $0x88] sm:$0xf]
      %v4381 = vld [vmem:[%s3919 + $0x8c] sm:$0x1]
      %v4382 = vld [vmem:[%s3919 + $0x90] sm:$0xf]
      %v4383 = vld [vmem:[%s3919 + $0x94] sm:$0xf]
      %v4384 = vld [vmem:[%s3919 + $0x98] sm:$0x1]
      %v4385 = vld [vmem:[%s3919 + $0x9c] sm:$0xf]
      %v4386 = vld [vmem:[%s3919 + $0xa0] sm:$0xf]
      %v4387 = vld [vmem:[%s3919 + $0xa4] sm:$0x1]
      %v4388 = vld [vmem:[%s3919 + $0xa8] sm:$0xf]
      %v4389 = vld [vmem:[%s3919 + $0xac] sm:$0xf]
      %v4390 = vld [vmem:[%s3919 + $0xb0] sm:$0x1]
      %v4391 = vld [vmem:[%s3919 + $0xb4] sm:$0xf]
      %v4392 = vld [vmem:[%s3919 + $0xb8] sm:$0xf]
      %v4393 = vld [vmem:[%s3919 + $0xbc] sm:$0x1]
      %v4395 = vshrl.u32 %v4346, 16
      %v4397 = vrot.slane %v4395, 4
      %v4398 = vshll.u32 %v4346, 16
      %v4400 = vrot.slane %v4398, 5
      %v4401 = vor.u32 %v4397, %v4400
      %v4402 = vrot.slane %v4401, 4
      %v4404 = vshll.u32 %v4347, 16
      %v4406 = vrot.slane %v4404, 5
      %v4407 = vsel %vm808, %v4402, %v4406
      %v4408 = vshrl.u32 %v4347, 16
      %v4410 = vrot.slane %v4408, 4
      %v4411 = vor.u32 %v4410, %v4406
      %v4412 = vrot.slane %v4411, 4
      %v4414 = vshll.u32 %v4348, 16
      %v4416 = vrot.slane %v4414, 5
      %v4417 = vsel %vm808, %v4412, %v4416
      %v4419 = vshrl.u32 %v4349, 16
      %v4421 = vrot.slane %v4419, 4
      %v4422 = vshll.u32 %v4349, 16
      %v4424 = vrot.slane %v4422, 5
      %v4425 = vor.u32 %v4421, %v4424
      %v4426 = vrot.slane %v4425, 4
      %v4428 = vshll.u32 %v4350, 16
      %v4430 = vrot.slane %v4428, 5
      %v4431 = vsel %vm808, %v4426, %v4430
      %v4432 = vshrl.u32 %v4350, 16
      %v4434 = vrot.slane %v4432, 4
      %v4435 = vor.u32 %v4434, %v4430
      %v4436 = vrot.slane %v4435, 4
      %v4438 = vshll.u32 %v4351, 16
      %v4440 = vrot.slane %v4438, 5
      %v4441 = vsel %vm808, %v4436, %v4440
      %v4443 = vshrl.u32 %v4352, 16
      %v4445 = vrot.slane %v4443, 4
      %v4446 = vshll.u32 %v4352, 16
      %v4448 = vrot.slane %v4446, 5
      %v4449 = vor.u32 %v4445, %v4448
      %v4450 = vrot.slane %v4449, 4
      %v4452 = vshll.u32 %v4353, 16
      %v4454 = vrot.slane %v4452, 5
      %v4455 = vsel %vm808, %v4450, %v4454
      %v4456 = vshrl.u32 %v4353, 16
      %v4458 = vrot.slane %v4456, 4
      %v4459 = vor.u32 %v4458, %v4454
      %v4460 = vrot.slane %v4459, 4
      %v4462 = vshll.u32 %v4354, 16
      %v4464 = vrot.slane %v4462, 5
      %v4465 = vsel %vm808, %v4460, %v4464
      %v4467 = vshrl.u32 %v4355, 16
      %v4469 = vrot.slane %v4467, 4
      %v4470 = vshll.u32 %v4355, 16
      %v4472 = vrot.slane %v4470, 5
      %v4473 = vor.u32 %v4469, %v4472
      %v4474 = vrot.slane %v4473, 4
      %v4476 = vshll.u32 %v4356, 16
      %v4478 = vrot.slane %v4476, 5
      %v4479 = vsel %vm808, %v4474, %v4478
      %v4480 = vshrl.u32 %v4356, 16
      %v4482 = vrot.slane %v4480, 4
      %v4483 = vor.u32 %v4482, %v4478
      %v4484 = vrot.slane %v4483, 4
      %v4486 = vshll.u32 %v4357, 16
      %v4488 = vrot.slane %v4486, 5
      %v4489 = vsel %vm808, %v4484, %v4488
      %v4491 = vshrl.u32 %v4358, 16
      %v4493 = vrot.slane %v4491, 4
      %v4494 = vshll.u32 %v4358, 16
      %v4496 = vrot.slane %v4494, 5
      %v4497 = vor.u32 %v4493, %v4496
      %v4498 = vrot.slane %v4497, 4
      %v4500 = vshll.u32 %v4359, 16
      %v4502 = vrot.slane %v4500, 5
      %v4503 = vsel %vm808, %v4498, %v4502
      %v4504 = vshrl.u32 %v4359, 16
      %v4506 = vrot.slane %v4504, 4
      %v4507 = vor.u32 %v4506, %v4502
      %v4508 = vrot.slane %v4507, 4
      %v4510 = vshll.u32 %v4360, 16
      %v4512 = vrot.slane %v4510, 5
      %v4513 = vsel %vm808, %v4508, %v4512
      %v4515 = vshrl.u32 %v4361, 16
      %v4517 = vrot.slane %v4515, 4
      %v4518 = vshll.u32 %v4361, 16
      %v4520 = vrot.slane %v4518, 5
      %v4521 = vor.u32 %v4517, %v4520
      %v4522 = vrot.slane %v4521, 4
      %v4524 = vshll.u32 %v4362, 16
      %v4526 = vrot.slane %v4524, 5
      %v4527 = vsel %vm808, %v4522, %v4526
      %v4528 = vshrl.u32 %v4362, 16
      %v4530 = vrot.slane %v4528, 4
      %v4531 = vor.u32 %v4530, %v4526
      %v4532 = vrot.slane %v4531, 4
      %v4534 = vshll.u32 %v4363, 16
      %v4536 = vrot.slane %v4534, 5
      %v4537 = vsel %vm808, %v4532, %v4536
      %v4539 = vshrl.u32 %v4364, 16
      %v4541 = vrot.slane %v4539, 4
      %v4542 = vshll.u32 %v4364, 16
      %v4544 = vrot.slane %v4542, 5
      %v4545 = vor.u32 %v4541, %v4544
      %v4546 = vrot.slane %v4545, 4
      %v4548 = vshll.u32 %v4365, 16
      %v4550 = vrot.slane %v4548, 5
      %v4551 = vsel %vm808, %v4546, %v4550
      %v4552 = vshrl.u32 %v4365, 16
      %v4554 = vrot.slane %v4552, 4
      %v4555 = vor.u32 %v4554, %v4550
      %v4556 = vrot.slane %v4555, 4
      %v4558 = vshll.u32 %v4366, 16
      %v4560 = vrot.slane %v4558, 5
      %v4561 = vsel %vm808, %v4556, %v4560
      %v4563 = vshrl.u32 %v4367, 16
      %v4565 = vrot.slane %v4563, 4
      %v4566 = vshll.u32 %v4367, 16
      %v4568 = vrot.slane %v4566, 5
      %v4569 = vor.u32 %v4565, %v4568
      %v4570 = vrot.slane %v4569, 4
      %v4572 = vshll.u32 %v4368, 16
      %v4574 = vrot.slane %v4572, 5
      %v4575 = vsel %vm808, %v4570, %v4574
      %v4576 = vshrl.u32 %v4368, 16
      %v4578 = vrot.slane %v4576, 4
      %v4579 = vor.u32 %v4578, %v4574
      %v4580 = vrot.slane %v4579, 4
      %v4582 = vshll.u32 %v4369, 16
      %v4584 = vrot.slane %v4582, 5
      %v4585 = vsel %vm808, %v4580, %v4584
      %v4587 = vshrl.u32 %v4370, 16
      %v4589 = vrot.slane %v4587, 4
      %v4590 = vshll.u32 %v4370, 16
      %v4592 = vrot.slane %v4590, 5
      %v4593 = vor.u32 %v4589, %v4592
      %v4594 = vrot.slane %v4593, 4
      %v4596 = vshll.u32 %v4371, 16
      %v4598 = vrot.slane %v4596, 5
      %v4599 = vsel %vm808, %v4594, %v4598
      %v4600 = vshrl.u32 %v4371, 16
      %v4602 = vrot.slane %v4600, 4
      %v4603 = vor.u32 %v4602, %v4598
      %v4604 = vrot.slane %v4603, 4
      %v4606 = vshll.u32 %v4372, 16
      %v4608 = vrot.slane %v4606, 5
      %v4609 = vsel %vm808, %v4604, %v4608
      %v4611 = vshrl.u32 %v4373, 16
      %v4613 = vrot.slane %v4611, 4
      %v4614 = vshll.u32 %v4373, 16
      %v4616 = vrot.slane %v4614, 5
      %v4617 = vor.u32 %v4613, %v4616
      %v4618 = vrot.slane %v4617, 4
      %v4620 = vshll.u32 %v4374, 16
      %v4622 = vrot.slane %v4620, 5
      %v4623 = vsel %vm808, %v4618, %v4622
      %v4624 = vshrl.u32 %v4374, 16
      %v4626 = vrot.slane %v4624, 4
      %v4627 = vor.u32 %v4626, %v4622
      %v4628 = vrot.slane %v4627, 4
      %v4630 = vshll.u32 %v4375, 16
      %v4632 = vrot.slane %v4630, 5
      %v4633 = vsel %vm808, %v4628, %v4632
      %v4635 = vshrl.u32 %v4376, 16
      %v4637 = vrot.slane %v4635, 4
      %v4638 = vshll.u32 %v4376, 16
      %v4640 = vrot.slane %v4638, 5
      %v4641 = vor.u32 %v4637, %v4640
      %v4642 = vrot.slane %v4641, 4
      %v4644 = vshll.u32 %v4377, 16
      %v4646 = vrot.slane %v4644, 5
      %v4647 = vsel %vm808, %v4642, %v4646
      %v4648 = vshrl.u32 %v4377, 16
      %v4650 = vrot.slane %v4648, 4
      %v4651 = vor.u32 %v4650, %v4646
      %v4652 = vrot.slane %v4651, 4
      %v4654 = vshll.u32 %v4378, 16
      %v4656 = vrot.slane %v4654, 5
      %v4657 = vsel %vm808, %v4652, %v4656
      %v4659 = vshrl.u32 %v4379, 16
      %v4661 = vrot.slane %v4659, 4
      %v4662 = vshll.u32 %v4379, 16
      %v4664 = vrot.slane %v4662, 5
      %v4665 = vor.u32 %v4661, %v4664
      %v4666 = vrot.slane %v4665, 4
      %v4668 = vshll.u32 %v4380, 16
      %v4670 = vrot.slane %v4668, 5
      %v4671 = vsel %vm808, %v4666, %v4670
      %v4672 = vshrl.u32 %v4380, 16
      %v4674 = vrot.slane %v4672, 4
      %v4675 = vor.u32 %v4674, %v4670
      %v4676 = vrot.slane %v4675, 4
      %v4678 = vshll.u32 %v4381, 16
      %v4680 = vrot.slane %v4678, 5
      %v4681 = vsel %vm808, %v4676, %v4680
      %v4683 = vshrl.u32 %v4382, 16
      %v4685 = vrot.slane %v4683, 4
      %v4686 = vshll.u32 %v4382, 16
      %v4688 = vrot.slane %v4686, 5
      %v4689 = vor.u32 %v4685, %v4688
      %v4690 = vrot.slane %v4689, 4
      %v4692 = vshll.u32 %v4383, 16
      %v4694 = vrot.slane %v4692, 5
      %v4695 = vsel %vm808, %v4690, %v4694
      %v4696 = vshrl.u32 %v4383, 16
      %v4698 = vrot.slane %v4696, 4
      %v4699 = vor.u32 %v4698, %v4694
      %v4700 = vrot.slane %v4699, 4
      %v4702 = vshll.u32 %v4384, 16
      %v4704 = vrot.slane %v4702, 5
      %v4705 = vsel %vm808, %v4700, %v4704
      %v4707 = vshrl.u32 %v4385, 16
      %v4709 = vrot.slane %v4707, 4
      %v4710 = vshll.u32 %v4385, 16
      %v4712 = vrot.slane %v4710, 5
      %v4713 = vor.u32 %v4709, %v4712
      %v4714 = vrot.slane %v4713, 4
      %v4716 = vshll.u32 %v4386, 16
      %v4718 = vrot.slane %v4716, 5
      %v4719 = vsel %vm808, %v4714, %v4718
      %v4720 = vshrl.u32 %v4386, 16
      %v4722 = vrot.slane %v4720, 4
      %v4723 = vor.u32 %v4722, %v4718
      %v4724 = vrot.slane %v4723, 4
      %v4726 = vshll.u32 %v4387, 16
      %v4728 = vrot.slane %v4726, 5
      %v4729 = vsel %vm808, %v4724, %v4728
      %v4731 = vshrl.u32 %v4388, 16
      %v4733 = vrot.slane %v4731, 4
      %v4734 = vshll.u32 %v4388, 16
      %v4736 = vrot.slane %v4734, 5
      %v4737 = vor.u32 %v4733, %v4736
      %v4738 = vrot.slane %v4737, 4
      %v4740 = vshll.u32 %v4389, 16
      %v4742 = vrot.slane %v4740, 5
      %v4743 = vsel %vm808, %v4738, %v4742
      %v4744 = vshrl.u32 %v4389, 16
      %v4746 = vrot.slane %v4744, 4
      %v4747 = vor.u32 %v4746, %v4742
      %v4748 = vrot.slane %v4747, 4
      %v4750 = vshll.u32 %v4390, 16
      %v4752 = vrot.slane %v4750, 5
      %v4753 = vsel %vm808, %v4748, %v4752
      %v4755 = vshrl.u32 %v4391, 16
      %v4757 = vrot.slane %v4755, 4
      %v4758 = vshll.u32 %v4391, 16
      %v4760 = vrot.slane %v4758, 5
      %v4761 = vor.u32 %v4757, %v4760
      %v4762 = vrot.slane %v4761, 4
      %v4764 = vshll.u32 %v4392, 16
      %v4766 = vrot.slane %v4764, 5
      %v4767 = vsel %vm808, %v4762, %v4766
      %v4768 = vshrl.u32 %v4392, 16
      %v4770 = vrot.slane %v4768, 4
      %v4771 = vor.u32 %v4770, %v4766
      %v4772 = vrot.slane %v4771, 4
      %v4774 = vshll.u32 %v4393, 16
      %v4776 = vrot.slane %v4774, 5
      %v4777 = vsel %vm808, %v4772, %v4776
      %v4778 = vld [vmem:[#allocation2] sm:$0xff]
      %v4779 = vld [vmem:[#allocation2 + $0x8] sm:$0xff]
      %v4780 = vld [vmem:[#allocation2 + $0x10] sm:$0xff]
      %v4781 = vld [vmem:[#allocation2 + $0x18] sm:$0xff]
      %v4782 = vld [vmem:[#allocation2 + $0x20] sm:$0xff]
      %v4783 = vld [vmem:[#allocation2 + $0x28] sm:$0xff]
      %v4784 = vld [vmem:[#allocation2 + $0x30] sm:$0xff]
      %v4785 = vld [vmem:[#allocation2 + $0x38] sm:$0xff]
      %v4786 = vld [vmem:[#allocation2 + $0x40] sm:$0xff]
      %v4787 = vld [vmem:[#allocation2 + $0x48] sm:$0xff]
      %v4788 = vld [vmem:[#allocation2 + $0x50] sm:$0xff]
      %v4789 = vld [vmem:[#allocation2 + $0x58] sm:$0xff]
      %v4790 = vld [vmem:[#allocation2 + $0x60] sm:$0xff]
      %v4791 = vld [vmem:[#allocation2 + $0x68] sm:$0xff]
      %v4792 = vld [vmem:[#allocation2 + $0x70] sm:$0xff]
      %v4793 = vld [vmem:[#allocation2 + $0x78] sm:$0xff]
      %v4794 = vld [vmem:[#allocation2 + $0x80] sm:$0xff]
      %v4795 = vld [vmem:[#allocation2 + $0x88] sm:$0xff]
      %v4796 = vld [vmem:[#allocation2 + $0x90] sm:$0xff]
      %v4797 = vld [vmem:[#allocation2 + $0x98] sm:$0xff]
      %v4798 = vld [vmem:[#allocation2 + $0xa0] sm:$0xff]
      %v4799 = vld [vmem:[#allocation2 + $0xa8] sm:$0xff]
      %v4800 = vld [vmem:[#allocation2 + $0xb0] sm:$0xff]
      %v4801 = vld [vmem:[#allocation2 + $0xb8] sm:$0xff]
      %v4802 = vld [vmem:[#allocation2 + $0xc0] sm:$0xff]
      %v4803 = vld [vmem:[#allocation2 + $0xc8] sm:$0xff]
      %v4804 = vld [vmem:[#allocation2 + $0xd0] sm:$0xff]
      %v4805 = vld [vmem:[#allocation2 + $0xd8] sm:$0xff]
      %v4806 = vld [vmem:[#allocation2 + $0xe0] sm:$0xff]
      %v4807 = vld [vmem:[#allocation2 + $0xe8] sm:$0xff]
      %v4808 = vld [vmem:[#allocation2 + $0xf0] sm:$0xff]
      %v4809 = vld [vmem:[#allocation2 + $0xf8] sm:$0xff]
      %s4810 = scalar_lea.vmem %s273, 56
      %v4811 = vld [vmem:[%s4810] sm:$0xf]
      %v4812 = vld [vmem:[%s4810 + $0x4] sm:$0xf]
      %v4813 = vunpack.c.l.b16 %v4407
      %v4814 = vunpack.c.l.b16 %v4417
      %v4815 = vunpack.c.l.b16 %v4431
      %v4816 = vunpack.c.l.b16 %v4441
      %v4817 = vunpack.c.l.b16 %v4455
      %v4818 = vunpack.c.l.b16 %v4465
      %v4819 = vunpack.c.l.b16 %v4479
      %v4820 = vunpack.c.l.b16 %v4489
      %v4821 = vunpack.c.l.b16 %v4503
      %v4822 = vunpack.c.l.b16 %v4513
      %v4823 = vunpack.c.l.b16 %v4527
      %v4824 = vunpack.c.l.b16 %v4537
      %v4825 = vunpack.c.l.b16 %v4551
      %v4826 = vunpack.c.l.b16 %v4561
      %v4827 = vunpack.c.l.b16 %v4575
      %v4828 = vunpack.c.l.b16 %v4585
      %v4829 = vunpack.c.l.b16 %v4599
      %v4830 = vunpack.c.l.b16 %v4609
      %v4831 = vunpack.c.l.b16 %v4623
      %v4832 = vunpack.c.l.b16 %v4633
      %v4833 = vunpack.c.l.b16 %v4647
      %v4834 = vunpack.c.l.b16 %v4657
      %v4835 = vunpack.c.l.b16 %v4671
      %v4836 = vunpack.c.l.b16 %v4681
      %v4837 = vunpack.c.l.b16 %v4695
      %v4838 = vunpack.c.l.b16 %v4705
      %v4839 = vunpack.c.l.b16 %v4719
      %v4840 = vunpack.c.l.b16 %v4729
      %v4841 = vunpack.c.l.b16 %v4743
      %v4842 = vunpack.c.l.b16 %v4753
      %v4843 = vunpack.c.l.b16 %v4767
      %v4844 = vunpack.c.l.b16 %v4777
      %v4845 = vpack.c.b16 %v4814, %v4813
      %v4846 = vpack.c.b16 %v4816, %v4815
      %v4847 = vpack.c.b16 %v4818, %v4817
      %v4848 = vpack.c.b16 %v4820, %v4819
      %v4849 = vpack.c.b16 %v4822, %v4821
      %v4850 = vpack.c.b16 %v4824, %v4823
      %v4851 = vpack.c.b16 %v4826, %v4825
      %v4852 = vpack.c.b16 %v4828, %v4827
      %v4853 = vpack.c.b16 %v4830, %v4829
      %v4854 = vpack.c.b16 %v4832, %v4831
      %v4855 = vpack.c.b16 %v4834, %v4833
      %v4856 = vpack.c.b16 %v4836, %v4835
      %v4857 = vpack.c.b16 %v4838, %v4837
      %v4858 = vpack.c.b16 %v4840, %v4839
      %v4859 = vpack.c.b16 %v4842, %v4841
      %v4860 = vpack.c.b16 %v4844, %v4843
      %v4863 = vunpack.c.l.b16 %v4811
      %v4864 = vunpack.c.l.b16 %v4812
      %v4865 = vpack.c.b16 %v4864, %v4863
      %v4868 = vsel %vm483, %v4845, 0
      %v4871 = vsel %vm483, %v4846, 0
      %v4874 = vsel %vm483, %v4847, 0
      %v4877 = vsel %vm483, %v4848, 0
      %v4880 = vsel %vm483, %v4849, 0
      %v4883 = vsel %vm483, %v4850, 0
      %v4886 = vsel %vm483, %v4851, 0
      %v4889 = vsel %vm483, %v4852, 0
      %v4892 = vsel %vm483, %v4853, 0
      %v4895 = vsel %vm483, %v4854, 0
      %v4898 = vsel %vm483, %v4855, 0
      %v4901 = vsel %vm483, %v4856, 0
      %v4904 = vsel %vm483, %v4857, 0
      %v4907 = vsel %vm483, %v4858, 0
      %v4910 = vsel %vm483, %v4859, 0
      %v4913 = vsel %vm483, %v4860, 0
      %4915 = vmatprep.subr.bf16.mxu0 0
      %4916 = vmatpush1.bf16.msra.mxu0 %v4865
      %4917 = vmatprep.subr.bf16.mxu0 0
      %4918 = vmatpush1.bf16.msra.mxu0 0
      %4919 = vmatprep.subr.bf16.mxu0 0
      %4920 = vmatpush1.bf16.msra.mxu0 0
      %4921 = vmatprep.subr.bf16.mxu0 0
      %4922 = vmatpush1.bf16.msra.mxu0 0
      %4923 = vmatprep.subr.bf16.mxu0 0
      %4924 = vmatpush1.bf16.msra.mxu0 0
      %4925 = vmatprep.subr.bf16.mxu0 0
      %4926 = vmatpush1.bf16.msra.mxu0 0
      %4927 = vmatprep.subr.bf16.mxu0 0
      %4928 = vmatpush1.bf16.msra.mxu0 0
      %4929 = vmatprep.subr.bf16.mxu0 0
      %4930 = vmatpush1.bf16.msra.mxu0 0
      %4931 = vmatprep.subr.bf16.mxu0 0
      %4932 = vmatpush1.bf16.msra.mxu0 0
      %4933 = vmatprep.subr.bf16.mxu0 0
      %4934 = vmatpush1.bf16.msra.mxu0 0
      %4935 = vmatprep.subr.bf16.mxu0 0
      %4936 = vmatpush1.bf16.msra.mxu0 0
      %4937 = vmatprep.subr.bf16.mxu0 0
      %4938 = vmatpush1.bf16.msra.mxu0 0
      %4939 = vmatprep.subr.bf16.mxu0 0
      %4940 = vmatpush1.bf16.msra.mxu0 0
      %4941 = vmatprep.subr.bf16.mxu0 0
      %4942 = vmatpush1.bf16.msra.mxu0 0
      %4943 = vmatprep.subr.bf16.mxu0 0
      %4944 = vmatpush1.bf16.msra.mxu0 0
      %4945 = vmatprep.subr.bf16.mxu0 0
      %4946 = vmatpush1.bf16.msra.mxu0 0
      %4947 = vmatprep.mubr.bf16.mxu0 0
      %4948 = vmatmul.mubr.bf16.gmra.mrb[0].mxu0 %v4868
      %v4949 = vpop.f32.mrb[0].mxu0
      %v4950 = vadd.f32 0.0, %v4949
      %v4951 = vpop.f32.mrb[0].mxu0
      %v4952 = vpop.f32.mrb[0].mxu0
      %v4953 = vadd.f32 0.0, %v4952
      %v4954 = vpop.f32.mrb[0].mxu0
      %4955 = vmatprep.mubr.bf16.mxu0 0
      %4956 = vmatmul.mubr.bf16.gmra.mrb[0].mxu0 %v4871
      %v4957 = vpop.f32.mrb[0].mxu0
      %v4958 = vadd.f32 0.0, %v4957
      %v4959 = vpop.f32.mrb[0].mxu0
      %v4960 = vpop.f32.mrb[0].mxu0
      %v4961 = vadd.f32 0.0, %v4960
      %v4962 = vpop.f32.mrb[0].mxu0
      %4963 = vmatprep.mubr.bf16.mxu0 0
      %4964 = vmatmul.mubr.bf16.gmra.mrb[0].mxu0 %v4874
      %v4965 = vpop.f32.mrb[0].mxu0
      %v4966 = vadd.f32 0.0, %v4965
      %v4967 = vpop.f32.mrb[0].mxu0
      %v4968 = vpop.f32.mrb[0].mxu0
      %v4969 = vadd.f32 0.0, %v4968
      %v4970 = vpop.f32.mrb[0].mxu0
      %4971 = vmatprep.mubr.bf16.mxu0 0
      %4972 = vmatmul.mubr.bf16.gmra.mrb[0].mxu0 %v4877
      %v4973 = vpop.f32.mrb[0].mxu0
      %v4974 = vadd.f32 0.0, %v4973
      %v4975 = vpop.f32.mrb[0].mxu0
      %v4976 = vpop.f32.mrb[0].mxu0
      %v4977 = vadd.f32 0.0, %v4976
      %v4978 = vpop.f32.mrb[0].mxu0
      %4979 = vmatprep.mubr.bf16.mxu0 0
      %4980 = vmatmul.mubr.bf16.gmra.mrb[0].mxu0 %v4880
      %v4981 = vpop.f32.mrb[0].mxu0
      %v4982 = vadd.f32 0.0, %v4981
      %v4983 = vpop.f32.mrb[0].mxu0
      %v4984 = vpop.f32.mrb[0].mxu0
      %v4985 = vadd.f32 0.0, %v4984
      %v4986 = vpop.f32.mrb[0].mxu0
      %4987 = vmatprep.mubr.bf16.mxu0 0
      %4988 = vmatmul.mubr.bf16.gmra.mrb[0].mxu0 %v4883
      %v4989 = vpop.f32.mrb[0].mxu0
      %v4990 = vadd.f32 0.0, %v4989
      %v4991 = vpop.f32.mrb[0].mxu0
      %v4992 = vpop.f32.mrb[0].mxu0
      %v4993 = vadd.f32 0.0, %v4992
      %v4994 = vpop.f32.mrb[0].mxu0
      %4995 = vmatprep.mubr.bf16.mxu0 0
      %4996 = vmatmul.mubr.bf16.gmra.mrb[0].mxu0 %v4886
      %v4997 = vpop.f32.mrb[0].mxu0
      %v4998 = vadd.f32 0.0, %v4997
      %v4999 = vpop.f32.mrb[0].mxu0
      %v5000 = vpop.f32.mrb[0].mxu0
      %v5001 = vadd.f32 0.0, %v5000
      %v5002 = vpop.f32.mrb[0].mxu0
      %5003 = vmatprep.mubr.bf16.mxu0 0
      %5004 = vmatmul.mubr.bf16.gmra.mrb[0].mxu0 %v4889
      %v5005 = vpop.f32.mrb[0].mxu0
      %v5006 = vadd.f32 0.0, %v5005
      %v5007 = vpop.f32.mrb[0].mxu0
      %v5008 = vpop.f32.mrb[0].mxu0
      %v5009 = vadd.f32 0.0, %v5008
      %v5010 = vpop.f32.mrb[0].mxu0
      %5011 = vmatprep.mubr.bf16.mxu0 0
      %5012 = vmatmul.mubr.bf16.gmra.mrb[0].mxu0 %v4892
      %v5013 = vpop.f32.mrb[0].mxu0
      %v5014 = vadd.f32 0.0, %v5013
      %v5015 = vpop.f32.mrb[0].mxu0
      %v5016 = vpop.f32.mrb[0].mxu0
      %v5017 = vadd.f32 0.0, %v5016
      %v5018 = vpop.f32.mrb[0].mxu0
      %5019 = vmatprep.mubr.bf16.mxu0 0
      %5020 = vmatmul.mubr.bf16.gmra.mrb[0].mxu0 %v4895
      %v5021 = vpop.f32.mrb[0].mxu0
      %v5022 = vadd.f32 0.0, %v5021
      %v5023 = vpop.f32.mrb[0].mxu0
      %v5024 = vpop.f32.mrb[0].mxu0
      %v5025 = vadd.f32 0.0, %v5024
      %v5026 = vpop.f32.mrb[0].mxu0
      %5027 = vmatprep.mubr.bf16.mxu0 0
      %5028 = vmatmul.mubr.bf16.gmra.mrb[0].mxu0 %v4898
      %v5029 = vpop.f32.mrb[0].mxu0
      %v5030 = vadd.f32 0.0, %v5029
      %v5031 = vpop.f32.mrb[0].mxu0
      %v5032 = vpop.f32.mrb[0].mxu0
      %v5033 = vadd.f32 0.0, %v5032
      %v5034 = vpop.f32.mrb[0].mxu0
      %5035 = vmatprep.mubr.bf16.mxu0 0
      %5036 = vmatmul.mubr.bf16.gmra.mrb[0].mxu0 %v4901
      %v5037 = vpop.f32.mrb[0].mxu0
      %v5038 = vadd.f32 0.0, %v5037
      %v5039 = vpop.f32.mrb[0].mxu0
      %v5040 = vpop.f32.mrb[0].mxu0
      %v5041 = vadd.f32 0.0, %v5040
      %v5042 = vpop.f32.mrb[0].mxu0
      %5043 = vmatprep.mubr.bf16.mxu0 0
      %5044 = vmatmul.mubr.bf16.gmra.mrb[0].mxu0 %v4904
      %v5045 = vpop.f32.mrb[0].mxu0
      %v5046 = vadd.f32 0.0, %v5045
      %v5047 = vpop.f32.mrb[0].mxu0
      %v5048 = vpop.f32.mrb[0].mxu0
      %v5049 = vadd.f32 0.0, %v5048
      %v5050 = vpop.f32.mrb[0].mxu0
      %5051 = vmatprep.mubr.bf16.mxu0 0
      %5052 = vmatmul.mubr.bf16.gmra.mrb[0].mxu0 %v4907
      %v5053 = vpop.f32.mrb[0].mxu0
      %v5054 = vadd.f32 0.0, %v5053
      %v5055 = vpop.f32.mrb[0].mxu0
      %v5056 = vpop.f32.mrb[0].mxu0
      %v5057 = vadd.f32 0.0, %v5056
      %v5058 = vpop.f32.mrb[0].mxu0
      %5059 = vmatprep.mubr.bf16.mxu0 0
      %5060 = vmatmul.mubr.bf16.gmra.mrb[0].mxu0 %v4910
      %v5061 = vpop.f32.mrb[0].mxu0
      %v5062 = vadd.f32 0.0, %v5061
      %v5063 = vpop.f32.mrb[0].mxu0
      %v5064 = vpop.f32.mrb[0].mxu0
      %v5065 = vadd.f32 0.0, %v5064
      %v5066 = vpop.f32.mrb[0].mxu0
      %5067 = vmatprep.mubr.bf16.mxu0 0
      %5068 = vmatmul.mubr.bf16.gmra.mrb[0].mxu0 %v4913
      %v5069 = vpop.f32.mrb[0].mxu0
      %v5070 = vadd.f32 0.0, %v5069
      %v5071 = vpop.f32.mrb[0].mxu0
      %v5072 = vpop.f32.mrb[0].mxu0
      %v5073 = vadd.f32 0.0, %v5072
      %v5074 = vpop.f32.mrb[0].mxu0
      %5075 = vdwg.mxu0
      %v5076 = vadd.f32 %v4778, %v4950
      %v5077 = vadd.f32 %v4779, %v4953
      %v5078 = vadd.f32 %v4780, %v4958
      %v5079 = vadd.f32 %v4781, %v4961
      %v5080 = vadd.f32 %v4782, %v4966
      %v5081 = vadd.f32 %v4783, %v4969
      %v5082 = vadd.f32 %v4784, %v4974
      %v5083 = vadd.f32 %v4785, %v4977
      %v5084 = vadd.f32 %v4786, %v4982
      %v5085 = vadd.f32 %v4787, %v4985
      %v5086 = vadd.f32 %v4788, %v4990
      %v5087 = vadd.f32 %v4789, %v4993
      %v5088 = vadd.f32 %v4790, %v4998
      %v5089 = vadd.f32 %v4791, %v5001
      %v5090 = vadd.f32 %v4792, %v5006
      %v5091 = vadd.f32 %v4793, %v5009
      %v5092 = vadd.f32 %v4794, %v5014
      %v5093 = vadd.f32 %v4795, %v5017
      %v5094 = vadd.f32 %v4796, %v5022
      %v5095 = vadd.f32 %v4797, %v5025
      %v5096 = vadd.f32 %v4798, %v5030
      %v5097 = vadd.f32 %v4799, %v5033
      %v5098 = vadd.f32 %v4800, %v5038
      %v5099 = vadd.f32 %v4801, %v5041
      %v5100 = vadd.f32 %v4802, %v5046
      %v5101 = vadd.f32 %v4803, %v5049
      %v5102 = vadd.f32 %v4804, %v5054
      %v5103 = vadd.f32 %v4805, %v5057
      %v5104 = vadd.f32 %v4806, %v5062
      %v5105 = vadd.f32 %v4807, %v5065
      %v5106 = vadd.f32 %v4808, %v5070
      %v5107 = vadd.f32 %v4809, %v5073
      %5108 = vst.msk [vmem:[#allocation2] sm:$0xff] %vm725, %v5076
      %5109 = vst.msk [vmem:[#allocation2 + $0x8] sm:$0xff] %vm725, %v5077
      %5110 = vst.msk [vmem:[#allocation2 + $0x10] sm:$0xff] %vm725, %v5078
      %5111 = vst.msk [vmem:[#allocation2 + $0x18] sm:$0xff] %vm725, %v5079
      %5112 = vst.msk [vmem:[#allocation2 + $0x20] sm:$0xff] %vm725, %v5080
      %5113 = vst.msk [vmem:[#allocation2 + $0x28] sm:$0xff] %vm725, %v5081
      %5114 = vst.msk [vmem:[#allocation2 + $0x30] sm:$0xff] %vm725, %v5082
      %5115 = vst.msk [vmem:[#allocation2 + $0x38] sm:$0xff] %vm725, %v5083
      %5116 = vst.msk [vmem:[#allocation2 + $0x40] sm:$0xff] %vm725, %v5084
      %5117 = vst.msk [vmem:[#allocation2 + $0x48] sm:$0xff] %vm725, %v5085
      %5118 = vst.msk [vmem:[#allocation2 + $0x50] sm:$0xff] %vm725, %v5086
      %5119 = vst.msk [vmem:[#allocation2 + $0x58] sm:$0xff] %vm725, %v5087
      %5120 = vst.msk [vmem:[#allocation2 + $0x60] sm:$0xff] %vm725, %v5088
      %5121 = vst.msk [vmem:[#allocation2 + $0x68] sm:$0xff] %vm725, %v5089
      %5122 = vst.msk [vmem:[#allocation2 + $0x70] sm:$0xff] %vm725, %v5090
      %5123 = vst.msk [vmem:[#allocation2 + $0x78] sm:$0xff] %vm725, %v5091
      %5124 = vst.msk [vmem:[#allocation2 + $0x80] sm:$0xff] %vm725, %v5092
      %5125 = vst.msk [vmem:[#allocation2 + $0x88] sm:$0xff] %vm725, %v5093
      %5126 = vst.msk [vmem:[#allocation2 + $0x90] sm:$0xff] %vm725, %v5094
      %5127 = vst.msk [vmem:[#allocation2 + $0x98] sm:$0xff] %vm725, %v5095
      %5128 = vst.msk [vmem:[#allocation2 + $0xa0] sm:$0xff] %vm725, %v5096
      %5129 = vst.msk [vmem:[#allocation2 + $0xa8] sm:$0xff] %vm725, %v5097
      %5130 = vst.msk [vmem:[#allocation2 + $0xb0] sm:$0xff] %vm725, %v5098
      %5131 = vst.msk [vmem:[#allocation2 + $0xb8] sm:$0xff] %vm725, %v5099
      %5132 = vst.msk [vmem:[#allocation2 + $0xc0] sm:$0xff] %vm725, %v5100
      %5133 = vst.msk [vmem:[#allocation2 + $0xc8] sm:$0xff] %vm725, %v5101
      %5134 = vst.msk [vmem:[#allocation2 + $0xd0] sm:$0xff] %vm725, %v5102
      %5135 = vst.msk [vmem:[#allocation2 + $0xd8] sm:$0xff] %vm725, %v5103
      %5136 = vst.msk [vmem:[#allocation2 + $0xe0] sm:$0xff] %vm725, %v5104
      %5137 = vst.msk [vmem:[#allocation2 + $0xe8] sm:$0xff] %vm725, %v5105
      %5138 = vst.msk [vmem:[#allocation2 + $0xf0] sm:$0xff] %vm725, %v5106
      %5139 = vst.msk [vmem:[#allocation2 + $0xf8] sm:$0xff] %vm725, %v5107
      %v5140 = vld [vmem:[%s3919] sm:$0xe]
      %v5141 = vld [vmem:[%s3919 + $0x4] sm:$0xf]
      %v5142 = vld [vmem:[%s3919 + $0x8] sm:$0x1]
      %v5143 = vld [vmem:[%s3919 + $0xc] sm:$0xe]
      %v5144 = vld [vmem:[%s3919 + $0x10] sm:$0xf]
      %v5145 = vld [vmem:[%s3919 + $0x14] sm:$0x1]
      %v5146 = vld [vmem:[%s3919 + $0x18] sm:$0xe]
      %v5147 = vld [vmem:[%s3919 + $0x1c] sm:$0xf]
      %v5148 = vld [vmem:[%s3919 + $0x20] sm:$0x1]
      %v5149 = vld [vmem:[%s3919 + $0x24] sm:$0xe]
      %v5150 = vld [vmem:[%s3919 + $0x28] sm:$0xf]
      %v5151 = vld [vmem:[%s3919 + $0x2c] sm:$0x1]
      %v5152 = vld [vmem:[%s3919 + $0x30] sm:$0xe]
      %v5153 = vld [vmem:[%s3919 + $0x34] sm:$0xf]
      %v5154 = vld [vmem:[%s3919 + $0x38] sm:$0x1]
      %v5155 = vld [vmem:[%s3919 + $0x3c] sm:$0xe]
      %v5156 = vld [vmem:[%s3919 + $0x40] sm:$0xf]
      %v5157 = vld [vmem:[%s3919 + $0x44] sm:$0x1]
      %v5158 = vld [vmem:[%s3919 + $0x48] sm:$0xe]
      %v5159 = vld [vmem:[%s3919 + $0x4c] sm:$0xf]
      %v5160 = vld [vmem:[%s3919 + $0x50] sm:$0x1]
      %v5161 = vld [vmem:[%s3919 + $0x54] sm:$0xe]
      %v5162 = vld [vmem:[%s3919 + $0x58] sm:$0xf]
      %v5163 = vld [vmem:[%s3919 + $0x5c] sm:$0x1]
      %v5164 = vld [vmem:[%s3919 + $0x60] sm:$0xe]
      %v5165 = vld [vmem:[%s3919 + $0x64] sm:$0xf]
      %v5166 = vld [vmem:[%s3919 + $0x68] sm:$0x1]
      %v5167 = vld [vmem:[%s3919 + $0x6c] sm:$0xe]
      %v5168 = vld [vmem:[%s3919 + $0x70] sm:$0xf]
      %v5169 = vld [vmem:[%s3919 + $0x74] sm:$0x1]
      %v5170 = vld [vmem:[%s3919 + $0x78] sm:$0xe]
      %v5171 = vld [vmem:[%s3919 + $0x7c] sm:$0xf]
      %v5172 = vld [vmem:[%s3919 + $0x80] sm:$0x1]
      %v5173 = vld [vmem:[%s3919 + $0x84] sm:$0xe]
      %v5174 = vld [vmem:[%s3919 + $0x88] sm:$0xf]
      %v5175 = vld [vmem:[%s3919 + $0x8c] sm:$0x1]
      %v5176 = vld [vmem:[%s3919 + $0x90] sm:$0xe]
      %v5177 = vld [vmem:[%s3919 + $0x94] sm:$0xf]
      %v5178 = vld [vmem:[%s3919 + $0x98] sm:$0x1]
      %v5179 = vld [vmem:[%s3919 + $0x9c] sm:$0xe]
      %v5180 = vld [vmem:[%s3919 + $0xa0] sm:$0xf]
      %v5181 = vld [vmem:[%s3919 + $0xa4] sm:$0x1]
      %v5182 = vld [vmem:[%s3919 + $0xa8] sm:$0xe]
      %v5183 = vld [vmem:[%s3919 + $0xac] sm:$0xf]
      %v5184 = vld [vmem:[%s3919 + $0xb0] sm:$0x1]
      %v5185 = vld [vmem:[%s3919 + $0xb4] sm:$0xe]
      %v5186 = vld [vmem:[%s3919 + $0xb8] sm:$0xf]
      %v5187 = vld [vmem:[%s3919 + $0xbc] sm:$0x1]
      %v5236 = vrot.slane %v5140, 5
      %v5237 = vrot.slane %v5236, 4
      %v5238 = vrot.slane %v5141, 5
      %v5239 = vsel %vm1653, %v5237, %v5238
      %v5240 = vrot.slane %v5238, 4
      %v5241 = vrot.slane %v5142, 5
      %v5242 = vsel %vm1653, %v5240, %v5241
      %v5243 = vrot.slane %v5143, 5
      %v5244 = vrot.slane %v5243, 4
      %v5245 = vrot.slane %v5144, 5
      %v5246 = vsel %vm1653, %v5244, %v5245
      %v5247 = vrot.slane %v5245, 4
      %v5248 = vrot.slane %v5145, 5
      %v5249 = vsel %vm1653, %v5247, %v5248
      %v5250 = vrot.slane %v5146, 5
      %v5251 = vrot.slane %v5250, 4
      %v5252 = vrot.slane %v5147, 5
      %v5253 = vsel %vm1653, %v5251, %v5252
      %v5254 = vrot.slane %v5252, 4
      %v5255 = vrot.slane %v5148, 5
      %v5256 = vsel %vm1653, %v5254, %v5255
      %v5257 = vrot.slane %v5149, 5
      %v5258 = vrot.slane %v5257, 4
      %v5259 = vrot.slane %v5150, 5
      %v5260 = vsel %vm1653, %v5258, %v5259
      %v5261 = vrot.slane %v5259, 4
      %v5262 = vrot.slane %v5151, 5
      %v5263 = vsel %vm1653, %v5261, %v5262
      %v5264 = vrot.slane %v5152, 5
      %v5265 = vrot.slane %v5264, 4
      %v5266 = vrot.slane %v5153, 5
      %v5267 = vsel %vm1653, %v5265, %v5266
      %v5268 = vrot.slane %v5266, 4
      %v5269 = vrot.slane %v5154, 5
      %v5270 = vsel %vm1653, %v5268, %v5269
      %v5271 = vrot.slane %v5155, 5
      %v5272 = vrot.slane %v5271, 4
      %v5273 = vrot.slane %v5156, 5
      %v5274 = vsel %vm1653, %v5272, %v5273
      %v5275 = vrot.slane %v5273, 4
      %v5276 = vrot.slane %v5157, 5
      %v5277 = vsel %vm1653, %v5275, %v5276
      %v5278 = vrot.slane %v5158, 5
      %v5279 = vrot.slane %v5278, 4
      %v5280 = vrot.slane %v5159, 5
      %v5281 = vsel %vm1653, %v5279, %v5280
      %v5282 = vrot.slane %v5280, 4
      %v5283 = vrot.slane %v5160, 5
      %v5284 = vsel %vm1653, %v5282, %v5283
      %v5285 = vrot.slane %v5161, 5
      %v5286 = vrot.slane %v5285, 4
      %v5287 = vrot.slane %v5162, 5
      %v5288 = vsel %vm1653, %v5286, %v5287
      %v5289 = vrot.slane %v5287, 4
      %v5290 = vrot.slane %v5163, 5
      %v5291 = vsel %vm1653, %v5289, %v5290
      %v5292 = vrot.slane %v5164, 5
      %v5293 = vrot.slane %v5292, 4
      %v5294 = vrot.slane %v5165, 5
      %v5295 = vsel %vm1653, %v5293, %v5294
      %v5296 = vrot.slane %v5294, 4
      %v5297 = vrot.slane %v5166, 5
      %v5298 = vsel %vm1653, %v5296, %v5297
      %v5299 = vrot.slane %v5167, 5
      %v5300 = vrot.slane %v5299, 4
      %v5301 = vrot.slane %v5168, 5
      %v5302 = vsel %vm1653, %v5300, %v5301
      %v5303 = vrot.slane %v5301, 4
      %v5304 = vrot.slane %v5169, 5
      %v5305 = vsel %vm1653, %v5303, %v5304
      %v5306 = vrot.slane %v5170, 5
      %v5307 = vrot.slane %v5306, 4
      %v5308 = vrot.slane %v5171, 5
      %v5309 = vsel %vm1653, %v5307, %v5308
      %v5310 = vrot.slane %v5308, 4
      %v5311 = vrot.slane %v5172, 5
      %v5312 = vsel %vm1653, %v5310, %v5311
      %v5313 = vrot.slane %v5173, 5
      %v5314 = vrot.slane %v5313, 4
      %v5315 = vrot.slane %v5174, 5
      %v5316 = vsel %vm1653, %v5314, %v5315
      %v5317 = vrot.slane %v5315, 4
      %v5318 = vrot.slane %v5175, 5
      %v5319 = vsel %vm1653, %v5317, %v5318
      %v5320 = vrot.slane %v5176, 5
      %v5321 = vrot.slane %v5320, 4
      %v5322 = vrot.slane %v5177, 5
      %v5323 = vsel %vm1653, %v5321, %v5322
      %v5324 = vrot.slane %v5322, 4
      %v5325 = vrot.slane %v5178, 5
      %v5326 = vsel %vm1653, %v5324, %v5325
      %v5327 = vrot.slane %v5179, 5
      %v5328 = vrot.slane %v5327, 4
      %v5329 = vrot.slane %v5180, 5
      %v5330 = vsel %vm1653, %v5328, %v5329
      %v5331 = vrot.slane %v5329, 4
      %v5332 = vrot.slane %v5181, 5
      %v5333 = vsel %vm1653, %v5331, %v5332
      %v5334 = vrot.slane %v5182, 5
      %v5335 = vrot.slane %v5334, 4
      %v5336 = vrot.slane %v5183, 5
      %v5337 = vsel %vm1653, %v5335, %v5336
      %v5338 = vrot.slane %v5336, 4
      %v5339 = vrot.slane %v5184, 5
      %v5340 = vsel %vm1653, %v5338, %v5339
      %v5341 = vrot.slane %v5185, 5
      %v5342 = vrot.slane %v5341, 4
      %v5343 = vrot.slane %v5186, 5
      %v5344 = vsel %vm1653, %v5342, %v5343
      %v5345 = vrot.slane %v5343, 4
      %v5346 = vrot.slane %v5187, 5
      %v5347 = vsel %vm1653, %v5345, %v5346
      %v5348 = vld [vmem:[#allocation2] sm:$0xff]
      %v5349 = vld [vmem:[#allocation2 + $0x8] sm:$0xff]
      %v5350 = vld [vmem:[#allocation2 + $0x10] sm:$0xff]
      %v5351 = vld [vmem:[#allocation2 + $0x18] sm:$0xff]
      %v5352 = vld [vmem:[#allocation2 + $0x20] sm:$0xff]
      %v5353 = vld [vmem:[#allocation2 + $0x28] sm:$0xff]
      %v5354 = vld [vmem:[#allocation2 + $0x30] sm:$0xff]
      %v5355 = vld [vmem:[#allocation2 + $0x38] sm:$0xff]
      %v5356 = vld [vmem:[#allocation2 + $0x40] sm:$0xff]
      %v5357 = vld [vmem:[#allocation2 + $0x48] sm:$0xff]
      %v5358 = vld [vmem:[#allocation2 + $0x50] sm:$0xff]
      %v5359 = vld [vmem:[#allocation2 + $0x58] sm:$0xff]
      %v5360 = vld [vmem:[#allocation2 + $0x60] sm:$0xff]
      %v5361 = vld [vmem:[#allocation2 + $0x68] sm:$0xff]
      %v5362 = vld [vmem:[#allocation2 + $0x70] sm:$0xff]
      %v5363 = vld [vmem:[#allocation2 + $0x78] sm:$0xff]
      %v5364 = vld [vmem:[#allocation2 + $0x80] sm:$0xff]
      %v5365 = vld [vmem:[#allocation2 + $0x88] sm:$0xff]
      %v5366 = vld [vmem:[#allocation2 + $0x90] sm:$0xff]
      %v5367 = vld [vmem:[#allocation2 + $0x98] sm:$0xff]
      %v5368 = vld [vmem:[#allocation2 + $0xa0] sm:$0xff]
      %v5369 = vld [vmem:[#allocation2 + $0xa8] sm:$0xff]
      %v5370 = vld [vmem:[#allocation2 + $0xb0] sm:$0xff]
      %v5371 = vld [vmem:[#allocation2 + $0xb8] sm:$0xff]
      %v5372 = vld [vmem:[#allocation2 + $0xc0] sm:$0xff]
      %v5373 = vld [vmem:[#allocation2 + $0xc8] sm:$0xff]
      %v5374 = vld [vmem:[#allocation2 + $0xd0] sm:$0xff]
      %v5375 = vld [vmem:[#allocation2 + $0xd8] sm:$0xff]
      %v5376 = vld [vmem:[#allocation2 + $0xe0] sm:$0xff]
      %v5377 = vld [vmem:[#allocation2 + $0xe8] sm:$0xff]
      %v5378 = vld [vmem:[#allocation2 + $0xf0] sm:$0xff]
      %v5379 = vld [vmem:[#allocation2 + $0xf8] sm:$0xff]
      %s5380 = scalar_lea.vmem %s273, 64
      %v5381 = vld [vmem:[%s5380] sm:$0xf]
      %v5382 = vld [vmem:[%s5380 + $0x4] sm:$0xf]
      %v5383 = vunpack.c.l.b16 %v5239
      %v5384 = vunpack.c.l.b16 %v5242
      %v5385 = vunpack.c.l.b16 %v5246
      %v5386 = vunpack.c.l.b16 %v5249
      %v5387 = vunpack.c.l.b16 %v5253
      %v5388 = vunpack.c.l.b16 %v5256
      %v5389 = vunpack.c.l.b16 %v5260
      %v5390 = vunpack.c.l.b16 %v5263
      %v5391 = vunpack.c.l.b16 %v5267
      %v5392 = vunpack.c.l.b16 %v5270
      %v5393 = vunpack.c.l.b16 %v5274
      %v5394 = vunpack.c.l.b16 %v5277
      %v5395 = vunpack.c.l.b16 %v5281
      %v5396 = vunpack.c.l.b16 %v5284
      %v5397 = vunpack.c.l.b16 %v5288
      %v5398 = vunpack.c.l.b16 %v5291
      %v5399 = vunpack.c.l.b16 %v5295
      %v5400 = vunpack.c.l.b16 %v5298
      %v5401 = vunpack.c.l.b16 %v5302
      %v5402 = vunpack.c.l.b16 %v5305
      %v5403 = vunpack.c.l.b16 %v5309
      %v5404 = vunpack.c.l.b16 %v5312
      %v5405 = vunpack.c.l.b16 %v5316
      %v5406 = vunpack.c.l.b16 %v5319
      %v5407 = vunpack.c.l.b16 %v5323
      %v5408 = vunpack.c.l.b16 %v5326
      %v5409 = vunpack.c.l.b16 %v5330
      %v5410 = vunpack.c.l.b16 %v5333
      %v5411 = vunpack.c.l.b16 %v5337
      %v5412 = vunpack.c.l.b16 %v5340
      %v5413 = vunpack.c.l.b16 %v5344
      %v5414 = vunpack.c.l.b16 %v5347
      %v5415 = vpack.c.b16 %v5384, %v5383
      %v5416 = vpack.c.b16 %v5386, %v5385
      %v5417 = vpack.c.b16 %v5388, %v5387
      %v5418 = vpack.c.b16 %v5390, %v5389
      %v5419 = vpack.c.b16 %v5392, %v5391
      %v5420 = vpack.c.b16 %v5394, %v5393
      %v5421 = vpack.c.b16 %v5396, %v5395
      %v5422 = vpack.c.b16 %v5398, %v5397
      %v5423 = vpack.c.b16 %v5400, %v5399
      %v5424 = vpack.c.b16 %v5402, %v5401
      %v5425 = vpack.c.b16 %v5404, %v5403
      %v5426 = vpack.c.b16 %v5406, %v5405
      %v5427 = vpack.c.b16 %v5408, %v5407
      %v5428 = vpack.c.b16 %v5410, %v5409
      %v5429 = vpack.c.b16 %v5412, %v5411
      %v5430 = vpack.c.b16 %v5414, %v5413
      %v5433 = vunpack.c.l.b16 %v5381
      %v5434 = vunpack.c.l.b16 %v5382
      %v5435 = vpack.c.b16 %v5434, %v5433
      %v5438 = vsel %vm483, %v5415, 0
      %v5441 = vsel %vm483, %v5416, 0
      %v5444 = vsel %vm483, %v5417, 0
      %v5447 = vsel %vm483, %v5418, 0
      %v5450 = vsel %vm483, %v5419, 0
      %v5453 = vsel %vm483, %v5420, 0
      %v5456 = vsel %vm483, %v5421, 0
      %v5459 = vsel %vm483, %v5422, 0
      %v5462 = vsel %vm483, %v5423, 0
      %v5465 = vsel %vm483, %v5424, 0
      %v5468 = vsel %vm483, %v5425, 0
      %v5471 = vsel %vm483, %v5426, 0
      %v5474 = vsel %vm483, %v5427, 0
      %v5477 = vsel %vm483, %v5428, 0
      %v5480 = vsel %vm483, %v5429, 0
      %v5483 = vsel %vm483, %v5430, 0
      %5485 = vmatprep.subr.bf16.mxu0 0
      %5486 = vmatpush1.bf16.msra.mxu0 %v5435
      %5487 = vmatprep.subr.bf16.mxu0 0
      %5488 = vmatpush1.bf16.msra.mxu0 0
      %5489 = vmatprep.subr.bf16.mxu0 0
      %5490 = vmatpush1.bf16.msra.mxu0 0
      %5491 = vmatprep.subr.bf16.mxu0 0
      %5492 = vmatpush1.bf16.msra.mxu0 0
      %5493 = vmatprep.subr.bf16.mxu0 0
      %5494 = vmatpush1.bf16.msra.mxu0 0
      %5495 = vmatprep.subr.bf16.mxu0 0
      %5496 = vmatpush1.bf16.msra.mxu0 0
      %5497 = vmatprep.subr.bf16.mxu0 0
      %5498 = vmatpush1.bf16.msra.mxu0 0
      %5499 = vmatprep.subr.bf16.mxu0 0
      %5500 = vmatpush1.bf16.msra.mxu0 0
      %5501 = vmatprep.subr.bf16.mxu0 0
      %5502 = vmatpush1.bf16.msra.mxu0 0
      %5503 = vmatprep.subr.bf16.mxu0 0
      %5504 = vmatpush1.bf16.msra.mxu0 0
      %5505 = vmatprep.subr.bf16.mxu0 0
      %5506 = vmatpush1.bf16.msra.mxu0 0
      %5507 = vmatprep.subr.bf16.mxu0 0
      %5508 = vmatpush1.bf16.msra.mxu0 0
      %5509 = vmatprep.subr.bf16.mxu0 0
      %5510 = vmatpush1.bf16.msra.mxu0 0
      %5511 = vmatprep.subr.bf16.mxu0 0
      %5512 = vmatpush1.bf16.msra.mxu0 0
      %5513 = vmatprep.subr.bf16.mxu0 0
      %5514 = vmatpush1.bf16.msra.mxu0 0
      %5515 = vmatprep.subr.bf16.mxu0 0
      %5516 = vmatpush1.bf16.msra.mxu0 0
      %5517 = vmatprep.mubr.bf16.mxu0 0
      %5518 = vmatmul.mubr.bf16.gmra.mrb[0].mxu0 %v5438
      %v5519 = vpop.f32.mrb[0].mxu0
      %v5520 = vadd.f32 0.0, %v5519
      %v5521 = vpop.f32.mrb[0].mxu0
      %v5522 = vpop.f32.mrb[0].mxu0
      %v5523 = vadd.f32 0.0, %v5522
      %v5524 = vpop.f32.mrb[0].mxu0
      %5525 = vmatprep.mubr.bf16.mxu0 0
      %5526 = vmatmul.mubr.bf16.gmra.mrb[0].mxu0 %v5441
      %v5527 = vpop.f32.mrb[0].mxu0
      %v5528 = vadd.f32 0.0, %v5527
      %v5529 = vpop.f32.mrb[0].mxu0
      %v5530 = vpop.f32.mrb[0].mxu0
      %v5531 = vadd.f32 0.0, %v5530
      %v5532 = vpop.f32.mrb[0].mxu0
      %5533 = vmatprep.mubr.bf16.mxu0 0
      %5534 = vmatmul.mubr.bf16.gmra.mrb[0].mxu0 %v5444
      %v5535 = vpop.f32.mrb[0].mxu0
      %v5536 = vadd.f32 0.0, %v5535
      %v5537 = vpop.f32.mrb[0].mxu0
      %v5538 = vpop.f32.mrb[0].mxu0
      %v5539 = vadd.f32 0.0, %v5538
      %v5540 = vpop.f32.mrb[0].mxu0
      %5541 = vmatprep.mubr.bf16.mxu0 0
      %5542 = vmatmul.mubr.bf16.gmra.mrb[0].mxu0 %v5447
      %v5543 = vpop.f32.mrb[0].mxu0
      %v5544 = vadd.f32 0.0, %v5543
      %v5545 = vpop.f32.mrb[0].mxu0
      %v5546 = vpop.f32.mrb[0].mxu0
      %v5547 = vadd.f32 0.0, %v5546
      %v5548 = vpop.f32.mrb[0].mxu0
      %5549 = vmatprep.mubr.bf16.mxu0 0
      %5550 = vmatmul.mubr.bf16.gmra.mrb[0].mxu0 %v5450
      %v5551 = vpop.f32.mrb[0].mxu0
      %v5552 = vadd.f32 0.0, %v5551
      %v5553 = vpop.f32.mrb[0].mxu0
      %v5554 = vpop.f32.mrb[0].mxu0
      %v5555 = vadd.f32 0.0, %v5554
      %v5556 = vpop.f32.mrb[0].mxu0
      %5557 = vmatprep.mubr.bf16.mxu0 0
      %5558 = vmatmul.mubr.bf16.gmra.mrb[0].mxu0 %v5453
      %v5559 = vpop.f32.mrb[0].mxu0
      %v5560 = vadd.f32 0.0, %v5559
      %v5561 = vpop.f32.mrb[0].mxu0
      %v5562 = vpop.f32.mrb[0].mxu0
      %v5563 = vadd.f32 0.0, %v5562
      %v5564 = vpop.f32.mrb[0].mxu0
      %5565 = vmatprep.mubr.bf16.mxu0 0
      %5566 = vmatmul.mubr.bf16.gmra.mrb[0].mxu0 %v5456
      %v5567 = vpop.f32.mrb[0].mxu0
      %v5568 = vadd.f32 0.0, %v5567
      %v5569 = vpop.f32.mrb[0].mxu0
      %v5570 = vpop.f32.mrb[0].mxu0
      %v5571 = vadd.f32 0.0, %v5570
      %v5572 = vpop.f32.mrb[0].mxu0
      %5573 = vmatprep.mubr.bf16.mxu0 0
      %5574 = vmatmul.mubr.bf16.gmra.mrb[0].mxu0 %v5459
      %v5575 = vpop.f32.mrb[0].mxu0
      %v5576 = vadd.f32 0.0, %v5575
      %v5577 = vpop.f32.mrb[0].mxu0
      %v5578 = vpop.f32.mrb[0].mxu0
      %v5579 = vadd.f32 0.0, %v5578
      %v5580 = vpop.f32.mrb[0].mxu0
      %5581 = vmatprep.mubr.bf16.mxu0 0
      %5582 = vmatmul.mubr.bf16.gmra.mrb[0].mxu0 %v5462
      %v5583 = vpop.f32.mrb[0].mxu0
      %v5584 = vadd.f32 0.0, %v5583
      %v5585 = vpop.f32.mrb[0].mxu0
      %v5586 = vpop.f32.mrb[0].mxu0
      %v5587 = vadd.f32 0.0, %v5586
      %v5588 = vpop.f32.mrb[0].mxu0
      %5589 = vmatprep.mubr.bf16.mxu0 0
      %5590 = vmatmul.mubr.bf16.gmra.mrb[0].mxu0 %v5465
      %v5591 = vpop.f32.mrb[0].mxu0
      %v5592 = vadd.f32 0.0, %v5591
      %v5593 = vpop.f32.mrb[0].mxu0
      %v5594 = vpop.f32.mrb[0].mxu0
      %v5595 = vadd.f32 0.0, %v5594
      %v5596 = vpop.f32.mrb[0].mxu0
      %5597 = vmatprep.mubr.bf16.mxu0 0
      %5598 = vmatmul.mubr.bf16.gmra.mrb[0].mxu0 %v5468
      %v5599 = vpop.f32.mrb[0].mxu0
      %v5600 = vadd.f32 0.0, %v5599
      %v5601 = vpop.f32.mrb[0].mxu0
      %v5602 = vpop.f32.mrb[0].mxu0
      %v5603 = vadd.f32 0.0, %v5602
      %v5604 = vpop.f32.mrb[0].mxu0
      %5605 = vmatprep.mubr.bf16.mxu0 0
      %5606 = vmatmul.mubr.bf16.gmra.mrb[0].mxu0 %v5471
      %v5607 = vpop.f32.mrb[0].mxu0
      %v5608 = vadd.f32 0.0, %v5607
      %v5609 = vpop.f32.mrb[0].mxu0
      %v5610 = vpop.f32.mrb[0].mxu0
      %v5611 = vadd.f32 0.0, %v5610
      %v5612 = vpop.f32.mrb[0].mxu0
      %5613 = vmatprep.mubr.bf16.mxu0 0
      %5614 = vmatmul.mubr.bf16.gmra.mrb[0].mxu0 %v5474
      %v5615 = vpop.f32.mrb[0].mxu0
      %v5616 = vadd.f32 0.0, %v5615
      %v5617 = vpop.f32.mrb[0].mxu0
      %v5618 = vpop.f32.mrb[0].mxu0
      %v5619 = vadd.f32 0.0, %v5618
      %v5620 = vpop.f32.mrb[0].mxu0
      %5621 = vmatprep.mubr.bf16.mxu0 0
      %5622 = vmatmul.mubr.bf16.gmra.mrb[0].mxu0 %v5477
      %v5623 = vpop.f32.mrb[0].mxu0
      %v5624 = vadd.f32 0.0, %v5623
      %v5625 = vpop.f32.mrb[0].mxu0
      %v5626 = vpop.f32.mrb[0].mxu0
      %v5627 = vadd.f32 0.0, %v5626
      %v5628 = vpop.f32.mrb[0].mxu0
      %5629 = vmatprep.mubr.bf16.mxu0 0
      %5630 = vmatmul.mubr.bf16.gmra.mrb[0].mxu0 %v5480
      %v5631 = vpop.f32.mrb[0].mxu0
      %v5632 = vadd.f32 0.0, %v5631
      %v5633 = vpop.f32.mrb[0].mxu0
      %v5634 = vpop.f32.mrb[0].mxu0
      %v5635 = vadd.f32 0.0, %v5634
      %v5636 = vpop.f32.mrb[0].mxu0
      %5637 = vmatprep.mubr.bf16.mxu0 0
      %5638 = vmatmul.mubr.bf16.gmra.mrb[0].mxu0 %v5483
      %v5639 = vpop.f32.mrb[0].mxu0
      %v5640 = vadd.f32 0.0, %v5639
      %v5641 = vpop.f32.mrb[0].mxu0
      %v5642 = vpop.f32.mrb[0].mxu0
      %v5643 = vadd.f32 0.0, %v5642
      %v5644 = vpop.f32.mrb[0].mxu0
      %5645 = vdwg.mxu0
      %v5646 = vadd.f32 %v5348, %v5520
      %v5647 = vadd.f32 %v5349, %v5523
      %v5648 = vadd.f32 %v5350, %v5528
      %v5649 = vadd.f32 %v5351, %v5531
      %v5650 = vadd.f32 %v5352, %v5536
      %v5651 = vadd.f32 %v5353, %v5539
      %v5652 = vadd.f32 %v5354, %v5544
      %v5653 = vadd.f32 %v5355, %v5547
      %v5654 = vadd.f32 %v5356, %v5552
      %v5655 = vadd.f32 %v5357, %v5555
      %v5656 = vadd.f32 %v5358, %v5560
      %v5657 = vadd.f32 %v5359, %v5563
      %v5658 = vadd.f32 %v5360, %v5568
      %v5659 = vadd.f32 %v5361, %v5571
      %v5660 = vadd.f32 %v5362, %v5576
      %v5661 = vadd.f32 %v5363, %v5579
      %v5662 = vadd.f32 %v5364, %v5584
      %v5663 = vadd.f32 %v5365, %v5587
      %v5664 = vadd.f32 %v5366, %v5592
      %v5665 = vadd.f32 %v5367, %v5595
      %v5666 = vadd.f32 %v5368, %v5600
      %v5667 = vadd.f32 %v5369, %v5603
      %v5668 = vadd.f32 %v5370, %v5608
      %v5669 = vadd.f32 %v5371, %v5611
      %v5670 = vadd.f32 %v5372, %v5616
      %v5671 = vadd.f32 %v5373, %v5619
      %v5672 = vadd.f32 %v5374, %v5624
      %v5673 = vadd.f32 %v5375, %v5627
      %v5674 = vadd.f32 %v5376, %v5632
      %v5675 = vadd.f32 %v5377, %v5635
      %v5676 = vadd.f32 %v5378, %v5640
      %v5677 = vadd.f32 %v5379, %v5643
      %5678 = vst.msk [vmem:[#allocation2] sm:$0xff] %vm725, %v5646
      %5679 = vst.msk [vmem:[#allocation2 + $0x8] sm:$0xff] %vm725, %v5647
      %5680 = vst.msk [vmem:[#allocation2 + $0x10] sm:$0xff] %vm725, %v5648
      %5681 = vst.msk [vmem:[#allocation2 + $0x18] sm:$0xff] %vm725, %v5649
      %5682 = vst.msk [vmem:[#allocation2 + $0x20] sm:$0xff] %vm725, %v5650
      %5683 = vst.msk [vmem:[#allocation2 + $0x28] sm:$0xff] %vm725, %v5651
      %5684 = vst.msk [vmem:[#allocation2 + $0x30] sm:$0xff] %vm725, %v5652
      %5685 = vst.msk [vmem:[#allocation2 + $0x38] sm:$0xff] %vm725, %v5653
      %5686 = vst.msk [vmem:[#allocation2 + $0x40] sm:$0xff] %vm725, %v5654
      %5687 = vst.msk [vmem:[#allocation2 + $0x48] sm:$0xff] %vm725, %v5655
      %5688 = vst.msk [vmem:[#allocation2 + $0x50] sm:$0xff] %vm725, %v5656
      %5689 = vst.msk [vmem:[#allocation2 + $0x58] sm:$0xff] %vm725, %v5657
      %5690 = vst.msk [vmem:[#allocation2 + $0x60] sm:$0xff] %vm725, %v5658
      %5691 = vst.msk [vmem:[#allocation2 + $0x68] sm:$0xff] %vm725, %v5659
      %5692 = vst.msk [vmem:[#allocation2 + $0x70] sm:$0xff] %vm725, %v5660
      %5693 = vst.msk [vmem:[#allocation2 + $0x78] sm:$0xff] %vm725, %v5661
      %5694 = vst.msk [vmem:[#allocation2 + $0x80] sm:$0xff] %vm725, %v5662
      %5695 = vst.msk [vmem:[#allocation2 + $0x88] sm:$0xff] %vm725, %v5663
      %5696 = vst.msk [vmem:[#allocation2 + $0x90] sm:$0xff] %vm725, %v5664
      %5697 = vst.msk [vmem:[#allocation2 + $0x98] sm:$0xff] %vm725, %v5665
      %5698 = vst.msk [vmem:[#allocation2 + $0xa0] sm:$0xff] %vm725, %v5666
      %5699 = vst.msk [vmem:[#allocation2 + $0xa8] sm:$0xff] %vm725, %v5667
      %5700 = vst.msk [vmem:[#allocation2 + $0xb0] sm:$0xff] %vm725, %v5668
      %5701 = vst.msk [vmem:[#allocation2 + $0xb8] sm:$0xff] %vm725, %v5669
      %5702 = vst.msk [vmem:[#allocation2 + $0xc0] sm:$0xff] %vm725, %v5670
      %5703 = vst.msk [vmem:[#allocation2 + $0xc8] sm:$0xff] %vm725, %v5671
      %5704 = vst.msk [vmem:[#allocation2 + $0xd0] sm:$0xff] %vm725, %v5672
      %5705 = vst.msk [vmem:[#allocation2 + $0xd8] sm:$0xff] %vm725, %v5673
      %5706 = vst.msk [vmem:[#allocation2 + $0xe0] sm:$0xff] %vm725, %v5674
      %5707 = vst.msk [vmem:[#allocation2 + $0xe8] sm:$0xff] %vm725, %v5675
      %5708 = vst.msk [vmem:[#allocation2 + $0xf0] sm:$0xff] %vm725, %v5676
      %5709 = vst.msk [vmem:[#allocation2 + $0xf8] sm:$0xff] %vm725, %v5677
      // Predicated region
      $region37: #{psp_forward.1} parent=31 // pred_check
        %p5710 = pneg %p294
      $region38: #{psp_forward.1} parent=31 // pred_check_branch
        %5712 = sbr.rel (%p5710) target = $region40
      $region39: #{psp_forward.1} parent=31 // pred_region
        %v5713 = vld [vmem:[%s278] sm:$0x1]
        %v5714 = vld [vmem:[%s278 + $0x1] sm:$0x1]
        %v5715 = vld [vmem:[#allocation2] sm:$0xff]
        %v5716 = vld [vmem:[#allocation2 + $0x8] sm:$0xff]
        %v5717 = vld [vmem:[#allocation2 + $0x10] sm:$0xff]
        %v5718 = vld [vmem:[#allocation2 + $0x18] sm:$0xff]
        %v5719 = vld [vmem:[#allocation2 + $0x20] sm:$0xff]
        %v5720 = vld [vmem:[#allocation2 + $0x28] sm:$0xff]
        %v5721 = vld [vmem:[#allocation2 + $0x30] sm:$0xff]
        %v5722 = vld [vmem:[#allocation2 + $0x38] sm:$0xff]
        %v5723 = vld [vmem:[#allocation2 + $0x40] sm:$0xff]
        %v5724 = vld [vmem:[#allocation2 + $0x48] sm:$0xff]
        %v5725 = vld [vmem:[#allocation2 + $0x50] sm:$0xff]
        %v5726 = vld [vmem:[#allocation2 + $0x58] sm:$0xff]
        %v5727 = vld [vmem:[#allocation2 + $0x60] sm:$0xff]
        %v5728 = vld [vmem:[#allocation2 + $0x68] sm:$0xff]
        %v5729 = vld [vmem:[#allocation2 + $0x70] sm:$0xff]
        %v5730 = vld [vmem:[#allocation2 + $0x78] sm:$0xff]
        %v5731 = vld [vmem:[#allocation2 + $0x80] sm:$0xff]
        %v5732 = vld [vmem:[#allocation2 + $0x88] sm:$0xff]
        %v5733 = vld [vmem:[#allocation2 + $0x90] sm:$0xff]
        %v5734 = vld [vmem:[#allocation2 + $0x98] sm:$0xff]
        %v5735 = vld [vmem:[#allocation2 + $0xa0] sm:$0xff]
        %v5736 = vld [vmem:[#allocation2 + $0xa8] sm:$0xff]
        %v5737 = vld [vmem:[#allocation2 + $0xb0] sm:$0xff]
        %v5738 = vld [vmem:[#allocation2 + $0xb8] sm:$0xff]
        %v5739 = vld [vmem:[#allocation2 + $0xc0] sm:$0xff]
        %v5740 = vld [vmem:[#allocation2 + $0xc8] sm:$0xff]
        %v5741 = vld [vmem:[#allocation2 + $0xd0] sm:$0xff]
        %v5742 = vld [vmem:[#allocation2 + $0xd8] sm:$0xff]
        %v5743 = vld [vmem:[#allocation2 + $0xe0] sm:$0xff]
        %v5744 = vld [vmem:[#allocation2 + $0xe8] sm:$0xff]
        %v5745 = vld [vmem:[#allocation2 + $0xf0] sm:$0xff]
        %v5746 = vld [vmem:[#allocation2 + $0xf8] sm:$0xff]
        %v5747 = vlaneseq
        %v5748 = vshrl.u32 %v5747, 7
        %v5749 = vsub.s32 0, %v5748
        %v5750 = vrot.slane %v5713, %v5749
        %v5751 = vmul.f32 %v5715, %v5750
        %v5752 = vmul.f32 %v5716, %v5750
        %v5753 = vmul.f32 %v5717, %v5750
        %v5754 = vmul.f32 %v5718, %v5750
        %v5755 = vmul.f32 %v5719, %v5750
        %v5756 = vmul.f32 %v5720, %v5750
        %v5757 = vmul.f32 %v5721, %v5750
        %v5758 = vmul.f32 %v5722, %v5750
        %v5759 = vmul.f32 %v5723, %v5750
        %v5760 = vmul.f32 %v5724, %v5750
        %v5761 = vmul.f32 %v5725, %v5750
        %v5762 = vmul.f32 %v5726, %v5750
        %v5763 = vmul.f32 %v5727, %v5750
        %v5764 = vmul.f32 %v5728, %v5750
        %v5765 = vmul.f32 %v5729, %v5750
        %v5766 = vmul.f32 %v5730, %v5750
        %v5767 = vmul.f32 %v5731, %v5750
        %v5768 = vmul.f32 %v5732, %v5750
        %v5769 = vmul.f32 %v5733, %v5750
        %v5770 = vmul.f32 %v5734, %v5750
        %v5771 = vmul.f32 %v5735, %v5750
        %v5772 = vmul.f32 %v5736, %v5750
        %v5773 = vmul.f32 %v5737, %v5750
        %v5774 = vmul.f32 %v5738, %v5750
        %v5775 = vmul.f32 %v5739, %v5750
        %v5776 = vmul.f32 %v5740, %v5750
        %v5777 = vmul.f32 %v5741, %v5750
        %v5778 = vmul.f32 %v5742, %v5750
        %v5779 = vmul.f32 %v5743, %v5750
        %v5780 = vmul.f32 %v5744, %v5750
        %v5781 = vmul.f32 %v5745, %v5750
        %v5782 = vmul.f32 %v5746, %v5750
        %v5783 = vlaneseq
        %v5784 = vshrl.u32 %v5783, 7
        %v5785 = vsub.s32 0, %v5784
        %v5786 = vrot.slane %v5714, %v5785
        %v5787 = vadd.f32 %v5751, %v5786
        %v5788 = vadd.f32 %v5752, %v5786
        %v5789 = vadd.f32 %v5753, %v5786
        %v5790 = vadd.f32 %v5754, %v5786
        %v5791 = vadd.f32 %v5755, %v5786
        %v5792 = vadd.f32 %v5756, %v5786
        %v5793 = vadd.f32 %v5757, %v5786
        %v5794 = vadd.f32 %v5758, %v5786
        %v5795 = vadd.f32 %v5759, %v5786
        %v5796 = vadd.f32 %v5760, %v5786
        %v5797 = vadd.f32 %v5761, %v5786
        %v5798 = vadd.f32 %v5762, %v5786
        %v5799 = vadd.f32 %v5763, %v5786
        %v5800 = vadd.f32 %v5764, %v5786
        %v5801 = vadd.f32 %v5765, %v5786
        %v5802 = vadd.f32 %v5766, %v5786
        %v5803 = vadd.f32 %v5767, %v5786
        %v5804 = vadd.f32 %v5768, %v5786
        %v5805 = vadd.f32 %v5769, %v5786
        %v5806 = vadd.f32 %v5770, %v5786
        %v5807 = vadd.f32 %v5771, %v5786
        %v5808 = vadd.f32 %v5772, %v5786
        %v5809 = vadd.f32 %v5773, %v5786
        %v5810 = vadd.f32 %v5774, %v5786
        %v5811 = vadd.f32 %v5775, %v5786
        %v5812 = vadd.f32 %v5776, %v5786
        %v5813 = vadd.f32 %v5777, %v5786
        %v5814 = vadd.f32 %v5778, %v5786
        %v5815 = vadd.f32 %v5779, %v5786
        %v5816 = vadd.f32 %v5780, %v5786
        %v5817 = vadd.f32 %v5781, %v5786
        %v5818 = vadd.f32 %v5782, %v5786
        %v5819 = vmax.f32 %v5787, 0.0
        %v5820 = vmax.f32 %v5788, 0.0
        %v5821 = vmax.f32 %v5789, 0.0
        %v5822 = vmax.f32 %v5790, 0.0
        %v5823 = vmax.f32 %v5791, 0.0
        %v5824 = vmax.f32 %v5792, 0.0
        %v5825 = vmax.f32 %v5793, 0.0
        %v5826 = vmax.f32 %v5794, 0.0
        %v5827 = vmax.f32 %v5795, 0.0
        %v5828 = vmax.f32 %v5796, 0.0
        %v5829 = vmax.f32 %v5797, 0.0
        %v5830 = vmax.f32 %v5798, 0.0
        %v5831 = vmax.f32 %v5799, 0.0
        %v5832 = vmax.f32 %v5800, 0.0
        %v5833 = vmax.f32 %v5801, 0.0
        %v5834 = vmax.f32 %v5802, 0.0
        %v5835 = vmax.f32 %v5803, 0.0
        %v5836 = vmax.f32 %v5804, 0.0
        %v5837 = vmax.f32 %v5805, 0.0
        %v5838 = vmax.f32 %v5806, 0.0
        %v5839 = vmax.f32 %v5807, 0.0
        %v5840 = vmax.f32 %v5808, 0.0
        %v5841 = vmax.f32 %v5809, 0.0
        %v5842 = vmax.f32 %v5810, 0.0
        %v5843 = vmax.f32 %v5811, 0.0
        %v5844 = vmax.f32 %v5812, 0.0
        %v5845 = vmax.f32 %v5813, 0.0
        %v5846 = vmax.f32 %v5814, 0.0
        %v5847 = vmax.f32 %v5815, 0.0
        %v5848 = vmax.f32 %v5816, 0.0
        %v5849 = vmax.f32 %v5817, 0.0
        %v5850 = vmax.f32 %v5818, 0.0
        %v5851 = vpack.c.bf16 %v5820, %v5819
        %v5852 = vpack.c.bf16 %v5822, %v5821
        %v5853 = vpack.c.bf16 %v5824, %v5823
        %v5854 = vpack.c.bf16 %v5826, %v5825
        %v5855 = vpack.c.bf16 %v5828, %v5827
        %v5856 = vpack.c.bf16 %v5830, %v5829
        %v5857 = vpack.c.bf16 %v5832, %v5831
        %v5858 = vpack.c.bf16 %v5834, %v5833
        %v5859 = vpack.c.bf16 %v5836, %v5835
        %v5860 = vpack.c.bf16 %v5838, %v5837
        %v5861 = vpack.c.bf16 %v5840, %v5839
        %v5862 = vpack.c.bf16 %v5842, %v5841
        %v5863 = vpack.c.bf16 %v5844, %v5843
        %v5864 = vpack.c.bf16 %v5846, %v5845
        %v5865 = vpack.c.bf16 %v5848, %v5847
        %v5866 = vpack.c.bf16 %v5850, %v5849
        %v5883 = vunpack.c.l.b16 %v5851
        %v5884 = vunpack.c.h.b16 %v5851
        %v5885 = vunpack.c.l.b16 %v5852
        %v5886 = vunpack.c.h.b16 %v5852
        %v5887 = vunpack.c.l.b16 %v5853
        %v5888 = vunpack.c.h.b16 %v5853
        %v5889 = vunpack.c.l.b16 %v5854
        %v5890 = vunpack.c.h.b16 %v5854
        %v5891 = vunpack.c.l.b16 %v5855
        %v5892 = vunpack.c.h.b16 %v5855
        %v5893 = vunpack.c.l.b16 %v5856
        %v5894 = vunpack.c.h.b16 %v5856
        %v5895 = vunpack.c.l.b16 %v5857
        %v5896 = vunpack.c.h.b16 %v5857
        %v5897 = vunpack.c.l.b16 %v5858
        %v5898 = vunpack.c.h.b16 %v5858
        %v5899 = vunpack.c.l.b16 %v5859
        %v5900 = vunpack.c.h.b16 %v5859
        %v5901 = vunpack.c.l.b16 %v5860
        %v5902 = vunpack.c.h.b16 %v5860
        %v5903 = vunpack.c.l.b16 %v5861
        %v5904 = vunpack.c.h.b16 %v5861
        %v5905 = vunpack.c.l.b16 %v5862
        %v5906 = vunpack.c.h.b16 %v5862
        %v5907 = vunpack.c.l.b16 %v5863
        %v5908 = vunpack.c.h.b16 %v5863
        %v5909 = vunpack.c.l.b16 %v5864
        %v5910 = vunpack.c.h.b16 %v5864
        %v5911 = vunpack.c.l.b16 %v5865
        %v5912 = vunpack.c.h.b16 %v5865
        %v5913 = vunpack.c.l.b16 %v5866
        %v5914 = vunpack.c.h.b16 %v5866
        %v5915 = vpack.c.b16 %v5883, %v5883
        %v5916 = vpack.c.b16 %v5884, %v5884
        %v5917 = vpack.c.b16 %v5885, %v5885
        %v5918 = vpack.c.b16 %v5886, %v5886
        %v5919 = vpack.c.b16 %v5887, %v5887
        %v5920 = vpack.c.b16 %v5888, %v5888
        %v5921 = vpack.c.b16 %v5889, %v5889
        %v5922 = vpack.c.b16 %v5890, %v5890
        %v5923 = vpack.c.b16 %v5891, %v5891
        %v5924 = vpack.c.b16 %v5892, %v5892
        %v5925 = vpack.c.b16 %v5893, %v5893
        %v5926 = vpack.c.b16 %v5894, %v5894
        %v5927 = vpack.c.b16 %v5895, %v5895
        %v5928 = vpack.c.b16 %v5896, %v5896
        %v5929 = vpack.c.b16 %v5897, %v5897
        %v5930 = vpack.c.b16 %v5898, %v5898
        %v5931 = vpack.c.b16 %v5899, %v5899
        %v5932 = vpack.c.b16 %v5900, %v5900
        %v5933 = vpack.c.b16 %v5901, %v5901
        %v5934 = vpack.c.b16 %v5902, %v5902
        %v5935 = vpack.c.b16 %v5903, %v5903
        %v5936 = vpack.c.b16 %v5904, %v5904
        %v5937 = vpack.c.b16 %v5905, %v5905
        %v5938 = vpack.c.b16 %v5906, %v5906
        %v5939 = vpack.c.b16 %v5907, %v5907
        %v5940 = vpack.c.b16 %v5908, %v5908
        %v5941 = vpack.c.b16 %v5909, %v5909
        %v5942 = vpack.c.b16 %v5910, %v5910
        %v5943 = vpack.c.b16 %v5911, %v5911
        %v5944 = vpack.c.b16 %v5912, %v5912
        %v5945 = vpack.c.b16 %v5913, %v5913
        %v5946 = vpack.c.b16 %v5914, %v5914
        %vm5979 = vcmask 60416
        %5980 = vst.msk [vmem:[%s291] sm:$0xf] %vm5979, %v5915
        %5981 = vst.msk [vmem:[%s291 + $0x4] sm:$0xf] %vm5979, %v5916
        %5982 = vst.msk [vmem:[%s291 + $0x8] sm:$0xf] %vm5979, %v5917
        %5983 = vst.msk [vmem:[%s291 + $0xc] sm:$0xf] %vm5979, %v5918
        %5984 = vst.msk [vmem:[%s291 + $0x10] sm:$0xf] %vm5979, %v5919
        %5985 = vst.msk [vmem:[%s291 + $0x14] sm:$0xf] %vm5979, %v5920
        %5986 = vst.msk [vmem:[%s291 + $0x18] sm:$0xf] %vm5979, %v5921
        %5987 = vst.msk [vmem:[%s291 + $0x1c] sm:$0xf] %vm5979, %v5922
        %5988 = vst.msk [vmem:[%s291 + $0x20] sm:$0xf] %vm5979, %v5923
        %5989 = vst.msk [vmem:[%s291 + $0x24] sm:$0xf] %vm5979, %v5924
        %5990 = vst.msk [vmem:[%s291 + $0x28] sm:$0xf] %vm5979, %v5925
        %5991 = vst.msk [vmem:[%s291 + $0x2c] sm:$0xf] %vm5979, %v5926
        %5992 = vst.msk [vmem:[%s291 + $0x30] sm:$0xf] %vm5979, %v5927
        %5993 = vst.msk [vmem:[%s291 + $0x34] sm:$0xf] %vm5979, %v5928
        %5994 = vst.msk [vmem:[%s291 + $0x38] sm:$0xf] %vm5979, %v5929
        %5995 = vst.msk [vmem:[%s291 + $0x3c] sm:$0xf] %vm5979, %v5930
        %5996 = vst.msk [vmem:[%s291 + $0x40] sm:$0xf] %vm5979, %v5931
        %5997 = vst.msk [vmem:[%s291 + $0x44] sm:$0xf] %vm5979, %v5932
        %5998 = vst.msk [vmem:[%s291 + $0x48] sm:$0xf] %vm5979, %v5933
        %5999 = vst.msk [vmem:[%s291 + $0x4c] sm:$0xf] %vm5979, %v5934
        %6000 = vst.msk [vmem:[%s291 + $0x50] sm:$0xf] %vm5979, %v5935
        %6001 = vst.msk [vmem:[%s291 + $0x54] sm:$0xf] %vm5979, %v5936
        %6002 = vst.msk [vmem:[%s291 + $0x58] sm:$0xf] %vm5979, %v5937
        %6003 = vst.msk [vmem:[%s291 + $0x5c] sm:$0xf] %vm5979, %v5938
        %6004 = vst.msk [vmem:[%s291 + $0x60] sm:$0xf] %vm5979, %v5939
        %6005 = vst.msk [vmem:[%s291 + $0x64] sm:$0xf] %vm5979, %v5940
        %6006 = vst.msk [vmem:[%s291 + $0x68] sm:$0xf] %vm5979, %v5941
        %6007 = vst.msk [vmem:[%s291 + $0x6c] sm:$0xf] %vm5979, %v5942
        %6008 = vst.msk [vmem:[%s291 + $0x70] sm:$0xf] %vm5979, %v5943
        %6009 = vst.msk [vmem:[%s291 + $0x74] sm:$0xf] %vm5979, %v5944
        %6010 = vst.msk [vmem:[%s291 + $0x78] sm:$0xf] %vm5979, %v5945
        %6011 = vst.msk [vmem:[%s291 + $0x7c] sm:$0xf] %vm5979, %v5946
      $region40: #{psp_forward.1} parent=31 // pred_fallthru
        _
      %s6012 = smul.u32 16, %s21
      %p6013 = scmp.lt.s32.totalorder %s20, 1
      %s6014 = scalar_select %p6013, %s20, 1
      %p6015 = scmp.lt.s32.totalorder %s6012, 15
      %s6016 = scalar_select %p6015, %s6012, 15
      %p6017 = scmp.lt.s32.totalorder %s22, 0
      %s6018 = scalar_select %p6017, %s22, 0
      %s6019 = smul.addr %s6016, 2
      %s6020 = sadd.s32 %s6018, %s6019
      %s6021 = smul.addr %s6014, 32
      %s6022 = sadd.s32 %s6020, %s6021
      %s6023 = smul.addr %s6022, 4
      %s6024 = scalar_lea.vmem %s3, %s6023
      // Predicated region
      $region41: #{psp_forward.1} parent=31 // pred_check
        %p6025 = pneg %p146
      $region42: #{psp_forward.1} parent=31 // pred_check_branch
        %6027 = sbr.rel (%p6025) target = $region44
      $region43: #{psp_forward.1} parent=31 // pred_region
        %s6028 = smul.u32 16, %s21
      $region44: #{psp_forward.1} parent=31 // pred_fallthru
        _
    $region32: #{psp_forward.1} parent=5 // pred_fallthru
      _
    %p6029 = scmp.le.s32.totalorder 2, %s9
    // Predicated region
    $region45: #{psp_forward.1} parent=5 // pred_check
      %p6030 = pneg %p6029
    $region46: #{psp_forward.1} parent=5 // pred_check_branch
      %6032 = sbr.rel (%p6030) target = $region48
    $region47: #{psp_forward.1} parent=5 // pred_region
      %s6033 = ssub.s32 %s9, 2
      // Predicated region
      $region49: #{psp_forward.1} parent=47 // pred_check
        %p6034 = pneg %p152
      $region50: #{psp_forward.1} parent=47 // pred_check_branch
        %6036 = sbr.rel (%p6034) target = $region52
      $region51: #{psp_forward.1} parent=47 // pred_region
        %s6037 = smul.u32 16, %s25
        %p6038 = scmp.lt.s32.totalorder %s24, 1
        %s6039 = scalar_select %p6038, %s24, 1
        %p6040 = scmp.lt.s32.totalorder %s6037, 15
        %s6041 = scalar_select %p6040, %s6037, 15
        %p6042 = scmp.lt.s32.totalorder %s26, 0
        %s6043 = scalar_select %p6042, %s26, 0
        %s6044 = smul.addr %s6041, 2
        %s6045 = sadd.s32 %s6043, %s6044
        %s6046 = smul.addr %s6039, 32
        %s6047 = sadd.s32 %s6045, %s6046
        %s6048 = smul.addr %s6047, 4
        %s6049 = scalar_lea.vmem %s3, %s6048
      $region52: #{psp_forward.1} parent=47 // pred_fallthru
        _
    $region48: #{psp_forward.1} parent=5 // pred_fallthru
      _
  $region6: #{psp_forward.1} parent=0 // loop_footer
    %s13 = sadd.s32 1, %s9
  $region7: #{psp_forward.1} parent=0 // loop_footer_branch
    %8 = sbr.rel target = $region3
  $region8: #{psp_forward.1} parent=0 // loop_exit
    _

</llo_original>
